<compile_context>
chip_gen: v6e
topology: v6e:2x2x1
jax: 0.10.0
libtpu: 0.0.40
codegen_flags: <defaults>
</compile_context>

<pallas_src>
import functools
import math

import jax
import jax.numpy as jnp
from jax import lax
from jax.experimental import pallas as pl
from jax.experimental.pallas import tpu as pltpu

LN_EPS = 1e-5  # torch.nn.LayerNorm default eps


# ----------------------------- packing layout --------------------------------
_W_SEGS = ("wq", "wkv", "wgi", "wgh", "w1", "wkeep")

_VEC_NAMES = ("mu", "sigma", "lni_w", "lni_b", "lns_w", "lns_b", "lnp_w",
              "lnp_b", "bq", "bkv", "bgi", "bgh", "b1", "b2")
_VEC_ROW = {name: i for i, name in enumerate(_VEC_NAMES)}


def _round_up(v, m):
    return ((v + m - 1) // m) * m


def _slab_layout(dim, hidden_dim):
    """Column offsets/widths of the packed weight slab (128-lane aligned)."""
    widths = {"wq": dim, "wkv": 2 * dim, "wgi": 3 * dim, "wgh": 3 * dim,
              "w1": hidden_dim, "wkeep": 2}
    offs, col = {}, 0
    for name in _W_SEGS:
        offs[name] = col
        col += _round_up(widths[name], 128)   # each segment starts on a lane tile
    return offs, widths, col


def pack_params(p, dim, hidden_dim, compute_dtype=jnp.float32):
    """Pack the per-layer parameters into 3 kernel inputs."""
    offs, _, total = _slab_layout(dim, hidden_dim)

    w_parts = {
        "wq": p["wq"],
        "wkv": jnp.concatenate([p["wk"], p["wv"]], axis=1),
        "wgi": jnp.concatenate([p["wir"], p["wiz"], p["win"]], axis=1),
        "wgh": jnp.concatenate([p["whr"], p["whz"], p["whn"]], axis=1),
        "w1": p["w1"],
        "wkeep": p["wkeep"],
    }
    w_slab = jnp.zeros((dim, total), jnp.float32)
    for name in _W_SEGS:
        w = w_parts[name]
        w_slab = w_slab.at[:, offs[name]:offs[name] + w.shape[1]].set(w)

    vec_w = max(3 * dim, hidden_dim)
    vec_parts = {
        "mu": p["mu"],
        "sigma": jnp.exp(p["logsigma"]),      # exp(logsigma) folded here
        "lni_w": p["lni_w"], "lni_b": p["lni_b"],
        "lns_w": p["lns_w"], "lns_b": p["lns_b"],
        "lnp_w": p["lnp_w"], "lnp_b": p["lnp_b"],
        "bq": p["bq"],
        "bkv": jnp.concatenate([p["bk"], p["bv"]], axis=1),
        "bgi": jnp.concatenate([p["bir"], p["biz"], p["bin"]], axis=1),
        "bgh": jnp.concatenate([p["bhr"], p["bhz"], p["bhn"]], axis=1),
        "b1": p["b1"], "b2": p["b2"],
    }
    rows = [jnp.pad(vec_parts[n], ((0, 0), (0, vec_w - vec_parts[n].shape[1])))
            for n in _VEC_NAMES]
    vec_slab = jnp.concatenate(rows, axis=0)   # (14, vec_w) float32

    return (w_slab.astype(compute_dtype),
            p["w2"].astype(compute_dtype),
            vec_slab.astype(jnp.float32))


# ------------------------------- kernel math ----------------------------------
def _layernorm(x, w, b):
    mean = jnp.mean(x, axis=-1, keepdims=True)
    var = jnp.mean((x - mean) ** 2, axis=-1, keepdims=True)
    return (x - mean) * lax.rsqrt(var + LN_EPS) * w + b


def _recip(x):
    # EUP approximate reciprocal + one Newton step: divide latency moves to the
    # otherwise-idle EUP slot while staying ~f32-accurate.
    r = pl.reciprocal(x, approx=True)
    return r * (2.0 - x * r)


def adaptive_slot_kernel(iters, scale, eps, inv_temp,
                         x_ref, noise_ref, g_ref, w_ref, w2_ref, vec_ref,
                         slots_out_ref, extras_out_ref):
    Bt, N, D = x_ref.shape
    S = noise_ref.shape[1]
    H = w2_ref.shape[0]
    cd = w_ref.dtype                      # MXU operand dtype (f32 or bf16)

    offs, widths, _ = _slab_layout(D, H)

    def wseg(name):
        o = offs[name]
        return w_ref[:, o:o + widths[name]]

    def vrow(name, width):
        r = _VEC_ROW[name]
        return vec_ref[r:r + 1, 0:width]

    wq, wkv, wgi, wgh, w1, wkp = (wseg(n) for n in _W_SEGS)
    w2 = w2_ref[...]

    mu, sigma = vrow("mu", D), vrow("sigma", D)
    lni_w, lni_b = vrow("lni_w", D), vrow("lni_b", D)
    lns_w, lns_b = vrow("lns_w", D), vrow("lns_b", D)
    lnp_w, lnp_b = vrow("lnp_w", D), vrow("lnp_b", D)
    bq, bkv = vrow("bq", D), vrow("bkv", 2 * D)
    bgi, bgh = vrow("bgi", 3 * D), vrow("bgh", 3 * D)
    b1, b2 = vrow("b1", H), vrow("b2", D)

    # Fold the batch block into the row dimension for all dense projections.
    x = x_ref[...].reshape(Bt * N, D)
    noise = noise_ref[...].reshape(Bt * S, D)

    # slot init: mu + exp(logsigma) * N(0,1)
    slots = mu + sigma * noise                              # (Bt*S, D) f32

    # norm_input + fused k/v projection (computed once, reused every iteration)
    xin = _layernorm(x, lni_w, lni_b)
    kv = jnp.dot(xin.astype(cd), wkv,
                 preferred_element_type=jnp.float32) + bkv  # (Bt*N, 2D)
    vb = kv[:, D:2 * D].reshape(Bt, N, D).astype(cd)        # (Bt, N, D)
    kbt = jnp.swapaxes(kv[:, 0:D].reshape(Bt, N, D), 1, 2).astype(cd)  # (Bt, D, N)

    # iters is small & static: the unrolled Python loop keeps one basic block.
    # (switch to lax.fori_loop(..., unroll=...) if iters ever grows)
    for _ in range(iters):
        slots_prev = slots
        s_n = _layernorm(slots, lns_w, lns_b)
        q = jnp.dot(s_n.astype(cd), wq,
                    preferred_element_type=jnp.float32) + bq
        qb = q.reshape(Bt, S, D).astype(cd)

        dots = jnp.einsum("bid,bdj->bij", qb, kbt,
                          preferred_element_type=jnp.float32) * scale  # (Bt,S,N)

        # softmax over the slot axis, then (+eps) L1-renormalize over tokens
        dmax = jnp.max(dots, axis=1, keepdims=True)
        e = jnp.exp(dots - dmax)
        attn = e * _recip(jnp.sum(e, axis=1, keepdims=True))
        attn = attn + eps
        attn = attn * _recip(jnp.sum(attn, axis=-1, keepdims=True))

        upd = jnp.einsum("bij,bjd->bid", attn.astype(cd), vb,
                         preferred_element_type=jnp.float32)           # (Bt,S,D)
        upd = upd.reshape(Bt * S, D)

        # GRUCell(updates, slots_prev): 6 tiny matmuls fused into 2x (D, 3D)
        gi = jnp.dot(upd.astype(cd), wgi,
                     preferred_element_type=jnp.float32) + bgi
        gh = jnp.dot(slots_prev.astype(cd), wgh,
                     preferred_element_type=jnp.float32) + bgh
        r = jax.nn.sigmoid(gi[:, 0:D] + gh[:, 0:D])
        z = jax.nn.sigmoid(gi[:, D:2 * D] + gh[:, D:2 * D])
        n_gate = jnp.tanh(gi[:, 2 * D:3 * D] + r * gh[:, 2 * D:3 * D])
        slots = (1.0 - z) * n_gate + z * slots_prev

        # residual MLP
        pre = _layernorm(slots, lnp_w, lnp_b)
        h = jnp.maximum(
            jnp.dot(pre.astype(cd), w1, preferred_element_type=jnp.float32) + b1,
            0.0)
        slots = slots + jnp.dot(h.astype(cd), w2,
                                preferred_element_type=jnp.float32) + b2

    slots_out_ref[...] = slots.reshape(Bt, S, D)

    # keep-slot head: Linear(D, 2, bias=False) -> softmax -> gumbel hard argmax
    lk = jnp.dot(slots.astype(cd), wkp,
                 preferred_element_type=jnp.float32)        # (Bt*S, 2)
    m = jnp.max(lk, axis=-1, keepdims=True)
    ek = jnp.exp(lk - m)
    probs = ek * _recip(jnp.sum(ek, axis=-1, keepdims=True))  # (Bt*S, 2)
    g = g_ref[...].reshape(Bt * S, 2)
    noised = probs * inv_temp + g
    keep = (noised[:, 1:2] > noised[:, 0:1]).astype(jnp.float32)  # (Bt*S, 1)

    # merged output: extras[..., 0] = hard keep, extras[..., 1] = keep prob
    col = lax.broadcasted_iota(jnp.int32, (Bt * S, 2), 1)
    extras = jnp.where(col == 0, keep, probs)
    extras_out_ref[...] = extras.reshape(Bt, S, 2)


# --------------------------------- wrapper ------------------------------------
def adaptive_slot_wrapper(x, params, slot_noise, gumbel_u, *,
                          iters=3, eps=1e-8, temperature=1.0,
                          batch_block=None, compute_dtype=jnp.float32):
    B, N, D = x.shape
    S = slot_noise.shape[1]
    H = params["w2"].shape[0]
    scale = float(D) ** -0.5
    inv_temp = 1.0 / temperature

    if batch_block is None:
        # Process the whole (small) batch per grid step to amortize per-step
        # pipeline/DMA overhead.  On v7x prefer a batch_block that keeps the
        # grid length a multiple of 2 so both TensorCores get work.
        batch_block = math.gcd(B, 8)
    assert B % batch_block == 0, "batch_block must divide the batch size"
    Bt = batch_block
    grid_len = B // Bt

    # gumbel noise = -log(-log(u)) with torch-style clamp(min=1e-20)
    inner = jnp.log(jnp.maximum(gumbel_u, 1e-20))
    g = -jnp.log(jnp.maximum(-inner, 1e-20))               # (B, S, 2)

    w_slab, w2, vec_slab = pack_params(params, D, H, compute_dtype)

    def bspec(shape):      # per-batch-block arrays
        nrest = len(shape) - 1
        return pl.BlockSpec((Bt,) + tuple(shape[1:]),
                            lambda b, _n=nrest: (b,) + (0,) * _n)

    def sspec(shape):      # shared parameter slabs
        nz = len(shape)
        return pl.BlockSpec(tuple(shape), lambda b, _n=nz: (0,) * _n)

    kernel = functools.partial(adaptive_slot_kernel, iters, scale, eps, inv_temp)

    slots, extras = pl.pallas_call(
        kernel,
        grid=(grid_len,),
        in_specs=[bspec(x.shape), bspec(slot_noise.shape), bspec(g.shape),
                  sspec(w_slab.shape), sspec(w2.shape), sspec(vec_slab.shape)],
        out_specs=[bspec((B, S, D)), bspec((B, S, 2))],
        out_shape=(jax.ShapeDtypeStruct((B, S, D), jnp.float32),
                   jax.ShapeDtypeStruct((B, S, 2), jnp.float32)),
        compiler_params=pltpu.CompilerParams(
            dimension_semantics=("parallel",)),
    )(x, slot_noise, g, w_slab, w2, vec_slab)

    return slots, extras[..., 0], extras[..., 1]


# --------------------------- synthetic parameters ------------------------------
def init_params(key, dim, hidden_dim):
    """Synthetic parameters with the same shapes/roles as the torch module.

    Linear weights are stored pre-transposed as (in, out) so y = x @ W + b.
    LayerNorm affine params are randomized (not ones/zeros) so the test
    distinguishes the three LayerNorm layers.
    """
    keys = iter(jax.random.split(key, 64))

    def lin(fan_in, fan_out):
        lim = 1.0 / float(fan_in) ** 0.5
        w = jax.random.uniform(next(keys), (fan_in, fan_out), jnp.float32, -lim, lim)
        b = jax.random.uniform(next(keys), (1, fan_out), jnp.float32, -lim, lim)
        return w, b

    p = {}
    p["mu"] = jax.random.normal(next(keys), (1, dim), jnp.float32)
    xav = (3.0 / dim) ** 0.5
    p["logsigma"] = jax.random.uniform(next(keys), (1, dim), jnp.float32, -xav, xav)

    for name in ["lni", "lns", "lnp"]:
        p[f"{name}_w"] = 1.0 + 0.1 * jax.random.normal(next(keys), (1, dim), jnp.float32)
        p[f"{name}_b"] = 0.1 * jax.random.normal(next(keys), (1, dim), jnp.float32)

    p["wq"], p["bq"] = lin(dim, dim)
    p["wk"], p["bk"] = lin(dim, dim)
    p["wv"], p["bv"] = lin(dim, dim)

    lim = 1.0 / float(dim) ** 0.5
    for name in ["wir", "wiz", "win", "whr", "whz", "whn"]:
        p[name] = jax.random.uniform(next(keys), (dim, dim), jnp.float32, -lim, lim)
    for name in ["bir", "biz", "bin", "bhr", "bhz", "bhn"]:
        p[name] = jax.random.uniform(next(keys), (1, dim), jnp.float32, -lim, lim)

    p["w1"], p["b1"] = lin(dim, hidden_dim)
    p["w2"], p["b2"] = lin(hidden_dim, dim)

    p["wkeep"] = jax.random.uniform(next(keys), (dim, 2), jnp.float32, -lim, lim)
    return p


# ------------------------- pure-JAX reference (checking) -----------------------
def reference(x, p, slot_noise, gumbel_u, *, iters=3, eps=1e-8, temperature=1.0):
    B, N, D = x.shape
    scale = float(D) ** -0.5

    slots = p["mu"] + jnp.exp(p["logsigma"]) * slot_noise                  # (B,S,D)
    xin = _layernorm(x, p["lni_w"], p["lni_b"])
    k = xin @ p["wk"] + p["bk"]
    v = xin @ p["wv"] + p["bv"]

    for _ in range(iters):
        slots_prev = slots
        s = _layernorm(slots, p["lns_w"], p["lns_b"])
        q = s @ p["wq"] + p["bq"]
        dots = jnp.einsum("bid,bjd->bij", q, k) * scale
        attn = jax.nn.softmax(dots, axis=1) + eps
        attn = attn / jnp.sum(attn, axis=-1, keepdims=True)
        updates = jnp.einsum("bjd,bij->bid", v, attn)

        r = jax.nn.sigmoid(updates @ p["wir"] + p["bir"] + slots_prev @ p["whr"] + p["bhr"])
        z = jax.nn.sigmoid(updates @ p["wiz"] + p["biz"] + slots_prev @ p["whz"] + p["bhz"])
        n_gate = jnp.tanh(updates @ p["win"] + p["bin"]
                          + r * (slots_prev @ p["whn"] + p["bhn"]))
        slots = (1.0 - z) * n_gate + z * slots_prev

        pre = _layernorm(slots, p["lnp_w"], p["lnp_b"])
        slots = slots + (jnp.maximum(pre @ p["w1"] + p["b1"], 0.0) @ p["w2"] + p["b2"])

    logits = jnp.einsum("bsd,dk->bsk", slots, p["wkeep"])
    probs = jax.nn.softmax(logits, axis=-1)
    p1 = probs[..., 1]

    inner = jnp.log(jnp.maximum(gumbel_u, 1e-20))
    g = -jnp.log(jnp.maximum(-inner, 1e-20))
    noised = probs / temperature + g
    keep = (noised[..., 1] > noised[..., 0]).astype(jnp.float32)
    return slots, keep, p1


if __name__ == "__main__":
    B, N, D, S = 2, 64, 32, 8
    ITERS, EPS, TEMP = 3, 1e-8, 1.0
    HIDDEN = max(D, 128)

    root = jax.random.PRNGKey(0)
    k_par, k_x, k_slot, k_gum = jax.random.split(root, 4)

    params = init_params(k_par, D, HIDDEN)
    x = jax.random.normal(k_x, (B, N, D), jnp.float32)
    slot_noise = jax.random.normal(k_slot, (B, S, D), jnp.float32)
    gumbel_u = jax.random.uniform(k_gum, (B, S, 2), jnp.float32)

    slots, keep_slots, keep_logits = adaptive_slot_wrapper(
        x, params, slot_noise, gumbel_u, iters=ITERS, eps=EPS, temperature=TEMP)
    jax.block_until_ready((slots, keep_slots, keep_logits))

    slots_ref, keep_ref, logits_ref = reference(
        x, params, slot_noise, gumbel_u, iters=ITERS, eps=EPS, temperature=TEMP)

    assert slots.shape == (B, S, D)
    assert keep_slots.shape == (B, S)
    assert keep_logits.shape == (B, S)
    # Tolerances leave margin for the approx-reciprocal (EUP) fast path.
    assert jnp.allclose(slots, slots_ref, atol=1e-3, rtol=1e-3), "slots mismatch"
    assert jnp.allclose(keep_logits, logits_ref, atol=1e-3, rtol=1e-3), "logits mismatch"
    # Keep decision: validate against the kernel's own logits + the same gumbel
    # noise (avoids spurious flips from sub-1e-5 float noise exactly at a tie).
    inner = jnp.log(jnp.maximum(gumbel_u, 1e-20))
    g = -jnp.log(jnp.maximum(-inner, 1e-20))
    keep_chk = ((keep_logits / TEMP + g[..., 1]) >
                ((1.0 - keep_logits) / TEMP + g[..., 0])).astype(jnp.float32)
    assert jnp.array_equal(keep_slots, keep_chk), "keep decision mismatch"
    assert bool(jnp.all((keep_slots == 0.0) | (keep_slots == 1.0)))

    # bf16 MXU-operand path (v6e/v7x fast path); coarse sanity check only.
    slots_bf, keep_bf, logits_bf = adaptive_slot_wrapper(
        x, params, slot_noise, gumbel_u, iters=ITERS, eps=EPS, temperature=TEMP,
        compute_dtype=jnp.bfloat16)
    jax.block_until_ready(slots_bf)
    assert bool(jnp.all(jnp.isfinite(slots_bf)))
    assert float(jnp.max(jnp.abs(slots_bf - slots_ref))) < 0.5, "bf16 path diverged"

    print("KERNEL_OK")
</pallas_src>

<mosaic_0001>
module attributes {stable_mosaic.version = 11 : i64} {
  func.func @adaptive_slot_kernel(%arg0: i32, %arg1: memref<2x64x32xf32, #tpu.memory_space<vmem>>, %arg2: memref<2x8x32xf32, #tpu.memory_space<vmem>>, %arg3: memref<2x8x2xf32, #tpu.memory_space<vmem>>, %arg4: memref<32x768xf32, #tpu.memory_space<vmem>>, %arg5: memref<128x32xf32, #tpu.memory_space<vmem>>, %arg6: memref<14x128xf32, #tpu.memory_space<vmem>>, %arg7: memref<2x8x32xf32, #tpu.memory_space<vmem>>, %arg8: memref<2x8x2xf32, #tpu.memory_space<vmem>>) attributes {dimension_semantics = [#tpu.dimension_semantics<parallel>], iteration_bounds = array<i64: 1>, scalar_prefetch = 0 : i64, scratch_operands = 0 : i64, tpu.core_type = #tpu.core_type<tc>, window_params = [{transform_indices = @transform_0, window_bounds = array<i64: 2, 64, 32>}, {transform_indices = @transform_1, window_bounds = array<i64: 2, 8, 32>}, {transform_indices = @transform_2, window_bounds = array<i64: 2, 8, 2>}, {pipeline_mode = #tpu.pipeline_mode<synchronous>, transform_indices = @transform_3, window_bounds = array<i64: 32, 768>}, {pipeline_mode = #tpu.pipeline_mode<synchronous>, transform_indices = @transform_4, window_bounds = array<i64: 128, 32>}, {pipeline_mode = #tpu.pipeline_mode<synchronous>, transform_indices = @transform_5, window_bounds = array<i64: 14, 128>}, {transform_indices = @transform_6, window_bounds = array<i64: 2, 8, 32>}, {transform_indices = @transform_7, window_bounds = array<i64: 2, 8, 2>}]} {
    %c0 = arith.constant 0 : index
    %c0_0 = arith.constant 0 : index
    %0 = vector.load %arg4[%c0, %c0_0] : memref<32x768xf32, #tpu.memory_space<vmem>>, vector<32x32xf32>
    %c0_1 = arith.constant 0 : index
    %c128 = arith.constant 128 : index
    %1 = vector.load %arg4[%c0_1, %c128] : memref<32x768xf32, #tpu.memory_space<vmem>>, vector<32x64xf32>
    %c0_2 = arith.constant 0 : index
    %c256 = arith.constant 256 : index
    %2 = vector.load %arg4[%c0_2, %c256] : memref<32x768xf32, #tpu.memory_space<vmem>>, vector<32x96xf32>
    %c0_3 = arith.constant 0 : index
    %c384 = arith.constant 384 : index
    %3 = vector.load %arg4[%c0_3, %c384] : memref<32x768xf32, #tpu.memory_space<vmem>>, vector<32x96xf32>
    %c0_4 = arith.constant 0 : index
    %c512 = arith.constant 512 : index
    %4 = vector.load %arg4[%c0_4, %c512] : memref<32x768xf32, #tpu.memory_space<vmem>>, vector<32x128xf32>
    %c0_5 = arith.constant 0 : index
    %c640 = arith.constant 640 : index
    %5 = vector.load %arg4[%c0_5, %c640] : memref<32x768xf32, #tpu.memory_space<vmem>>, vector<32x2xf32>
    %c0_6 = arith.constant 0 : index
    %c0_7 = arith.constant 0 : index
    %6 = vector.load %arg5[%c0_6, %c0_7] : memref<128x32xf32, #tpu.memory_space<vmem>>, vector<128x32xf32>
    %c0_8 = arith.constant 0 : index
    %c0_9 = arith.constant 0 : index
    %7 = vector.load %arg6[%c0_8, %c0_9] : memref<14x128xf32, #tpu.memory_space<vmem>>, vector<1x32xf32>
    %c1 = arith.constant 1 : index
    %c0_10 = arith.constant 0 : index
    %8 = vector.load %arg6[%c1, %c0_10] : memref<14x128xf32, #tpu.memory_space<vmem>>, vector<1x32xf32>
    %c2 = arith.constant 2 : index
    %c0_11 = arith.constant 0 : index
    %9 = vector.load %arg6[%c2, %c0_11] : memref<14x128xf32, #tpu.memory_space<vmem>>, vector<1x32xf32>
    %c3 = arith.constant 3 : index
    %c0_12 = arith.constant 0 : index
    %10 = vector.load %arg6[%c3, %c0_12] : memref<14x128xf32, #tpu.memory_space<vmem>>, vector<1x32xf32>
    %c4 = arith.constant 4 : index
    %c0_13 = arith.constant 0 : index
    %11 = vector.load %arg6[%c4, %c0_13] : memref<14x128xf32, #tpu.memory_space<vmem>>, vector<1x32xf32>
    %c5 = arith.constant 5 : index
    %c0_14 = arith.constant 0 : index
    %12 = vector.load %arg6[%c5, %c0_14] : memref<14x128xf32, #tpu.memory_space<vmem>>, vector<1x32xf32>
    %c6 = arith.constant 6 : index
    %c0_15 = arith.constant 0 : index
    %13 = vector.load %arg6[%c6, %c0_15] : memref<14x128xf32, #tpu.memory_space<vmem>>, vector<1x32xf32>
    %c7 = arith.constant 7 : index
    %c0_16 = arith.constant 0 : index
    %14 = vector.load %arg6[%c7, %c0_16] : memref<14x128xf32, #tpu.memory_space<vmem>>, vector<1x32xf32>
    %c8 = arith.constant 8 : index
    %c0_17 = arith.constant 0 : index
    %15 = vector.load %arg6[%c8, %c0_17] : memref<14x128xf32, #tpu.memory_space<vmem>>, vector<1x32xf32>
    %c9 = arith.constant 9 : index
    %c0_18 = arith.constant 0 : index
    %16 = vector.load %arg6[%c9, %c0_18] : memref<14x128xf32, #tpu.memory_space<vmem>>, vector<1x64xf32>
    %c10 = arith.constant 10 : index
    %c0_19 = arith.constant 0 : index
    %17 = vector.load %arg6[%c10, %c0_19] : memref<14x128xf32, #tpu.memory_space<vmem>>, vector<1x96xf32>
    %c11 = arith.constant 11 : index
    %c0_20 = arith.constant 0 : index
    %18 = vector.load %arg6[%c11, %c0_20] : memref<14x128xf32, #tpu.memory_space<vmem>>, vector<1x96xf32>
    %c12 = arith.constant 12 : index
    %c0_21 = arith.constant 0 : index
    %19 = vector.load %arg6[%c12, %c0_21] : memref<14x128xf32, #tpu.memory_space<vmem>>, vector<1x128xf32>
    %c13 = arith.constant 13 : index
    %c0_22 = arith.constant 0 : index
    %20 = vector.load %arg6[%c13, %c0_22] : memref<14x128xf32, #tpu.memory_space<vmem>>, vector<1x32xf32>
    %c0_23 = arith.constant 0 : index
    %c0_24 = arith.constant 0 : index
    %c0_25 = arith.constant 0 : index
    %21 = vector.load %arg1[%c0_23, %c0_24, %c0_25] : memref<2x64x32xf32, #tpu.memory_space<vmem>>, vector<2x64x32xf32>
    %22 = vector.shape_cast %21 : vector<2x64x32xf32> to vector<128x32xf32>
    %c0_26 = arith.constant 0 : index
    %c0_27 = arith.constant 0 : index
    %c0_28 = arith.constant 0 : index
    %23 = vector.load %arg2[%c0_26, %c0_27, %c0_28] : memref<2x8x32xf32, #tpu.memory_space<vmem>>, vector<2x8x32xf32>
    %24 = vector.shape_cast %23 : vector<2x8x32xf32> to vector<16x32xf32>
    %25 = vector.broadcast %8 : vector<1x32xf32> to vector<16x32xf32>
    %26 = arith.mulf %25, %24 : vector<16x32xf32>
    %27 = vector.broadcast %7 : vector<1x32xf32> to vector<16x32xf32>
    %28 = arith.addf %27, %26 : vector<16x32xf32>
    %cst = arith.constant dense<0.000000e+00> : vector<128xf32>
    %29 = vector.multi_reduction <add>, %22, %cst [1] : vector<128x32xf32> to vector<128xf32>
    %30 = vector.shape_cast %29 : vector<128xf32> to vector<128x1xf32>
    %cst_29 = arith.constant 3.200000e+01 : f32
    %31 = vector.broadcast %cst_29 : f32 to vector<128x1xf32>
    %32 = arith.divf %30, %31 : vector<128x1xf32>
    %33 = vector.broadcast %32 : vector<128x1xf32> to vector<128x32xf32>
    %34 = arith.subf %22, %33 : vector<128x32xf32>
    %35 = arith.mulf %34, %34 : vector<128x32xf32>
    %cst_30 = arith.constant dense<0.000000e+00> : vector<128xf32>
    %36 = vector.multi_reduction <add>, %35, %cst_30 [1] : vector<128x32xf32> to vector<128xf32>
    %37 = vector.shape_cast %36 : vector<128xf32> to vector<128x1xf32>
    %cst_31 = arith.constant 3.200000e+01 : f32
    %38 = vector.broadcast %cst_31 : f32 to vector<128x1xf32>
    %39 = arith.divf %37, %38 : vector<128x1xf32>
    %40 = vector.broadcast %32 : vector<128x1xf32> to vector<128x32xf32>
    %41 = arith.subf %22, %40 : vector<128x32xf32>
    %cst_32 = arith.constant 9.99999974E-6 : f32
    %42 = vector.broadcast %cst_32 : f32 to vector<128x1xf32>
    %43 = arith.addf %39, %42 : vector<128x1xf32>
    %44 = math.rsqrt %43 : vector<128x1xf32>
    %45 = vector.broadcast %44 : vector<128x1xf32> to vector<128x32xf32>
    %46 = arith.mulf %41, %45 : vector<128x32xf32>
    %47 = vector.broadcast %9 : vector<1x32xf32> to vector<128x32xf32>
    %48 = arith.mulf %46, %47 : vector<128x32xf32>
    %49 = vector.broadcast %10 : vector<1x32xf32> to vector<128x32xf32>
    %50 = arith.addf %48, %49 : vector<128x32xf32>
    %cst_33 = arith.constant dense<0.000000e+00> : vector<128x64xf32>
    %51 = tpu.matmul %50, %1, %cst_33 {dimension_numbers = #tpu.dot_dimension_numbers<[1], [0], [0], [1], [0, 0, 1, 1], [], []>} : vector<128x32xf32>, vector<32x64xf32>, vector<128x64xf32> -> vector<128x64xf32>
    %52 = vector.broadcast %16 : vector<1x64xf32> to vector<128x64xf32>
    %53 = arith.addf %51, %52 : vector<128x64xf32>
    %54 = vector.extract_strided_slice %53 {offsets = [0, 32], sizes = [128, 32], strides = [1, 1]} : vector<128x64xf32> to vector<128x32xf32>
    %55 = vector.shape_cast %54 : vector<128x32xf32> to vector<2x64x32xf32>
    %56 = vector.extract_strided_slice %53 {offsets = [0, 0], sizes = [128, 32], strides = [1, 1]} : vector<128x64xf32> to vector<128x32xf32>
    %57 = vector.shape_cast %56 : vector<128x32xf32> to vector<2x64x32xf32>
    %58 = tpu.transpose %57, [0, 2, 1] : vector<2x64x32xf32> -> vector<2x32x64xf32>
    %cst_34 = arith.constant dense<0.000000e+00> : vector<16xf32>
    %59 = vector.multi_reduction <add>, %28, %cst_34 [1] : vector<16x32xf32> to vector<16xf32>
    %60 = vector.shape_cast %59 : vector<16xf32> to vector<16x1xf32>
    %cst_35 = arith.constant 3.200000e+01 : f32
    %61 = vector.broadcast %cst_35 : f32 to vector<16x1xf32>
    %62 = arith.divf %60, %61 : vector<16x1xf32>
    %63 = vector.broadcast %62 : vector<16x1xf32> to vector<16x32xf32>
    %64 = arith.subf %28, %63 : vector<16x32xf32>
    %65 = arith.mulf %64, %64 : vector<16x32xf32>
    %cst_36 = arith.constant dense<0.000000e+00> : vector<16xf32>
    %66 = vector.multi_reduction <add>, %65, %cst_36 [1] : vector<16x32xf32> to vector<16xf32>
    %67 = vector.shape_cast %66 : vector<16xf32> to vector<16x1xf32>
    %cst_37 = arith.constant 3.200000e+01 : f32
    %68 = vector.broadcast %cst_37 : f32 to vector<16x1xf32>
    %69 = arith.divf %67, %68 : vector<16x1xf32>
    %70 = vector.broadcast %62 : vector<16x1xf32> to vector<16x32xf32>
    %71 = arith.subf %28, %70 : vector<16x32xf32>
    %cst_38 = arith.constant 9.99999974E-6 : f32
    %72 = vector.broadcast %cst_38 : f32 to vector<16x1xf32>
    %73 = arith.addf %69, %72 : vector<16x1xf32>
    %74 = math.rsqrt %73 : vector<16x1xf32>
    %75 = vector.broadcast %74 : vector<16x1xf32> to vector<16x32xf32>
    %76 = arith.mulf %71, %75 : vector<16x32xf32>
    %77 = vector.broadcast %11 : vector<1x32xf32> to vector<16x32xf32>
    %78 = arith.mulf %76, %77 : vector<16x32xf32>
    %79 = vector.broadcast %12 : vector<1x32xf32> to vector<16x32xf32>
    %80 = arith.addf %78, %79 : vector<16x32xf32>
    %cst_39 = arith.constant dense<0.000000e+00> : vector<16x32xf32>
    %81 = tpu.matmul %80, %0, %cst_39 {dimension_numbers = #tpu.dot_dimension_numbers<[1], [0], [0], [1], [0, 0, 1, 1], [], []>} : vector<16x32xf32>, vector<32x32xf32>, vector<16x32xf32> -> vector<16x32xf32>
    %82 = vector.broadcast %15 : vector<1x32xf32> to vector<16x32xf32>
    %83 = arith.addf %81, %82 : vector<16x32xf32>
    %84 = vector.shape_cast %83 : vector<16x32xf32> to vector<2x8x32xf32>
    "tpu.trace_start"() <{level = 10 : i32, message = "bid,bdj->bij"}> : () -> ()
    %cst_40 = arith.constant dense<0.000000e+00> : vector<2x8x64xf32>
    %85 = tpu.matmul %84, %58, %cst_40 {dimension_numbers = #tpu.dot_dimension_numbers<[2], [1], [1], [2], [0, 0, 0, 1, 1, 2], [0], [0]>} : vector<2x8x32xf32>, vector<2x32x64xf32>, vector<2x8x64xf32> -> vector<2x8x64xf32>
    "tpu.trace_stop"() : () -> ()
    %cst_41 = arith.constant 0.176776692 : f32
    %86 = vector.broadcast %cst_41 : f32 to vector<2x8x64xf32>
    %87 = arith.mulf %85, %86 : vector<2x8x64xf32>
    %cst_42 = arith.constant dense<0xFF800000> : vector<2x64xf32>
    %88 = vector.multi_reduction <maximumf>, %87, %cst_42 [1] : vector<2x8x64xf32> to vector<2x64xf32>
    %89 = vector.shape_cast %88 : vector<2x64xf32> to vector<2x1x64xf32>
    %90 = vector.broadcast %89 : vector<2x1x64xf32> to vector<2x8x64xf32>
    %91 = arith.subf %87, %90 : vector<2x8x64xf32>
    %92 = math.exp %91 : vector<2x8x64xf32>
    %cst_43 = arith.constant dense<0.000000e+00> : vector<2x64xf32>
    %93 = vector.multi_reduction <add>, %92, %cst_43 [1] : vector<2x8x64xf32> to vector<2x64xf32>
    %94 = vector.shape_cast %93 : vector<2x64xf32> to vector<2x1x64xf32>
    %95 = tpu.reciprocal %94 {approx = true} : vector<2x1x64xf32> -> vector<2x1x64xf32>
    %96 = arith.mulf %94, %95 : vector<2x1x64xf32>
    %cst_44 = arith.constant 2.000000e+00 : f32
    %97 = vector.broadcast %cst_44 : f32 to vector<2x1x64xf32>
    %98 = arith.subf %97, %96 : vector<2x1x64xf32>
    %99 = arith.mulf %95, %98 : vector<2x1x64xf32>
    %100 = vector.broadcast %99 : vector<2x1x64xf32> to vector<2x8x64xf32>
    %101 = arith.mulf %92, %100 : vector<2x8x64xf32>
    %cst_45 = arith.constant 9.99999993E-9 : f32
    %102 = vector.broadcast %cst_45 : f32 to vector<2x8x64xf32>
    %103 = arith.addf %101, %102 : vector<2x8x64xf32>
    %cst_46 = arith.constant dense<0.000000e+00> : vector<2x8xf32>
    %104 = vector.multi_reduction <add>, %103, %cst_46 [2] : vector<2x8x64xf32> to vector<2x8xf32>
    %105 = vector.shape_cast %104 : vector<2x8xf32> to vector<2x8x1xf32>
    %106 = tpu.reciprocal %105 {approx = true} : vector<2x8x1xf32> -> vector<2x8x1xf32>
    %107 = arith.mulf %105, %106 : vector<2x8x1xf32>
    %cst_47 = arith.constant 2.000000e+00 : f32
    %108 = vector.broadcast %cst_47 : f32 to vector<2x8x1xf32>
    %109 = arith.subf %108, %107 : vector<2x8x1xf32>
    %110 = arith.mulf %106, %109 : vector<2x8x1xf32>
    %111 = vector.broadcast %110 : vector<2x8x1xf32> to vector<2x8x64xf32>
    %112 = arith.mulf %103, %111 : vector<2x8x64xf32>
    "tpu.trace_start"() <{level = 10 : i32, message = "bij,bjd->bid"}> : () -> ()
    %cst_48 = arith.constant dense<0.000000e+00> : vector<2x8x32xf32>
    %113 = tpu.matmul %112, %55, %cst_48 {dimension_numbers = #tpu.dot_dimension_numbers<[2], [1], [1], [2], [0, 0, 0, 1, 1, 2], [0], [0]>} : vector<2x8x64xf32>, vector<2x64x32xf32>, vector<2x8x32xf32> -> vector<2x8x32xf32>
    "tpu.trace_stop"() : () -> ()
    %114 = vector.shape_cast %113 : vector<2x8x32xf32> to vector<16x32xf32>
    %cst_49 = arith.constant dense<0.000000e+00> : vector<16x96xf32>
    %115 = tpu.matmul %114, %2, %cst_49 {dimension_numbers = #tpu.dot_dimension_numbers<[1], [0], [0], [1], [0, 0, 1, 1], [], []>} : vector<16x32xf32>, vector<32x96xf32>, vector<16x96xf32> -> vector<16x96xf32>
    %116 = vector.broadcast %17 : vector<1x96xf32> to vector<16x96xf32>
    %117 = arith.addf %115, %116 : vector<16x96xf32>
    %cst_50 = arith.constant dense<0.000000e+00> : vector<16x96xf32>
    %118 = tpu.matmul %28, %3, %cst_50 {dimension_numbers = #tpu.dot_dimension_numbers<[1], [0], [0], [1], [0, 0, 1, 1], [], []>} : vector<16x32xf32>, vector<32x96xf32>, vector<16x96xf32> -> vector<16x96xf32>
    %119 = vector.broadcast %18 : vector<1x96xf32> to vector<16x96xf32>
    %120 = arith.addf %118, %119 : vector<16x96xf32>
    %121 = vector.extract_strided_slice %117 {offsets = [0, 0], sizes = [16, 32], strides = [1, 1]} : vector<16x96xf32> to vector<16x32xf32>
    %122 = vector.extract_strided_slice %120 {offsets = [0, 0], sizes = [16, 32], strides = [1, 1]} : vector<16x96xf32> to vector<16x32xf32>
    %123 = arith.addf %121, %122 : vector<16x32xf32>
    %124 = arith.negf %123 : vector<16x32xf32>
    %125 = math.exp %124 : vector<16x32xf32>
    %cst_51 = arith.constant 1.000000e+00 : f32
    %126 = vector.broadcast %cst_51 : f32 to vector<16x32xf32>
    %127 = arith.addf %126, %125 : vector<16x32xf32>
    %128 = arith.divf %126, %127 : vector<16x32xf32>
    %129 = vector.extract_strided_slice %117 {offsets = [0, 32], sizes = [16, 32], strides = [1, 1]} : vector<16x96xf32> to vector<16x32xf32>
    %130 = vector.extract_strided_slice %120 {offsets = [0, 32], sizes = [16, 32], strides = [1, 1]} : vector<16x96xf32> to vector<16x32xf32>
    %131 = arith.addf %129, %130 : vector<16x32xf32>
    %132 = arith.negf %131 : vector<16x32xf32>
    %133 = math.exp %132 : vector<16x32xf32>
    %cst_52 = arith.constant 1.000000e+00 : f32
    %134 = vector.broadcast %cst_52 : f32 to vector<16x32xf32>
    %135 = arith.addf %134, %133 : vector<16x32xf32>
    %136 = arith.divf %134, %135 : vector<16x32xf32>
    %137 = vector.extract_strided_slice %117 {offsets = [0, 64], sizes = [16, 32], strides = [1, 1]} : vector<16x96xf32> to vector<16x32xf32>
    %138 = vector.extract_strided_slice %120 {offsets = [0, 64], sizes = [16, 32], strides = [1, 1]} : vector<16x96xf32> to vector<16x32xf32>
    %139 = arith.mulf %128, %138 : vector<16x32xf32>
    %140 = arith.addf %137, %139 : vector<16x32xf32>
    %141 = math.tanh %140 : vector<16x32xf32>
    %cst_53 = arith.constant 1.000000e+00 : f32
    %142 = vector.broadcast %cst_53 : f32 to vector<16x32xf32>
    %143 = arith.subf %142, %136 : vector<16x32xf32>
    %144 = arith.mulf %143, %141 : vector<16x32xf32>
    %145 = arith.mulf %136, %28 : vector<16x32xf32>
    %146 = arith.addf %144, %145 : vector<16x32xf32>
    %cst_54 = arith.constant dense<0.000000e+00> : vector<16xf32>
    %147 = vector.multi_reduction <add>, %146, %cst_54 [1] : vector<16x32xf32> to vector<16xf32>
    %148 = vector.shape_cast %147 : vector<16xf32> to vector<16x1xf32>
    %cst_55 = arith.constant 3.200000e+01 : f32
    %149 = vector.broadcast %cst_55 : f32 to vector<16x1xf32>
    %150 = arith.divf %148, %149 : vector<16x1xf32>
    %151 = vector.broadcast %150 : vector<16x1xf32> to vector<16x32xf32>
    %152 = arith.subf %146, %151 : vector<16x32xf32>
    %153 = arith.mulf %152, %152 : vector<16x32xf32>
    %cst_56 = arith.constant dense<0.000000e+00> : vector<16xf32>
    %154 = vector.multi_reduction <add>, %153, %cst_56 [1] : vector<16x32xf32> to vector<16xf32>
    %155 = vector.shape_cast %154 : vector<16xf32> to vector<16x1xf32>
    %cst_57 = arith.constant 3.200000e+01 : f32
    %156 = vector.broadcast %cst_57 : f32 to vector<16x1xf32>
    %157 = arith.divf %155, %156 : vector<16x1xf32>
    %158 = vector.broadcast %150 : vector<16x1xf32> to vector<16x32xf32>
    %159 = arith.subf %146, %158 : vector<16x32xf32>
    %cst_58 = arith.constant 9.99999974E-6 : f32
    %160 = vector.broadcast %cst_58 : f32 to vector<16x1xf32>
    %161 = arith.addf %157, %160 : vector<16x1xf32>
    %162 = math.rsqrt %161 : vector<16x1xf32>
    %163 = vector.broadcast %162 : vector<16x1xf32> to vector<16x32xf32>
    %164 = arith.mulf %159, %163 : vector<16x32xf32>
    %165 = vector.broadcast %13 : vector<1x32xf32> to vector<16x32xf32>
    %166 = arith.mulf %164, %165 : vector<16x32xf32>
    %167 = vector.broadcast %14 : vector<1x32xf32> to vector<16x32xf32>
    %168 = arith.addf %166, %167 : vector<16x32xf32>
    %cst_59 = arith.constant dense<0.000000e+00> : vector<16x128xf32>
    %169 = tpu.matmul %168, %4, %cst_59 {dimension_numbers = #tpu.dot_dimension_numbers<[1], [0], [0], [1], [0, 0, 1, 1], [], []>} : vector<16x32xf32>, vector<32x128xf32>, vector<16x128xf32> -> vector<16x128xf32>
    %170 = vector.broadcast %19 : vector<1x128xf32> to vector<16x128xf32>
    %171 = arith.addf %169, %170 : vector<16x128xf32>
    %cst_60 = arith.constant 0.000000e+00 : f32
    %172 = vector.broadcast %cst_60 : f32 to vector<16x128xf32>
    %173 = arith.maximumf %171, %172 : vector<16x128xf32>
    %cst_61 = arith.constant dense<0.000000e+00> : vector<16x32xf32>
    %174 = tpu.matmul %173, %6, %cst_61 {dimension_numbers = #tpu.dot_dimension_numbers<[1], [0], [0], [1], [0, 0, 1, 1], [], []>} : vector<16x128xf32>, vector<128x32xf32>, vector<16x32xf32> -> vector<16x32xf32>
    %175 = arith.addf %146, %174 : vector<16x32xf32>
    %176 = vector.broadcast %20 : vector<1x32xf32> to vector<16x32xf32>
    %177 = arith.addf %175, %176 : vector<16x32xf32>
    %cst_62 = arith.constant dense<0.000000e+00> : vector<16xf32>
    %178 = vector.multi_reduction <add>, %177, %cst_62 [1] : vector<16x32xf32> to vector<16xf32>
    %179 = vector.shape_cast %178 : vector<16xf32> to vector<16x1xf32>
    %cst_63 = arith.constant 3.200000e+01 : f32
    %180 = vector.broadcast %cst_63 : f32 to vector<16x1xf32>
    %181 = arith.divf %179, %180 : vector<16x1xf32>
    %182 = vector.broadcast %181 : vector<16x1xf32> to vector<16x32xf32>
    %183 = arith.subf %177, %182 : vector<16x32xf32>
    %184 = arith.mulf %183, %183 : vector<16x32xf32>
    %cst_64 = arith.constant dense<0.000000e+00> : vector<16xf32>
    %185 = vector.multi_reduction <add>, %184, %cst_64 [1] : vector<16x32xf32> to vector<16xf32>
    %186 = vector.shape_cast %185 : vector<16xf32> to vector<16x1xf32>
    %cst_65 = arith.constant 3.200000e+01 : f32
    %187 = vector.broadcast %cst_65 : f32 to vector<16x1xf32>
    %188 = arith.divf %186, %187 : vector<16x1xf32>
    %189 = vector.broadcast %181 : vector<16x1xf32> to vector<16x32xf32>
    %190 = arith.subf %177, %189 : vector<16x32xf32>
    %cst_66 = arith.constant 9.99999974E-6 : f32
    %191 = vector.broadcast %cst_66 : f32 to vector<16x1xf32>
    %192 = arith.addf %188, %191 : vector<16x1xf32>
    %193 = math.rsqrt %192 : vector<16x1xf32>
    %194 = vector.broadcast %193 : vector<16x1xf32> to vector<16x32xf32>
    %195 = arith.mulf %190, %194 : vector<16x32xf32>
    %196 = vector.broadcast %11 : vector<1x32xf32> to vector<16x32xf32>
    %197 = arith.mulf %195, %196 : vector<16x32xf32>
    %198 = vector.broadcast %12 : vector<1x32xf32> to vector<16x32xf32>
    %199 = arith.addf %197, %198 : vector<16x32xf32>
    %cst_67 = arith.constant dense<0.000000e+00> : vector<16x32xf32>
    %200 = tpu.matmul %199, %0, %cst_67 {dimension_numbers = #tpu.dot_dimension_numbers<[1], [0], [0], [1], [0, 0, 1, 1], [], []>} : vector<16x32xf32>, vector<32x32xf32>, vector<16x32xf32> -> vector<16x32xf32>
    %201 = vector.broadcast %15 : vector<1x32xf32> to vector<16x32xf32>
    %202 = arith.addf %200, %201 : vector<16x32xf32>
    %203 = vector.shape_cast %202 : vector<16x32xf32> to vector<2x8x32xf32>
    "tpu.trace_start"() <{level = 10 : i32, message = "bid,bdj->bij"}> : () -> ()
    %cst_68 = arith.constant dense<0.000000e+00> : vector<2x8x64xf32>
    %204 = tpu.matmul %203, %58, %cst_68 {dimension_numbers = #tpu.dot_dimension_numbers<[2], [1], [1], [2], [0, 0, 0, 1, 1, 2], [0], [0]>} : vector<2x8x32xf32>, vector<2x32x64xf32>, vector<2x8x64xf32> -> vector<2x8x64xf32>
    "tpu.trace_stop"() : () -> ()
    %cst_69 = arith.constant 0.176776692 : f32
    %205 = vector.broadcast %cst_69 : f32 to vector<2x8x64xf32>
    %206 = arith.mulf %204, %205 : vector<2x8x64xf32>
    %cst_70 = arith.constant dense<0xFF800000> : vector<2x64xf32>
    %207 = vector.multi_reduction <maximumf>, %206, %cst_70 [1] : vector<2x8x64xf32> to vector<2x64xf32>
    %208 = vector.shape_cast %207 : vector<2x64xf32> to vector<2x1x64xf32>
    %209 = vector.broadcast %208 : vector<2x1x64xf32> to vector<2x8x64xf32>
    %210 = arith.subf %206, %209 : vector<2x8x64xf32>
    %211 = math.exp %210 : vector<2x8x64xf32>
    %cst_71 = arith.constant dense<0.000000e+00> : vector<2x64xf32>
    %212 = vector.multi_reduction <add>, %211, %cst_71 [1] : vector<2x8x64xf32> to vector<2x64xf32>
    %213 = vector.shape_cast %212 : vector<2x64xf32> to vector<2x1x64xf32>
    %214 = tpu.reciprocal %213 {approx = true} : vector<2x1x64xf32> -> vector<2x1x64xf32>
    %215 = arith.mulf %213, %214 : vector<2x1x64xf32>
    %cst_72 = arith.constant 2.000000e+00 : f32
    %216 = vector.broadcast %cst_72 : f32 to vector<2x1x64xf32>
    %217 = arith.subf %216, %215 : vector<2x1x64xf32>
    %218 = arith.mulf %214, %217 : vector<2x1x64xf32>
    %219 = vector.broadcast %218 : vector<2x1x64xf32> to vector<2x8x64xf32>
    %220 = arith.mulf %211, %219 : vector<2x8x64xf32>
    %cst_73 = arith.constant 9.99999993E-9 : f32
    %221 = vector.broadcast %cst_73 : f32 to vector<2x8x64xf32>
    %222 = arith.addf %220, %221 : vector<2x8x64xf32>
    %cst_74 = arith.constant dense<0.000000e+00> : vector<2x8xf32>
    %223 = vector.multi_reduction <add>, %222, %cst_74 [2] : vector<2x8x64xf32> to vector<2x8xf32>
    %224 = vector.shape_cast %223 : vector<2x8xf32> to vector<2x8x1xf32>
    %225 = tpu.reciprocal %224 {approx = true} : vector<2x8x1xf32> -> vector<2x8x1xf32>
    %226 = arith.mulf %224, %225 : vector<2x8x1xf32>
    %cst_75 = arith.constant 2.000000e+00 : f32
    %227 = vector.broadcast %cst_75 : f32 to vector<2x8x1xf32>
    %228 = arith.subf %227, %226 : vector<2x8x1xf32>
    %229 = arith.mulf %225, %228 : vector<2x8x1xf32>
    %230 = vector.broadcast %229 : vector<2x8x1xf32> to vector<2x8x64xf32>
    %231 = arith.mulf %222, %230 : vector<2x8x64xf32>
    "tpu.trace_start"() <{level = 10 : i32, message = "bij,bjd->bid"}> : () -> ()
    %cst_76 = arith.constant dense<0.000000e+00> : vector<2x8x32xf32>
    %232 = tpu.matmul %231, %55, %cst_76 {dimension_numbers = #tpu.dot_dimension_numbers<[2], [1], [1], [2], [0, 0, 0, 1, 1, 2], [0], [0]>} : vector<2x8x64xf32>, vector<2x64x32xf32>, vector<2x8x32xf32> -> vector<2x8x32xf32>
    "tpu.trace_stop"() : () -> ()
    %233 = vector.shape_cast %232 : vector<2x8x32xf32> to vector<16x32xf32>
    %cst_77 = arith.constant dense<0.000000e+00> : vector<16x96xf32>
    %234 = tpu.matmul %233, %2, %cst_77 {dimension_numbers = #tpu.dot_dimension_numbers<[1], [0], [0], [1], [0, 0, 1, 1], [], []>} : vector<16x32xf32>, vector<32x96xf32>, vector<16x96xf32> -> vector<16x96xf32>
    %235 = vector.broadcast %17 : vector<1x96xf32> to vector<16x96xf32>
    %236 = arith.addf %234, %235 : vector<16x96xf32>
    %cst_78 = arith.constant dense<0.000000e+00> : vector<16x96xf32>
    %237 = tpu.matmul %177, %3, %cst_78 {dimension_numbers = #tpu.dot_dimension_numbers<[1], [0], [0], [1], [0, 0, 1, 1], [], []>} : vector<16x32xf32>, vector<32x96xf32>, vector<16x96xf32> -> vector<16x96xf32>
    %238 = vector.broadcast %18 : vector<1x96xf32> to vector<16x96xf32>
    %239 = arith.addf %237, %238 : vector<16x96xf32>
    %240 = vector.extract_strided_slice %236 {offsets = [0, 0], sizes = [16, 32], strides = [1, 1]} : vector<16x96xf32> to vector<16x32xf32>
    %241 = vector.extract_strided_slice %239 {offsets = [0, 0], sizes = [16, 32], strides = [1, 1]} : vector<16x96xf32> to vector<16x32xf32>
    %242 = arith.addf %240, %241 : vector<16x32xf32>
    %243 = arith.negf %242 : vector<16x32xf32>
    %244 = math.exp %243 : vector<16x32xf32>
    %cst_79 = arith.constant 1.000000e+00 : f32
    %245 = vector.broadcast %cst_79 : f32 to vector<16x32xf32>
    %246 = arith.addf %245, %244 : vector<16x32xf32>
    %247 = arith.divf %245, %246 : vector<16x32xf32>
    %248 = vector.extract_strided_slice %236 {offsets = [0, 32], sizes = [16, 32], strides = [1, 1]} : vector<16x96xf32> to vector<16x32xf32>
    %249 = vector.extract_strided_slice %239 {offsets = [0, 32], sizes = [16, 32], strides = [1, 1]} : vector<16x96xf32> to vector<16x32xf32>
    %250 = arith.addf %248, %249 : vector<16x32xf32>
    %251 = arith.negf %250 : vector<16x32xf32>
    %252 = math.exp %251 : vector<16x32xf32>
    %cst_80 = arith.constant 1.000000e+00 : f32
    %253 = vector.broadcast %cst_80 : f32 to vector<16x32xf32>
    %254 = arith.addf %253, %252 : vector<16x32xf32>
    %255 = arith.divf %253, %254 : vector<16x32xf32>
    %256 = vector.extract_strided_slice %236 {offsets = [0, 64], sizes = [16, 32], strides = [1, 1]} : vector<16x96xf32> to vector<16x32xf32>
    %257 = vector.extract_strided_slice %239 {offsets = [0, 64], sizes = [16, 32], strides = [1, 1]} : vector<16x96xf32> to vector<16x32xf32>
    %258 = arith.mulf %247, %257 : vector<16x32xf32>
    %259 = arith.addf %256, %258 : vector<16x32xf32>
    %260 = math.tanh %259 : vector<16x32xf32>
    %cst_81 = arith.constant 1.000000e+00 : f32
    %261 = vector.broadcast %cst_81 : f32 to vector<16x32xf32>
    %262 = arith.subf %261, %255 : vector<16x32xf32>
    %263 = arith.mulf %262, %260 : vector<16x32xf32>
    %264 = arith.mulf %255, %177 : vector<16x32xf32>
    %265 = arith.addf %263, %264 : vector<16x32xf32>
    %cst_82 = arith.constant dense<0.000000e+00> : vector<16xf32>
    %266 = vector.multi_reduction <add>, %265, %cst_82 [1] : vector<16x32xf32> to vector<16xf32>
    %267 = vector.shape_cast %266 : vector<16xf32> to vector<16x1xf32>
    %cst_83 = arith.constant 3.200000e+01 : f32
    %268 = vector.broadcast %cst_83 : f32 to vector<16x1xf32>
    %269 = arith.divf %267, %268 : vector<16x1xf32>
    %270 = vector.broadcast %269 : vector<16x1xf32> to vector<16x32xf32>
    %271 = arith.subf %265, %270 : vector<16x32xf32>
    %272 = arith.mulf %271, %271 : vector<16x32xf32>
    %cst_84 = arith.constant dense<0.000000e+00> : vector<16xf32>
    %273 = vector.multi_reduction <add>, %272, %cst_84 [1] : vector<16x32xf32> to vector<16xf32>
    %274 = vector.shape_cast %273 : vector<16xf32> to vector<16x1xf32>
    %cst_85 = arith.constant 3.200000e+01 : f32
    %275 = vector.broadcast %cst_85 : f32 to vector<16x1xf32>
    %276 = arith.divf %274, %275 : vector<16x1xf32>
    %277 = vector.broadcast %269 : vector<16x1xf32> to vector<16x32xf32>
    %278 = arith.subf %265, %277 : vector<16x32xf32>
    %cst_86 = arith.constant 9.99999974E-6 : f32
    %279 = vector.broadcast %cst_86 : f32 to vector<16x1xf32>
    %280 = arith.addf %276, %279 : vector<16x1xf32>
    %281 = math.rsqrt %280 : vector<16x1xf32>
    %282 = vector.broadcast %281 : vector<16x1xf32> to vector<16x32xf32>
    %283 = arith.mulf %278, %282 : vector<16x32xf32>
    %284 = vector.broadcast %13 : vector<1x32xf32> to vector<16x32xf32>
    %285 = arith.mulf %283, %284 : vector<16x32xf32>
    %286 = vector.broadcast %14 : vector<1x32xf32> to vector<16x32xf32>
    %287 = arith.addf %285, %286 : vector<16x32xf32>
    %cst_87 = arith.constant dense<0.000000e+00> : vector<16x128xf32>
    %288 = tpu.matmul %287, %4, %cst_87 {dimension_numbers = #tpu.dot_dimension_numbers<[1], [0], [0], [1], [0, 0, 1, 1], [], []>} : vector<16x32xf32>, vector<32x128xf32>, vector<16x128xf32> -> vector<16x128xf32>
    %289 = vector.broadcast %19 : vector<1x128xf32> to vector<16x128xf32>
    %290 = arith.addf %288, %289 : vector<16x128xf32>
    %cst_88 = arith.constant 0.000000e+00 : f32
    %291 = vector.broadcast %cst_88 : f32 to vector<16x128xf32>
    %292 = arith.maximumf %290, %291 : vector<16x128xf32>
    %cst_89 = arith.constant dense<0.000000e+00> : vector<16x32xf32>
    %293 = tpu.matmul %292, %6, %cst_89 {dimension_numbers = #tpu.dot_dimension_numbers<[1], [0], [0], [1], [0, 0, 1, 1], [], []>} : vector<16x128xf32>, vector<128x32xf32>, vector<16x32xf32> -> vector<16x32xf32>
    %294 = arith.addf %265, %293 : vector<16x32xf32>
    %295 = vector.broadcast %20 : vector<1x32xf32> to vector<16x32xf32>
    %296 = arith.addf %294, %295 : vector<16x32xf32>
    %cst_90 = arith.constant dense<0.000000e+00> : vector<16xf32>
    %297 = vector.multi_reduction <add>, %296, %cst_90 [1] : vector<16x32xf32> to vector<16xf32>
    %298 = vector.shape_cast %297 : vector<16xf32> to vector<16x1xf32>
    %cst_91 = arith.constant 3.200000e+01 : f32
    %299 = vector.broadcast %cst_91 : f32 to vector<16x1xf32>
    %300 = arith.divf %298, %299 : vector<16x1xf32>
    %301 = vector.broadcast %300 : vector<16x1xf32> to vector<16x32xf32>
    %302 = arith.subf %296, %301 : vector<16x32xf32>
    %303 = arith.mulf %302, %302 : vector<16x32xf32>
    %cst_92 = arith.constant dense<0.000000e+00> : vector<16xf32>
    %304 = vector.multi_reduction <add>, %303, %cst_92 [1] : vector<16x32xf32> to vector<16xf32>
    %305 = vector.shape_cast %304 : vector<16xf32> to vector<16x1xf32>
    %cst_93 = arith.constant 3.200000e+01 : f32
    %306 = vector.broadcast %cst_93 : f32 to vector<16x1xf32>
    %307 = arith.divf %305, %306 : vector<16x1xf32>
    %308 = vector.broadcast %300 : vector<16x1xf32> to vector<16x32xf32>
    %309 = arith.subf %296, %308 : vector<16x32xf32>
    %cst_94 = arith.constant 9.99999974E-6 : f32
    %310 = vector.broadcast %cst_94 : f32 to vector<16x1xf32>
    %311 = arith.addf %307, %310 : vector<16x1xf32>
    %312 = math.rsqrt %311 : vector<16x1xf32>
    %313 = vector.broadcast %312 : vector<16x1xf32> to vector<16x32xf32>
    %314 = arith.mulf %309, %313 : vector<16x32xf32>
    %315 = vector.broadcast %11 : vector<1x32xf32> to vector<16x32xf32>
    %316 = arith.mulf %314, %315 : vector<16x32xf32>
    %317 = vector.broadcast %12 : vector<1x32xf32> to vector<16x32xf32>
    %318 = arith.addf %316, %317 : vector<16x32xf32>
    %cst_95 = arith.constant dense<0.000000e+00> : vector<16x32xf32>
    %319 = tpu.matmul %318, %0, %cst_95 {dimension_numbers = #tpu.dot_dimension_numbers<[1], [0], [0], [1], [0, 0, 1, 1], [], []>} : vector<16x32xf32>, vector<32x32xf32>, vector<16x32xf32> -> vector<16x32xf32>
    %320 = vector.broadcast %15 : vector<1x32xf32> to vector<16x32xf32>
    %321 = arith.addf %319, %320 : vector<16x32xf32>
    %322 = vector.shape_cast %321 : vector<16x32xf32> to vector<2x8x32xf32>
    "tpu.trace_start"() <{level = 10 : i32, message = "bid,bdj->bij"}> : () -> ()
    %cst_96 = arith.constant dense<0.000000e+00> : vector<2x8x64xf32>
    %323 = tpu.matmul %322, %58, %cst_96 {dimension_numbers = #tpu.dot_dimension_numbers<[2], [1], [1], [2], [0, 0, 0, 1, 1, 2], [0], [0]>} : vector<2x8x32xf32>, vector<2x32x64xf32>, vector<2x8x64xf32> -> vector<2x8x64xf32>
    "tpu.trace_stop"() : () -> ()
    %cst_97 = arith.constant 0.176776692 : f32
    %324 = vector.broadcast %cst_97 : f32 to vector<2x8x64xf32>
    %325 = arith.mulf %323, %324 : vector<2x8x64xf32>
    %cst_98 = arith.constant dense<0xFF800000> : vector<2x64xf32>
    %326 = vector.multi_reduction <maximumf>, %325, %cst_98 [1] : vector<2x8x64xf32> to vector<2x64xf32>
    %327 = vector.shape_cast %326 : vector<2x64xf32> to vector<2x1x64xf32>
    %328 = vector.broadcast %327 : vector<2x1x64xf32> to vector<2x8x64xf32>
    %329 = arith.subf %325, %328 : vector<2x8x64xf32>
    %330 = math.exp %329 : vector<2x8x64xf32>
    %cst_99 = arith.constant dense<0.000000e+00> : vector<2x64xf32>
    %331 = vector.multi_reduction <add>, %330, %cst_99 [1] : vector<2x8x64xf32> to vector<2x64xf32>
    %332 = vector.shape_cast %331 : vector<2x64xf32> to vector<2x1x64xf32>
    %333 = tpu.reciprocal %332 {approx = true} : vector<2x1x64xf32> -> vector<2x1x64xf32>
    %334 = arith.mulf %332, %333 : vector<2x1x64xf32>
    %cst_100 = arith.constant 2.000000e+00 : f32
    %335 = vector.broadcast %cst_100 : f32 to vector<2x1x64xf32>
    %336 = arith.subf %335, %334 : vector<2x1x64xf32>
    %337 = arith.mulf %333, %336 : vector<2x1x64xf32>
    %338 = vector.broadcast %337 : vector<2x1x64xf32> to vector<2x8x64xf32>
    %339 = arith.mulf %330, %338 : vector<2x8x64xf32>
    %cst_101 = arith.constant 9.99999993E-9 : f32
    %340 = vector.broadcast %cst_101 : f32 to vector<2x8x64xf32>
    %341 = arith.addf %339, %340 : vector<2x8x64xf32>
    %cst_102 = arith.constant dense<0.000000e+00> : vector<2x8xf32>
    %342 = vector.multi_reduction <add>, %341, %cst_102 [2] : vector<2x8x64xf32> to vector<2x8xf32>
    %343 = vector.shape_cast %342 : vector<2x8xf32> to vector<2x8x1xf32>
    %344 = tpu.reciprocal %343 {approx = true} : vector<2x8x1xf32> -> vector<2x8x1xf32>
    %345 = arith.mulf %343, %344 : vector<2x8x1xf32>
    %cst_103 = arith.constant 2.000000e+00 : f32
    %346 = vector.broadcast %cst_103 : f32 to vector<2x8x1xf32>
    %347 = arith.subf %346, %345 : vector<2x8x1xf32>
    %348 = arith.mulf %344, %347 : vector<2x8x1xf32>
    %349 = vector.broadcast %348 : vector<2x8x1xf32> to vector<2x8x64xf32>
    %350 = arith.mulf %341, %349 : vector<2x8x64xf32>
    "tpu.trace_start"() <{level = 10 : i32, message = "bij,bjd->bid"}> : () -> ()
    %cst_104 = arith.constant dense<0.000000e+00> : vector<2x8x32xf32>
    %351 = tpu.matmul %350, %55, %cst_104 {dimension_numbers = #tpu.dot_dimension_numbers<[2], [1], [1], [2], [0, 0, 0, 1, 1, 2], [0], [0]>} : vector<2x8x64xf32>, vector<2x64x32xf32>, vector<2x8x32xf32> -> vector<2x8x32xf32>
    "tpu.trace_stop"() : () -> ()
    %352 = vector.shape_cast %351 : vector<2x8x32xf32> to vector<16x32xf32>
    %cst_105 = arith.constant dense<0.000000e+00> : vector<16x96xf32>
    %353 = tpu.matmul %352, %2, %cst_105 {dimension_numbers = #tpu.dot_dimension_numbers<[1], [0], [0], [1], [0, 0, 1, 1], [], []>} : vector<16x32xf32>, vector<32x96xf32>, vector<16x96xf32> -> vector<16x96xf32>
    %354 = vector.broadcast %17 : vector<1x96xf32> to vector<16x96xf32>
    %355 = arith.addf %353, %354 : vector<16x96xf32>
    %cst_106 = arith.constant dense<0.000000e+00> : vector<16x96xf32>
    %356 = tpu.matmul %296, %3, %cst_106 {dimension_numbers = #tpu.dot_dimension_numbers<[1], [0], [0], [1], [0, 0, 1, 1], [], []>} : vector<16x32xf32>, vector<32x96xf32>, vector<16x96xf32> -> vector<16x96xf32>
    %357 = vector.broadcast %18 : vector<1x96xf32> to vector<16x96xf32>
    %358 = arith.addf %356, %357 : vector<16x96xf32>
    %359 = vector.extract_strided_slice %355 {offsets = [0, 0], sizes = [16, 32], strides = [1, 1]} : vector<16x96xf32> to vector<16x32xf32>
    %360 = vector.extract_strided_slice %358 {offsets = [0, 0], sizes = [16, 32], strides = [1, 1]} : vector<16x96xf32> to vector<16x32xf32>
    %361 = arith.addf %359, %360 : vector<16x32xf32>
    %362 = arith.negf %361 : vector<16x32xf32>
    %363 = math.exp %362 : vector<16x32xf32>
    %cst_107 = arith.constant 1.000000e+00 : f32
    %364 = vector.broadcast %cst_107 : f32 to vector<16x32xf32>
    %365 = arith.addf %364, %363 : vector<16x32xf32>
    %366 = arith.divf %364, %365 : vector<16x32xf32>
    %367 = vector.extract_strided_slice %355 {offsets = [0, 32], sizes = [16, 32], strides = [1, 1]} : vector<16x96xf32> to vector<16x32xf32>
    %368 = vector.extract_strided_slice %358 {offsets = [0, 32], sizes = [16, 32], strides = [1, 1]} : vector<16x96xf32> to vector<16x32xf32>
    %369 = arith.addf %367, %368 : vector<16x32xf32>
    %370 = arith.negf %369 : vector<16x32xf32>
    %371 = math.exp %370 : vector<16x32xf32>
    %cst_108 = arith.constant 1.000000e+00 : f32
    %372 = vector.broadcast %cst_108 : f32 to vector<16x32xf32>
    %373 = arith.addf %372, %371 : vector<16x32xf32>
    %374 = arith.divf %372, %373 : vector<16x32xf32>
    %375 = vector.extract_strided_slice %355 {offsets = [0, 64], sizes = [16, 32], strides = [1, 1]} : vector<16x96xf32> to vector<16x32xf32>
    %376 = vector.extract_strided_slice %358 {offsets = [0, 64], sizes = [16, 32], strides = [1, 1]} : vector<16x96xf32> to vector<16x32xf32>
    %377 = arith.mulf %366, %376 : vector<16x32xf32>
    %378 = arith.addf %375, %377 : vector<16x32xf32>
    %379 = math.tanh %378 : vector<16x32xf32>
    %cst_109 = arith.constant 1.000000e+00 : f32
    %380 = vector.broadcast %cst_109 : f32 to vector<16x32xf32>
    %381 = arith.subf %380, %374 : vector<16x32xf32>
    %382 = arith.mulf %381, %379 : vector<16x32xf32>
    %383 = arith.mulf %374, %296 : vector<16x32xf32>
    %384 = arith.addf %382, %383 : vector<16x32xf32>
    %cst_110 = arith.constant dense<0.000000e+00> : vector<16xf32>
    %385 = vector.multi_reduction <add>, %384, %cst_110 [1] : vector<16x32xf32> to vector<16xf32>
    %386 = vector.shape_cast %385 : vector<16xf32> to vector<16x1xf32>
    %cst_111 = arith.constant 3.200000e+01 : f32
    %387 = vector.broadcast %cst_111 : f32 to vector<16x1xf32>
    %388 = arith.divf %386, %387 : vector<16x1xf32>
    %389 = vector.broadcast %388 : vector<16x1xf32> to vector<16x32xf32>
    %390 = arith.subf %384, %389 : vector<16x32xf32>
    %391 = arith.mulf %390, %390 : vector<16x32xf32>
    %cst_112 = arith.constant dense<0.000000e+00> : vector<16xf32>
    %392 = vector.multi_reduction <add>, %391, %cst_112 [1] : vector<16x32xf32> to vector<16xf32>
    %393 = vector.shape_cast %392 : vector<16xf32> to vector<16x1xf32>
    %cst_113 = arith.constant 3.200000e+01 : f32
    %394 = vector.broadcast %cst_113 : f32 to vector<16x1xf32>
    %395 = arith.divf %393, %394 : vector<16x1xf32>
    %396 = vector.broadcast %388 : vector<16x1xf32> to vector<16x32xf32>
    %397 = arith.subf %384, %396 : vector<16x32xf32>
    %cst_114 = arith.constant 9.99999974E-6 : f32
    %398 = vector.broadcast %cst_114 : f32 to vector<16x1xf32>
    %399 = arith.addf %395, %398 : vector<16x1xf32>
    %400 = math.rsqrt %399 : vector<16x1xf32>
    %401 = vector.broadcast %400 : vector<16x1xf32> to vector<16x32xf32>
    %402 = arith.mulf %397, %401 : vector<16x32xf32>
    %403 = vector.broadcast %13 : vector<1x32xf32> to vector<16x32xf32>
    %404 = arith.mulf %402, %403 : vector<16x32xf32>
    %405 = vector.broadcast %14 : vector<1x32xf32> to vector<16x32xf32>
    %406 = arith.addf %404, %405 : vector<16x32xf32>
    %cst_115 = arith.constant dense<0.000000e+00> : vector<16x128xf32>
    %407 = tpu.matmul %406, %4, %cst_115 {dimension_numbers = #tpu.dot_dimension_numbers<[1], [0], [0], [1], [0, 0, 1, 1], [], []>} : vector<16x32xf32>, vector<32x128xf32>, vector<16x128xf32> -> vector<16x128xf32>
    %408 = vector.broadcast %19 : vector<1x128xf32> to vector<16x128xf32>
    %409 = arith.addf %407, %408 : vector<16x128xf32>
    %cst_116 = arith.constant 0.000000e+00 : f32
    %410 = vector.broadcast %cst_116 : f32 to vector<16x128xf32>
    %411 = arith.maximumf %409, %410 : vector<16x128xf32>
    %cst_117 = arith.constant dense<0.000000e+00> : vector<16x32xf32>
    %412 = tpu.matmul %411, %6, %cst_117 {dimension_numbers = #tpu.dot_dimension_numbers<[1], [0], [0], [1], [0, 0, 1, 1], [], []>} : vector<16x128xf32>, vector<128x32xf32>, vector<16x32xf32> -> vector<16x32xf32>
    %413 = arith.addf %384, %412 : vector<16x32xf32>
    %414 = vector.broadcast %20 : vector<1x32xf32> to vector<16x32xf32>
    %415 = arith.addf %413, %414 : vector<16x32xf32>
    %416 = vector.shape_cast %415 : vector<16x32xf32> to vector<2x8x32xf32>
    %c0_118 = arith.constant 0 : index
    %c0_119 = arith.constant 0 : index
    %c0_120 = arith.constant 0 : index
    %417 = vector.load %arg7[%c0_118, %c0_119, %c0_120] : memref<2x8x32xf32, #tpu.memory_space<vmem>>, vector<2x8x32xf32>
    tpu.vector_store %arg7[%c0_118, %c0_119, %c0_120], %416 {strides = array<i32>} : memref<2x8x32xf32, #tpu.memory_space<vmem>>, vector<2x8x32xf32>,
    %cst_121 = arith.constant dense<0.000000e+00> : vector<16x2xf32>
    %418 = tpu.matmul %415, %5, %cst_121 {dimension_numbers = #tpu.dot_dimension_numbers<[1], [0], [0], [1], [0, 0, 1, 1], [], []>} : vector<16x32xf32>, vector<32x2xf32>, vector<16x2xf32> -> vector<16x2xf32>
    %cst_122 = arith.constant dense<0xFF800000> : vector<16xf32>
    %419 = vector.multi_reduction <maximumf>, %418, %cst_122 [1] : vector<16x2xf32> to vector<16xf32>
    %420 = vector.shape_cast %419 : vector<16xf32> to vector<16x1xf32>
    %421 = vector.broadcast %420 : vector<16x1xf32> to vector<16x2xf32>
    %422 = arith.subf %418, %421 : vector<16x2xf32>
    %423 = math.exp %422 : vector<16x2xf32>
    %cst_123 = arith.constant dense<0.000000e+00> : vector<16xf32>
    %424 = vector.multi_reduction <add>, %423, %cst_123 [1] : vector<16x2xf32> to vector<16xf32>
    %425 = vector.shape_cast %424 : vector<16xf32> to vector<16x1xf32>
    %426 = tpu.reciprocal %425 {approx = true} : vector<16x1xf32> -> vector<16x1xf32>
    %427 = arith.mulf %425, %426 : vector<16x1xf32>
    %cst_124 = arith.constant 2.000000e+00 : f32
    %428 = vector.broadcast %cst_124 : f32 to vector<16x1xf32>
    %429 = arith.subf %428, %427 : vector<16x1xf32>
    %430 = arith.mulf %426, %429 : vector<16x1xf32>
    %431 = vector.broadcast %430 : vector<16x1xf32> to vector<16x2xf32>
    %432 = arith.mulf %423, %431 : vector<16x2xf32>
    %c0_125 = arith.constant 0 : index
    %c0_126 = arith.constant 0 : index
    %c0_127 = arith.constant 0 : index
    %433 = vector.load %arg3[%c0_125, %c0_126, %c0_127] : memref<2x8x2xf32, #tpu.memory_space<vmem>>, vector<2x8x2xf32>
    %434 = vector.shape_cast %433 : vector<2x8x2xf32> to vector<16x2xf32>
    %cst_128 = arith.constant 1.000000e+00 : f32
    %435 = vector.broadcast %cst_128 : f32 to vector<16x2xf32>
    %436 = arith.mulf %432, %435 : vector<16x2xf32>
    %437 = arith.addf %436, %434 : vector<16x2xf32>
    %438 = vector.extract_strided_slice %437 {offsets = [0, 1], sizes = [16, 1], strides = [1, 1]} : vector<16x2xf32> to vector<16x1xf32>
    %439 = vector.extract_strided_slice %437 {offsets = [0, 0], sizes = [16, 1], strides = [1, 1]} : vector<16x2xf32> to vector<16x1xf32>
    %440 = arith.cmpf ogt, %438, %439 : vector<16x1xf32>
    %441 = arith.extui %440 : vector<16x1xi1> to vector<16x1xi32>
    %442 = arith.sitofp %441 : vector<16x1xi32> to vector<16x1xf32>
    %443 = tpu.iota {dimensions = array<i32: 1>} : vector<16x2xi32>
    %c0_i32 = arith.constant 0 : i32
    %444 = vector.broadcast %c0_i32 : i32 to vector<16x2xi32>
    %445 = arith.cmpi eq, %443, %444 : vector<16x2xi32>
    %446 = vector.shape_cast %442 : vector<16x1xf32> to vector<16x1xf32>
    %447 = vector.broadcast %446 : vector<16x1xf32> to vector<16x2xf32>
    %448 = arith.select %445, %447, %432 : vector<16x2xi1>, vector<16x2xf32>
    %449 = vector.shape_cast %448 : vector<16x2xf32> to vector<2x8x2xf32>
    %c0_129 = arith.constant 0 : index
    %c0_130 = arith.constant 0 : index
    %c0_131 = arith.constant 0 : index
    %450 = vector.load %arg8[%c0_129, %c0_130, %c0_131] : memref<2x8x2xf32, #tpu.memory_space<vmem>>, vector<2x8x2xf32>
    tpu.vector_store %arg8[%c0_129, %c0_130, %c0_131], %449 {strides = array<i32>} : memref<2x8x2xf32, #tpu.memory_space<vmem>>, vector<2x8x2xf32>,
    return
  }
  func.func @transform_0(%arg0: i32) -> (i32, i32, i32) {
    %c0_i32 = arith.constant 0 : i32
    %c0_i32_0 = arith.constant 0 : i32
    %c0_i32_1 = arith.constant 0 : i32
    return %arg0, %c0_i32, %c0_i32_0 : i32, i32, i32
  }
  func.func @transform_1(%arg0: i32) -> (i32, i32, i32) {
    %c0_i32 = arith.constant 0 : i32
    %c0_i32_0 = arith.constant 0 : i32
    %c0_i32_1 = arith.constant 0 : i32
    return %arg0, %c0_i32, %c0_i32_0 : i32, i32, i32
  }
  func.func @transform_2(%arg0: i32) -> (i32, i32, i32) {
    %c0_i32 = arith.constant 0 : i32
    %c0_i32_0 = arith.constant 0 : i32
    %c0_i32_1 = arith.constant 0 : i32
    return %arg0, %c0_i32, %c0_i32_0 : i32, i32, i32
  }
  func.func @transform_3(%arg0: i32) -> (i32, i32) {
    %c0_i32 = arith.constant 0 : i32
    %c0_i32_0 = arith.constant 0 : i32
    %c0_i32_1 = arith.constant 0 : i32
    return %c0_i32, %c0_i32_0 : i32, i32
  }
  func.func @transform_4(%arg0: i32) -> (i32, i32) {
    %c0_i32 = arith.constant 0 : i32
    %c0_i32_0 = arith.constant 0 : i32
    %c0_i32_1 = arith.constant 0 : i32
    return %c0_i32, %c0_i32_0 : i32, i32
  }
  func.func @transform_5(%arg0: i32) -> (i32, i32) {
    %c0_i32 = arith.constant 0 : i32
    %c0_i32_0 = arith.constant 0 : i32
    %c0_i32_1 = arith.constant 0 : i32
    return %c0_i32, %c0_i32_0 : i32, i32
  }
  func.func @transform_6(%arg0: i32) -> (i32, i32, i32) {
    %c0_i32 = arith.constant 0 : i32
    %c0_i32_0 = arith.constant 0 : i32
    %c0_i32_1 = arith.constant 0 : i32
    return %arg0, %c0_i32, %c0_i32_0 : i32, i32, i32
  }
  func.func @transform_7(%arg0: i32) -> (i32, i32, i32) {
    %c0_i32 = arith.constant 0 : i32
    %c0_i32_0 = arith.constant 0 : i32
    %c0_i32_1 = arith.constant 0 : i32
    return %arg0, %c0_i32, %c0_i32_0 : i32, i32, i32
  }
}

</mosaic_0001>

<llo_original>
// kernel: tpu_custom_call.1
$region0: #{tpu_custom_call.1}
  #allocation0 [shape = 'u32[]', space=smem, size = 0x4, offset = 0x4, fixed_abs, tag = 'smem constant byte address 0x4 - core index']
  #allocation1 [shape = 'u32[144,128]{1,0:T(1,128)}', space=vmem, size = 0x12000, scoped, tag = 'internal scratch']
  %s0 = inlined_call_operand.vmem [shape: f32[2,64,32], index: 0, kind: input, shape index: {}]
  %s1 = inlined_call_operand.vmem [shape: f32[2,8,32], index: 1, kind: input, shape index: {}]
  %s2 = inlined_call_operand.vmem [shape: f32[2,8,2], index: 2, kind: input, shape index: {}]
  %s3 = inlined_call_operand.vmem [shape: f32[32,768], index: 3, kind: input, shape index: {}]
  %s4 = inlined_call_operand.vmem [shape: f32[128,32], index: 4, kind: input, shape index: {}]
  %s5 = inlined_call_operand.vmem [shape: f32[14,128], index: 5, kind: input, shape index: {}]
  %s6 = inlined_call_operand.hbm [shape: f32[2,8,32], index: 6, kind: output, shape index: {0}]
  %s7 = inlined_call_operand.vmem [shape: f32[2,8,2], index: 7, kind: output, shape index: {1}]
  %8 = xla_tuple %s6, %s7
  %s9 = sld [smem:[#allocation0]]
  $region42: #{tpu_custom_call.1} parent=0
    _
  %s11 = ssub.s32 1, %s9
  %s12 = scalar_select 0, %s11, %s9
  $region1: #{tpu_custom_call.1} parent=0
    #allocation2 [shape = 'u8[8192]{0}', space=vmem, size = 0x2000, scoped, tag = 'output window, operand 0, single buffered']
    #allocation3 [shape = 's32[1]{0}', space=sflag, size = 0x4, scoped, tag = 'scoped memory for tpu_custom_call.1']
    %13 = vsyncpa [#allocation3], 0
    // Predicated region
    $region2: #{tpu_custom_call.1} parent=1 // pred_check
      _
    $region3: #{tpu_custom_call.1} parent=1 // pred_check_branch
      %15 = sbr.rel (0) target = $region5
    $region4: #{tpu_custom_call.1} parent=1 // pred_region
      _
    $region5: #{tpu_custom_call.1} parent=1 // pred_fallthru
      _
    // Predicated region
    $region6: #{tpu_custom_call.1} parent=1 // pred_check
      _
    $region7: #{tpu_custom_call.1} parent=1 // pred_check_branch
      %17 = sbr.rel (0) target = $region9
    $region8: #{tpu_custom_call.1} parent=1 // pred_region
      _
    $region9: #{tpu_custom_call.1} parent=1 // pred_fallthru
      _
    // Predicated region
    $region10: #{tpu_custom_call.1} parent=1 // pred_check
      _
    $region11: #{tpu_custom_call.1} parent=1 // pred_check_branch
      %19 = sbr.rel (0) target = $region13
    $region12: #{tpu_custom_call.1} parent=1 // pred_region
      _
    $region13: #{tpu_custom_call.1} parent=1 // pred_fallthru
      _
    // Predicated region
    $region14: #{tpu_custom_call.1} parent=1 // pred_check
      _
    $region15: #{tpu_custom_call.1} parent=1 // pred_check_branch
      %21 = sbr.rel (0) target = $region17
    $region16: #{tpu_custom_call.1} parent=1 // pred_region
      _
    $region17: #{tpu_custom_call.1} parent=1 // pred_fallthru
      _
    // Predicated region
    $region18: #{tpu_custom_call.1} parent=1 // pred_check
      _
    $region19: #{tpu_custom_call.1} parent=1 // pred_check_branch
      %23 = sbr.rel (0) target = $region21
    $region20: #{tpu_custom_call.1} parent=1 // pred_region
      _
    $region21: #{tpu_custom_call.1} parent=1 // pred_fallthru
      _
    // Predicated region
    $region22: #{tpu_custom_call.1} parent=1 // pred_check
      _
    $region23: #{tpu_custom_call.1} parent=1 // pred_check_branch
      %25 = sbr.rel (0) target = $region25
    $region24: #{tpu_custom_call.1} parent=1 // pred_region
      _
    $region25: #{tpu_custom_call.1} parent=1 // pred_fallthru
      _
    %v26 = vld [vmem:[%s3] sm:$0xff]
    %v27 = vld [vmem:[%s3 + $0x30] sm:$0xff]
    %v28 = vld [vmem:[%s3 + $0x60] sm:$0xff]
    %v29 = vld [vmem:[%s3 + $0x90] sm:$0xff]
    %v30 = vld [vmem:[%s3 + $0x8] sm:$0xff]
    %v31 = vld [vmem:[%s3 + $0x38] sm:$0xff]
    %v32 = vld [vmem:[%s3 + $0x68] sm:$0xff]
    %v33 = vld [vmem:[%s3 + $0x98] sm:$0xff]
    %v34 = vld [vmem:[%s3 + $0x10] sm:$0xff]
    %v35 = vld [vmem:[%s3 + $0x40] sm:$0xff]
    %v36 = vld [vmem:[%s3 + $0x70] sm:$0xff]
    %v37 = vld [vmem:[%s3 + $0xa0] sm:$0xff]
    %v38 = vld [vmem:[%s3 + $0x18] sm:$0xff]
    %v39 = vld [vmem:[%s3 + $0x48] sm:$0xff]
    %v40 = vld [vmem:[%s3 + $0x78] sm:$0xff]
    %v41 = vld [vmem:[%s3 + $0xa8] sm:$0xff]
    %v42 = vld [vmem:[%s3 + $0x20] sm:$0xff]
    %v43 = vld [vmem:[%s3 + $0x50] sm:$0xff]
    %v44 = vld [vmem:[%s3 + $0x80] sm:$0xff]
    %v45 = vld [vmem:[%s3 + $0xb0] sm:$0xff]
    %v46 = vld [vmem:[%s3 + $0x28] sm:$0xff]
    %v47 = vld [vmem:[%s3 + $0x58] sm:$0xff]
    %v48 = vld [vmem:[%s3 + $0x88] sm:$0xff]
    %v49 = vld [vmem:[%s3 + $0xb8] sm:$0xff]
    %v50 = vld [vmem:[%s4] sm:$0xff]
    %v51 = vld [vmem:[%s4 + $0x8] sm:$0xff]
    %v52 = vld [vmem:[%s4 + $0x10] sm:$0xff]
    %v53 = vld [vmem:[%s4 + $0x18] sm:$0xff]
    %v54 = vld [vmem:[%s4 + $0x20] sm:$0xff]
    %v55 = vld [vmem:[%s4 + $0x28] sm:$0xff]
    %v56 = vld [vmem:[%s4 + $0x30] sm:$0xff]
    %v57 = vld [vmem:[%s4 + $0x38] sm:$0xff]
    %v58 = vld [vmem:[%s4 + $0x40] sm:$0xff]
    %v59 = vld [vmem:[%s4 + $0x48] sm:$0xff]
    %v60 = vld [vmem:[%s4 + $0x50] sm:$0xff]
    %v61 = vld [vmem:[%s4 + $0x58] sm:$0xff]
    %v62 = vld [vmem:[%s4 + $0x60] sm:$0xff]
    %v63 = vld [vmem:[%s4 + $0x68] sm:$0xff]
    %v64 = vld [vmem:[%s4 + $0x70] sm:$0xff]
    %v65 = vld [vmem:[%s4 + $0x78] sm:$0xff]
    %v66 = vld [vmem:[%s5] sm:$0x1]
    %v67 = vld [vmem:[%s5 + $0x1] sm:$0x1]
    %v68 = vld [vmem:[%s5 + $0x2] sm:$0x1]
    %v69 = vld [vmem:[%s5 + $0x3] sm:$0x1]
    %v70 = vld [vmem:[%s5 + $0x4] sm:$0x1]
    %v71 = vld [vmem:[%s5 + $0x5] sm:$0x1]
    %v72 = vld [vmem:[%s5 + $0x6] sm:$0x1]
    %v73 = vld [vmem:[%s5 + $0x7] sm:$0x1]
    %v74 = vld [vmem:[%s5 + $0x8] sm:$0x1]
    %v75 = vld [vmem:[%s5 + $0x9] sm:$0x1]
    %v76 = vld [vmem:[%s5 + $0xa] sm:$0x1]
    %v77 = vld [vmem:[%s5 + $0xb] sm:$0x1]
    %v78 = vld [vmem:[%s5 + $0xc] sm:$0x1]
    %v79 = vld [vmem:[%s5 + $0xd] sm:$0x1]
    %v80 = vld [vmem:[%s0] sm:$0xff]
    %v81 = vld [vmem:[%s0 + $0x8] sm:$0xff]
    %v82 = vld [vmem:[%s0 + $0x10] sm:$0xff]
    %v83 = vld [vmem:[%s0 + $0x18] sm:$0xff]
    %v84 = vld [vmem:[%s0 + $0x20] sm:$0xff]
    %v85 = vld [vmem:[%s0 + $0x28] sm:$0xff]
    %v86 = vld [vmem:[%s0 + $0x30] sm:$0xff]
    %v87 = vld [vmem:[%s0 + $0x38] sm:$0xff]
    %v88 = vld [vmem:[%s0 + $0x40] sm:$0xff]
    %v89 = vld [vmem:[%s0 + $0x48] sm:$0xff]
    %v90 = vld [vmem:[%s0 + $0x50] sm:$0xff]
    %v91 = vld [vmem:[%s0 + $0x58] sm:$0xff]
    %v92 = vld [vmem:[%s0 + $0x60] sm:$0xff]
    %v93 = vld [vmem:[%s0 + $0x68] sm:$0xff]
    %v94 = vld [vmem:[%s0 + $0x70] sm:$0xff]
    %v95 = vld [vmem:[%s0 + $0x78] sm:$0xff]
    %v96 = vld [vmem:[%s1] sm:$0xff]
    %v97 = vld [vmem:[%s1 + $0x8] sm:$0xff]
    %v98 = vlaneseq
    %v99 = vshrl.u32 %v98, 7
    %v100 = vsub.s32 0, %v99
    %v101 = vrot.slane %v67, %v100
    %v102 = vmul.f32 %v101, %v96
    %v103 = vmul.f32 %v101, %v97
    %v104 = vlaneseq
    %v105 = vshrl.u32 %v104, 7
    %v106 = vsub.s32 0, %v105
    %v107 = vrot.slane %v66, %v106
    %v108 = vadd.f32 %v107, %v102
    %v109 = vadd.f32 %v107, %v103
    %vm110 = vcmask 261120
    %v111 = vsel %vm110, %v80, 0.0
    %112 = vadd.xlane.f32.xlu0 %v111
    %v113 = vpop.xlane.xlu0 %112
    %v114 = vsel %vm110, %v81, 0.0
    %115 = vadd.xlane.f32.xlu0 %v114
    %v116 = vpop.xlane.xlu0 %115
    %v117 = vsel %vm110, %v82, 0.0
    %118 = vadd.xlane.f32.xlu0 %v117
    %v119 = vpop.xlane.xlu0 %118
    %v120 = vsel %vm110, %v83, 0.0
    %121 = vadd.xlane.f32.xlu0 %v120
    %v122 = vpop.xlane.xlu0 %121
    %v123 = vsel %vm110, %v84, 0.0
    %124 = vadd.xlane.f32.xlu0 %v123
    %v125 = vpop.xlane.xlu0 %124
    %v126 = vsel %vm110, %v85, 0.0
    %127 = vadd.xlane.f32.xlu0 %v126
    %v128 = vpop.xlane.xlu0 %127
    %v129 = vsel %vm110, %v86, 0.0
    %130 = vadd.xlane.f32.xlu0 %v129
    %v131 = vpop.xlane.xlu0 %130
    %v132 = vsel %vm110, %v87, 0.0
    %133 = vadd.xlane.f32.xlu0 %v132
    %v134 = vpop.xlane.xlu0 %133
    %v135 = vsel %vm110, %v88, 0.0
    %136 = vadd.xlane.f32.xlu0 %v135
    %v137 = vpop.xlane.xlu0 %136
    %v138 = vsel %vm110, %v89, 0.0
    %139 = vadd.xlane.f32.xlu0 %v138
    %v140 = vpop.xlane.xlu0 %139
    %v141 = vsel %vm110, %v90, 0.0
    %142 = vadd.xlane.f32.xlu0 %v141
    %v143 = vpop.xlane.xlu0 %142
    %v144 = vsel %vm110, %v91, 0.0
    %145 = vadd.xlane.f32.xlu0 %v144
    %v146 = vpop.xlane.xlu0 %145
    %v147 = vsel %vm110, %v92, 0.0
    %148 = vadd.xlane.f32.xlu0 %v147
    %v149 = vpop.xlane.xlu0 %148
    %v150 = vsel %vm110, %v93, 0.0
    %151 = vadd.xlane.f32.xlu0 %v150
    %v152 = vpop.xlane.xlu0 %151
    %v153 = vsel %vm110, %v94, 0.0
    %154 = vadd.xlane.f32.xlu0 %v153
    %v155 = vpop.xlane.xlu0 %154
    %v156 = vsel %vm110, %v95, 0.0
    %157 = vadd.xlane.f32.xlu0 %v156
    %v158 = vpop.xlane.xlu0 %157
    %v159 = vrcp.pop 32.0
    %v160 = vmul.f32 %v113, %v159
    %v161 = vmul.f32 %v116, %v159
    %v162 = vmul.f32 %v119, %v159
    %v163 = vmul.f32 %v122, %v159
    %v164 = vmul.f32 %v125, %v159
    %v165 = vmul.f32 %v128, %v159
    %v166 = vmul.f32 %v131, %v159
    %v167 = vmul.f32 %v134, %v159
    %v168 = vmul.f32 %v137, %v159
    %v169 = vmul.f32 %v140, %v159
    %v170 = vmul.f32 %v143, %v159
    %v171 = vmul.f32 %v146, %v159
    %v172 = vmul.f32 %v149, %v159
    %v173 = vmul.f32 %v152, %v159
    %v174 = vmul.f32 %v155, %v159
    %v175 = vmul.f32 %v158, %v159
    %v176 = vsub.f32 %v80, %v160
    %v177 = vsub.f32 %v81, %v161
    %v178 = vsub.f32 %v82, %v162
    %v179 = vsub.f32 %v83, %v163
    %v180 = vsub.f32 %v84, %v164
    %v181 = vsub.f32 %v85, %v165
    %v182 = vsub.f32 %v86, %v166
    %v183 = vsub.f32 %v87, %v167
    %v184 = vsub.f32 %v88, %v168
    %v185 = vsub.f32 %v89, %v169
    %v186 = vsub.f32 %v90, %v170
    %v187 = vsub.f32 %v91, %v171
    %v188 = vsub.f32 %v92, %v172
    %v189 = vsub.f32 %v93, %v173
    %v190 = vsub.f32 %v94, %v174
    %v191 = vsub.f32 %v95, %v175
    %v192 = vmul.f32 %v176, %v176
    %v193 = vmul.f32 %v177, %v177
    %v194 = vmul.f32 %v178, %v178
    %v195 = vmul.f32 %v179, %v179
    %v196 = vmul.f32 %v180, %v180
    %v197 = vmul.f32 %v181, %v181
    %v198 = vmul.f32 %v182, %v182
    %v199 = vmul.f32 %v183, %v183
    %v200 = vmul.f32 %v184, %v184
    %v201 = vmul.f32 %v185, %v185
    %v202 = vmul.f32 %v186, %v186
    %v203 = vmul.f32 %v187, %v187
    %v204 = vmul.f32 %v188, %v188
    %v205 = vmul.f32 %v189, %v189
    %v206 = vmul.f32 %v190, %v190
    %v207 = vmul.f32 %v191, %v191
    %v208 = vsel %vm110, %v192, 0.0
    %209 = vadd.xlane.f32.xlu0 %v208
    %v210 = vpop.xlane.xlu0 %209
    %v211 = vsel %vm110, %v193, 0.0
    %212 = vadd.xlane.f32.xlu0 %v211
    %v213 = vpop.xlane.xlu0 %212
    %v214 = vsel %vm110, %v194, 0.0
    %215 = vadd.xlane.f32.xlu0 %v214
    %v216 = vpop.xlane.xlu0 %215
    %v217 = vsel %vm110, %v195, 0.0
    %218 = vadd.xlane.f32.xlu0 %v217
    %v219 = vpop.xlane.xlu0 %218
    %v220 = vsel %vm110, %v196, 0.0
    %221 = vadd.xlane.f32.xlu0 %v220
    %v222 = vpop.xlane.xlu0 %221
    %v223 = vsel %vm110, %v197, 0.0
    %224 = vadd.xlane.f32.xlu0 %v223
    %v225 = vpop.xlane.xlu0 %224
    %v226 = vsel %vm110, %v198, 0.0
    %227 = vadd.xlane.f32.xlu0 %v226
    %v228 = vpop.xlane.xlu0 %227
    %v229 = vsel %vm110, %v199, 0.0
    %230 = vadd.xlane.f32.xlu0 %v229
    %v231 = vpop.xlane.xlu0 %230
    %v232 = vsel %vm110, %v200, 0.0
    %233 = vadd.xlane.f32.xlu0 %v232
    %v234 = vpop.xlane.xlu0 %233
    %v235 = vsel %vm110, %v201, 0.0
    %236 = vadd.xlane.f32.xlu0 %v235
    %v237 = vpop.xlane.xlu0 %236
    %v238 = vsel %vm110, %v202, 0.0
    %239 = vadd.xlane.f32.xlu0 %v238
    %v240 = vpop.xlane.xlu0 %239
    %v241 = vsel %vm110, %v203, 0.0
    %242 = vadd.xlane.f32.xlu0 %v241
    %v243 = vpop.xlane.xlu0 %242
    %v244 = vsel %vm110, %v204, 0.0
    %245 = vadd.xlane.f32.xlu0 %v244
    %v246 = vpop.xlane.xlu0 %245
    %v247 = vsel %vm110, %v205, 0.0
    %248 = vadd.xlane.f32.xlu0 %v247
    %v249 = vpop.xlane.xlu0 %248
    %v250 = vsel %vm110, %v206, 0.0
    %251 = vadd.xlane.f32.xlu0 %v250
    %v252 = vpop.xlane.xlu0 %251
    %v253 = vsel %vm110, %v207, 0.0
    %254 = vadd.xlane.f32.xlu0 %v253
    %v255 = vpop.xlane.xlu0 %254
    %v256 = vmul.f32 %v210, %v159
    %v257 = vmul.f32 %v213, %v159
    %v258 = vmul.f32 %v216, %v159
    %v259 = vmul.f32 %v219, %v159
    %v260 = vmul.f32 %v222, %v159
    %v261 = vmul.f32 %v225, %v159
    %v262 = vmul.f32 %v228, %v159
    %v263 = vmul.f32 %v231, %v159
    %v264 = vmul.f32 %v234, %v159
    %v265 = vmul.f32 %v237, %v159
    %v266 = vmul.f32 %v240, %v159
    %v267 = vmul.f32 %v243, %v159
    %v268 = vmul.f32 %v246, %v159
    %v269 = vmul.f32 %v249, %v159
    %v270 = vmul.f32 %v252, %v159
    %v271 = vmul.f32 %v255, %v159
    %v272 = vadd.f32 %v256, 1e-05
    %v273 = vadd.f32 %v257, 1e-05
    %v274 = vadd.f32 %v258, 1e-05
    %v275 = vadd.f32 %v259, 1e-05
    %v276 = vadd.f32 %v260, 1e-05
    %v277 = vadd.f32 %v261, 1e-05
    %v278 = vadd.f32 %v262, 1e-05
    %v279 = vadd.f32 %v263, 1e-05
    %v280 = vadd.f32 %v264, 1e-05
    %v281 = vadd.f32 %v265, 1e-05
    %v282 = vadd.f32 %v266, 1e-05
    %v283 = vadd.f32 %v267, 1e-05
    %v284 = vadd.f32 %v268, 1e-05
    %v285 = vadd.f32 %v269, 1e-05
    %v286 = vadd.f32 %v270, 1e-05
    %v287 = vadd.f32 %v271, 1e-05
    %v288 = vrsqrt.pop %v272
    %v289 = vrsqrt.pop %v273
    %v290 = vrsqrt.pop %v274
    %v291 = vrsqrt.pop %v275
    %v292 = vrsqrt.pop %v276
    %v293 = vrsqrt.pop %v277
    %v294 = vrsqrt.pop %v278
    %v295 = vrsqrt.pop %v279
    %v296 = vrsqrt.pop %v280
    %v297 = vrsqrt.pop %v281
    %v298 = vrsqrt.pop %v282
    %v299 = vrsqrt.pop %v283
    %v300 = vrsqrt.pop %v284
    %v301 = vrsqrt.pop %v285
    %v302 = vrsqrt.pop %v286
    %v303 = vrsqrt.pop %v287
    %v304 = vmul.f32 %v176, %v288
    %v305 = vmul.f32 %v177, %v289
    %v306 = vmul.f32 %v178, %v290
    %v307 = vmul.f32 %v179, %v291
    %v308 = vmul.f32 %v180, %v292
    %v309 = vmul.f32 %v181, %v293
    %v310 = vmul.f32 %v182, %v294
    %v311 = vmul.f32 %v183, %v295
    %v312 = vmul.f32 %v184, %v296
    %v313 = vmul.f32 %v185, %v297
    %v314 = vmul.f32 %v186, %v298
    %v315 = vmul.f32 %v187, %v299
    %v316 = vmul.f32 %v188, %v300
    %v317 = vmul.f32 %v189, %v301
    %v318 = vmul.f32 %v190, %v302
    %v319 = vmul.f32 %v191, %v303
    %v320 = vlaneseq
    %v321 = vshrl.u32 %v320, 7
    %v322 = vsub.s32 0, %v321
    %v323 = vrot.slane %v68, %v322
    %v324 = vmul.f32 %v304, %v323
    %v325 = vmul.f32 %v305, %v323
    %v326 = vmul.f32 %v306, %v323
    %v327 = vmul.f32 %v307, %v323
    %v328 = vmul.f32 %v308, %v323
    %v329 = vmul.f32 %v309, %v323
    %v330 = vmul.f32 %v310, %v323
    %v331 = vmul.f32 %v311, %v323
    %v332 = vmul.f32 %v312, %v323
    %v333 = vmul.f32 %v313, %v323
    %v334 = vmul.f32 %v314, %v323
    %v335 = vmul.f32 %v315, %v323
    %v336 = vmul.f32 %v316, %v323
    %v337 = vmul.f32 %v317, %v323
    %v338 = vmul.f32 %v318, %v323
    %v339 = vmul.f32 %v319, %v323
    %v340 = vlaneseq
    %v341 = vshrl.u32 %v340, 7
    %v342 = vsub.s32 0, %v341
    %v343 = vrot.slane %v69, %v342
    %v344 = vadd.f32 %v324, %v343
    %v345 = vadd.f32 %v325, %v343
    %v346 = vadd.f32 %v326, %v343
    %v347 = vadd.f32 %v327, %v343
    %v348 = vadd.f32 %v328, %v343
    %v349 = vadd.f32 %v329, %v343
    %v350 = vadd.f32 %v330, %v343
    %v351 = vadd.f32 %v331, %v343
    %v352 = vadd.f32 %v332, %v343
    %v353 = vadd.f32 %v333, %v343
    %v354 = vadd.f32 %v334, %v343
    %v355 = vadd.f32 %v335, %v343
    %v356 = vadd.f32 %v336, %v343
    %v357 = vadd.f32 %v337, %v343
    %v358 = vadd.f32 %v338, %v343
    %v359 = vadd.f32 %v339, %v343
    %v360 = vlaneseq
    %v361 = vshrl.u32 %v360, 7
    %v362 = vsub.s32 0, %v361
    %v363 = vrot.slane %v75, %v362
    %v365 = vsel %vm110, %v344, 0
    %v368 = vsel %vm110, %v345, 0
    %v371 = vsel %vm110, %v346, 0
    %v374 = vsel %vm110, %v347, 0
    %v377 = vsel %vm110, %v348, 0
    %v380 = vsel %vm110, %v349, 0
    %v383 = vsel %vm110, %v350, 0
    %v386 = vsel %vm110, %v351, 0
    %v389 = vsel %vm110, %v352, 0
    %v392 = vsel %vm110, %v353, 0
    %v395 = vsel %vm110, %v354, 0
    %v398 = vsel %vm110, %v355, 0
    %v401 = vsel %vm110, %v356, 0
    %v404 = vsel %vm110, %v357, 0
    %v407 = vsel %vm110, %v358, 0
    %v410 = vsel %vm110, %v359, 0
    %412 = vmatprep.subr.mxu0 0.0
    %413 = vmatpush1.msra.mxu0 0.0
    %414 = vmatprep.subr.mxu0 0.0
    %415 = vmatpush1.msra.mxu0 0.0
    %416 = vmatprep.subr.mxu0 0.0
    %417 = vmatpush1.msra.mxu0 0.0
    %418 = vmatprep.subr.mxu0 0.0
    %419 = vmatpush1.msra.mxu0 0.0
    %420 = vmatprep.subr.mxu0 0.0
    %421 = vmatpush1.msra.mxu0 0.0
    %422 = vmatprep.subr.mxu0 0.0
    %423 = vmatpush1.msra.mxu0 0.0
    %424 = vmatprep.subr.mxu0 0.0
    %425 = vmatpush1.msra.mxu0 0.0
    %426 = vmatprep.subr.mxu0 0.0
    %427 = vmatpush1.msra.mxu0 0.0
    %428 = vmatprep.subr.mxu0 0.0
    %429 = vmatpush1.msra.mxu0 0.0
    %430 = vmatprep.subr.mxu0 0.0
    %431 = vmatpush1.msra.mxu0 0.0
    %432 = vmatprep.subr.mxu0 0.0
    %433 = vmatpush1.msra.mxu0 0.0
    %434 = vmatprep.subr.mxu0 0.0
    %435 = vmatpush1.msra.mxu0 0.0
    %436 = vmatprep.subr.mxu0 0.0
    %437 = vmatpush1.msra.mxu0 %v33
    %438 = vmatprep.subr.mxu0 0.0
    %439 = vmatpush1.msra.mxu0 %v32
    %440 = vmatprep.subr.mxu0 0.0
    %441 = vmatpush1.msra.mxu0 %v31
    %442 = vmatprep.subr.mxu0 0.0
    %443 = vmatpush1.msra.mxu0 %v30
    %444 = vmatprep.subr.mxu0 0.0
    %445 = vmatpush2.msra.mxu0 0.0
    %446 = vmatprep.subr.mxu0 0.0
    %447 = vmatpush2.msra.mxu0 0.0
    %448 = vmatprep.subr.mxu0 0.0
    %449 = vmatpush2.msra.mxu0 0.0
    %450 = vmatprep.subr.mxu0 0.0
    %451 = vmatpush2.msra.mxu0 0.0
    %452 = vmatprep.subr.mxu0 0.0
    %453 = vmatpush2.msra.mxu0 0.0
    %454 = vmatprep.subr.mxu0 0.0
    %455 = vmatpush2.msra.mxu0 0.0
    %456 = vmatprep.subr.mxu0 0.0
    %457 = vmatpush2.msra.mxu0 0.0
    %458 = vmatprep.subr.mxu0 0.0
    %459 = vmatpush2.msra.mxu0 0.0
    %460 = vmatprep.subr.mxu0 0.0
    %461 = vmatpush2.msra.mxu0 0.0
    %462 = vmatprep.subr.mxu0 0.0
    %463 = vmatpush2.msra.mxu0 0.0
    %464 = vmatprep.subr.mxu0 0.0
    %465 = vmatpush2.msra.mxu0 0.0
    %466 = vmatprep.subr.mxu0 0.0
    %467 = vmatpush2.msra.mxu0 0.0
    %468 = vmatprep.subr.mxu0 0.0
    %469 = vmatpush2.msra.mxu0 0.0
    %470 = vmatprep.subr.mxu0 0.0
    %471 = vmatpush2.msra.mxu0 0.0
    %472 = vmatprep.subr.mxu0 0.0
    %473 = vmatpush2.msra.mxu0 0.0
    %474 = vmatprep.subr.mxu0 0.0
    %475 = vmatpush2.msra.mxu0 0.0
    %476 = vmatprep.mubr.f32.mxu0 0.0
    %477 = vmatmul.mubr.f32.gmra.mxu0 %v365
    %v478 = vpop.f32.mrf.mxu0
    %v479 = vadd.f32 %v363, %v478
    %v480 = vpop.f32.mrf.mxu0
    %481 = vmatprep.mubr.f32.mxu0 0.0
    %482 = vmatmul.mubr.f32.gmra.mxu0 %v368
    %v483 = vpop.f32.mrf.mxu0
    %v484 = vadd.f32 %v363, %v483
    %v485 = vpop.f32.mrf.mxu0
    %486 = vmatprep.mubr.f32.mxu0 0.0
    %487 = vmatmul.mubr.f32.gmra.mxu0 %v371
    %v488 = vpop.f32.mrf.mxu0
    %v489 = vadd.f32 %v363, %v488
    %v490 = vpop.f32.mrf.mxu0
    %491 = vmatprep.mubr.f32.mxu0 0.0
    %492 = vmatmul.mubr.f32.gmra.mxu0 %v374
    %v493 = vpop.f32.mrf.mxu0
    %v494 = vadd.f32 %v363, %v493
    %v495 = vpop.f32.mrf.mxu0
    %496 = vmatprep.mubr.f32.mxu0 0.0
    %497 = vmatmul.mubr.f32.gmra.mxu0 %v377
    %v498 = vpop.f32.mrf.mxu0
    %v499 = vadd.f32 %v363, %v498
    %v500 = vpop.f32.mrf.mxu0
    %501 = vmatprep.mubr.f32.mxu0 0.0
    %502 = vmatmul.mubr.f32.gmra.mxu0 %v380
    %v503 = vpop.f32.mrf.mxu0
    %v504 = vadd.f32 %v363, %v503
    %v505 = vpop.f32.mrf.mxu0
    %506 = vmatprep.mubr.f32.mxu0 0.0
    %507 = vmatmul.mubr.f32.gmra.mxu0 %v383
    %v508 = vpop.f32.mrf.mxu0
    %v509 = vadd.f32 %v363, %v508
    %v510 = vpop.f32.mrf.mxu0
    %511 = vmatprep.mubr.f32.mxu0 0.0
    %512 = vmatmul.mubr.f32.gmra.mxu0 %v386
    %v513 = vpop.f32.mrf.mxu0
    %v514 = vadd.f32 %v363, %v513
    %v515 = vpop.f32.mrf.mxu0
    %516 = vmatprep.mubr.f32.mxu0 0.0
    %517 = vmatmul.mubr.f32.gmra.mxu0 %v389
    %v518 = vpop.f32.mrf.mxu0
    %v519 = vadd.f32 %v363, %v518
    %v520 = vpop.f32.mrf.mxu0
    %521 = vmatprep.mubr.f32.mxu0 0.0
    %522 = vmatmul.mubr.f32.gmra.mxu0 %v392
    %v523 = vpop.f32.mrf.mxu0
    %v524 = vadd.f32 %v363, %v523
    %v525 = vpop.f32.mrf.mxu0
    %526 = vmatprep.mubr.f32.mxu0 0.0
    %527 = vmatmul.mubr.f32.gmra.mxu0 %v395
    %v528 = vpop.f32.mrf.mxu0
    %v529 = vadd.f32 %v363, %v528
    %v530 = vpop.f32.mrf.mxu0
    %531 = vmatprep.mubr.f32.mxu0 0.0
    %532 = vmatmul.mubr.f32.gmra.mxu0 %v398
    %v533 = vpop.f32.mrf.mxu0
    %v534 = vadd.f32 %v363, %v533
    %v535 = vpop.f32.mrf.mxu0
    %536 = vmatprep.mubr.f32.mxu0 0.0
    %537 = vmatmul.mubr.f32.gmra.mxu0 %v401
    %v538 = vpop.f32.mrf.mxu0
    %v539 = vadd.f32 %v363, %v538
    %v540 = vpop.f32.mrf.mxu0
    %541 = vmatprep.mubr.f32.mxu0 0.0
    %542 = vmatmul.mubr.f32.gmra.mxu0 %v404
    %v543 = vpop.f32.mrf.mxu0
    %v544 = vadd.f32 %v363, %v543
    %v545 = vpop.f32.mrf.mxu0
    %546 = vmatprep.mubr.f32.mxu0 0.0
    %547 = vmatmul.mubr.f32.gmra.mxu0 %v407
    %v548 = vpop.f32.mrf.mxu0
    %v549 = vadd.f32 %v363, %v548
    %v550 = vpop.f32.mrf.mxu0
    %551 = vmatprep.mubr.f32.mxu0 0.0
    %552 = vmatmul.mubr.f32.gmra.mxu0 %v410
    %v553 = vpop.f32.mrf.mxu0
    %v554 = vadd.f32 %v363, %v553
    %v555 = vpop.f32.mrf.mxu0
    %556 = vdwg.mxu0
    %v557 = vsel %vm110, %v108, 0.0
    %558 = vadd.xlane.f32.xlu0 %v557
    %v559 = vpop.xlane.xlu0 %558
    %v560 = vsel %vm110, %v109, 0.0
    %561 = vadd.xlane.f32.xlu0 %v560
    %v562 = vpop.xlane.xlu0 %561
    %v563 = vmul.f32 %v559, %v159
    %v564 = vmul.f32 %v562, %v159
    %v565 = vsub.f32 %v108, %v563
    %v566 = vsub.f32 %v109, %v564
    %v567 = vmul.f32 %v565, %v565
    %v568 = vmul.f32 %v566, %v566
    %v569 = vsel %vm110, %v567, 0.0
    %570 = vadd.xlane.f32.xlu0 %v569
    %v571 = vpop.xlane.xlu0 %570
    %v572 = vsel %vm110, %v568, 0.0
    %573 = vadd.xlane.f32.xlu0 %v572
    %v574 = vpop.xlane.xlu0 %573
    %v575 = vmul.f32 %v571, %v159
    %v576 = vmul.f32 %v574, %v159
    %v577 = vadd.f32 %v575, 1e-05
    %v578 = vadd.f32 %v576, 1e-05
    %v579 = vrsqrt.pop %v577
    %v580 = vrsqrt.pop %v578
    %v581 = vmul.f32 %v565, %v579
    %v582 = vmul.f32 %v566, %v580
    %v583 = vlaneseq
    %v584 = vshrl.u32 %v583, 7
    %v585 = vsub.s32 0, %v584
    %v586 = vrot.slane %v70, %v585
    %v587 = vmul.f32 %v581, %v586
    %v588 = vmul.f32 %v582, %v586
    %v589 = vlaneseq
    %v590 = vshrl.u32 %v589, 7
    %v591 = vsub.s32 0, %v590
    %v592 = vrot.slane %v71, %v591
    %v593 = vadd.f32 %v587, %v592
    %v594 = vadd.f32 %v588, %v592
    %v595 = vlaneseq
    %v596 = vshrl.u32 %v595, 7
    %v597 = vsub.s32 0, %v596
    %v598 = vrot.slane %v74, %v597
    %v600 = vsel %vm110, %v593, 0
    %v603 = vsel %vm110, %v594, 0
    %605 = vmatprep.subr.mxu0 0.0
    %606 = vmatpush1.msra.mxu0 0.0
    %607 = vmatprep.subr.mxu0 0.0
    %608 = vmatpush1.msra.mxu0 0.0
    %609 = vmatprep.subr.mxu0 0.0
    %610 = vmatpush1.msra.mxu0 0.0
    %611 = vmatprep.subr.mxu0 0.0
    %612 = vmatpush1.msra.mxu0 0.0
    %613 = vmatprep.subr.mxu0 0.0
    %614 = vmatpush1.msra.mxu0 0.0
    %615 = vmatprep.subr.mxu0 0.0
    %616 = vmatpush1.msra.mxu0 0.0
    %617 = vmatprep.subr.mxu0 0.0
    %618 = vmatpush1.msra.mxu0 0.0
    %619 = vmatprep.subr.mxu0 0.0
    %620 = vmatpush1.msra.mxu0 0.0
    %621 = vmatprep.subr.mxu0 0.0
    %622 = vmatpush1.msra.mxu0 0.0
    %623 = vmatprep.subr.mxu0 0.0
    %624 = vmatpush1.msra.mxu0 0.0
    %625 = vmatprep.subr.mxu0 0.0
    %626 = vmatpush1.msra.mxu0 0.0
    %627 = vmatprep.subr.mxu0 0.0
    %628 = vmatpush1.msra.mxu0 0.0
    %629 = vmatprep.subr.mxu0 0.0
    %630 = vmatpush1.msra.mxu0 %v29
    %631 = vmatprep.subr.mxu0 0.0
    %632 = vmatpush1.msra.mxu0 %v28
    %633 = vmatprep.subr.mxu0 0.0
    %634 = vmatpush1.msra.mxu0 %v27
    %635 = vmatprep.subr.mxu0 0.0
    %636 = vmatpush1.msra.mxu0 %v26
    %637 = vmatprep.subr.mxu0 0.0
    %638 = vmatpush2.msra.mxu0 0.0
    %639 = vmatprep.subr.mxu0 0.0
    %640 = vmatpush2.msra.mxu0 0.0
    %641 = vmatprep.subr.mxu0 0.0
    %642 = vmatpush2.msra.mxu0 0.0
    %643 = vmatprep.subr.mxu0 0.0
    %644 = vmatpush2.msra.mxu0 0.0
    %645 = vmatprep.subr.mxu0 0.0
    %646 = vmatpush2.msra.mxu0 0.0
    %647 = vmatprep.subr.mxu0 0.0
    %648 = vmatpush2.msra.mxu0 0.0
    %649 = vmatprep.subr.mxu0 0.0
    %650 = vmatpush2.msra.mxu0 0.0
    %651 = vmatprep.subr.mxu0 0.0
    %652 = vmatpush2.msra.mxu0 0.0
    %653 = vmatprep.subr.mxu0 0.0
    %654 = vmatpush2.msra.mxu0 0.0
    %655 = vmatprep.subr.mxu0 0.0
    %656 = vmatpush2.msra.mxu0 0.0
    %657 = vmatprep.subr.mxu0 0.0
    %658 = vmatpush2.msra.mxu0 0.0
    %659 = vmatprep.subr.mxu0 0.0
    %660 = vmatpush2.msra.mxu0 0.0
    %661 = vmatprep.subr.mxu0 0.0
    %662 = vmatpush2.msra.mxu0 0.0
    %663 = vmatprep.subr.mxu0 0.0
    %664 = vmatpush2.msra.mxu0 0.0
    %665 = vmatprep.subr.mxu0 0.0
    %666 = vmatpush2.msra.mxu0 0.0
    %667 = vmatprep.subr.mxu0 0.0
    %668 = vmatpush2.msra.mxu0 0.0
    %669 = vmatprep.mubr.f32.mxu0 0.0
    %670 = vmatmul.mubr.f32.gmra.mxu0 %v600
    %v671 = vpop.f32.mrf.mxu0
    %v672 = vadd.f32 %v598, %v671
    %v673 = vpop.f32.mrf.mxu0
    %674 = vmatprep.mubr.f32.mxu0 0.0
    %675 = vmatmul.mubr.f32.gmra.mxu0 %v603
    %v676 = vpop.f32.mrf.mxu0
    %v677 = vadd.f32 %v598, %v676
    %v678 = vpop.f32.mrf.mxu0
    %679 = vdwg.mxu0
    %v681 = vsel %vm110, %v672, 0
    %v684 = vsel %vm110, %v479, 0
    %v687 = vsel %vm110, %v484, 0
    %v690 = vsel %vm110, %v489, 0
    %v693 = vsel %vm110, %v494, 0
    %v696 = vsel %vm110, %v499, 0
    %v699 = vsel %vm110, %v504, 0
    %v702 = vsel %vm110, %v509, 0
    %v705 = vsel %vm110, %v514, 0
    %707 = vmatprep.subr.mxu0 0.0
    %708 = vmatpush1.xpose.msra.mxu0 0.0
    %709 = vmatprep.subr.mxu0 0.0
    %710 = vmatpush1.xpose.msra.mxu0 0.0
    %711 = vmatprep.subr.mxu0 0.0
    %712 = vmatpush1.xpose.msra.mxu0 0.0
    %713 = vmatprep.subr.mxu0 0.0
    %714 = vmatpush1.xpose.msra.mxu0 0.0
    %715 = vmatprep.subr.mxu0 0.0
    %716 = vmatpush1.xpose.msra.mxu0 0.0
    %717 = vmatprep.subr.mxu0 0.0
    %718 = vmatpush1.xpose.msra.mxu0 0.0
    %719 = vmatprep.subr.mxu0 0.0
    %720 = vmatpush1.xpose.msra.mxu0 0.0
    %721 = vmatprep.subr.mxu0 0.0
    %722 = vmatpush1.xpose.msra.mxu0 0.0
    %723 = vmatprep.subr.mxu0 0.0
    %724 = vmatpush1.xpose.msra.mxu0 %v705
    %725 = vmatprep.subr.mxu0 0.0
    %726 = vmatpush1.xpose.msra.mxu0 %v702
    %727 = vmatprep.subr.mxu0 0.0
    %728 = vmatpush1.xpose.msra.mxu0 %v699
    %729 = vmatprep.subr.mxu0 0.0
    %730 = vmatpush1.xpose.msra.mxu0 %v696
    %731 = vmatprep.subr.mxu0 0.0
    %732 = vmatpush1.xpose.msra.mxu0 %v693
    %733 = vmatprep.subr.mxu0 0.0
    %734 = vmatpush1.xpose.msra.mxu0 %v690
    %735 = vmatprep.subr.mxu0 0.0
    %736 = vmatpush1.xpose.msra.mxu0 %v687
    %737 = vmatprep.subr.mxu0 0.0
    %738 = vmatpush1.xpose.msra.mxu0 %v684
    %739 = vmatprep.subr.mxu0 0.0
    %740 = vmatpush2.xpose.msra.mxu0 0.0
    %741 = vmatprep.subr.mxu0 0.0
    %742 = vmatpush2.xpose.msra.mxu0 0.0
    %743 = vmatprep.subr.mxu0 0.0
    %744 = vmatpush2.xpose.msra.mxu0 0.0
    %745 = vmatprep.subr.mxu0 0.0
    %746 = vmatpush2.xpose.msra.mxu0 0.0
    %747 = vmatprep.subr.mxu0 0.0
    %748 = vmatpush2.xpose.msra.mxu0 0.0
    %749 = vmatprep.subr.mxu0 0.0
    %750 = vmatpush2.xpose.msra.mxu0 0.0
    %751 = vmatprep.subr.mxu0 0.0
    %752 = vmatpush2.xpose.msra.mxu0 0.0
    %753 = vmatprep.subr.mxu0 0.0
    %754 = vmatpush2.xpose.msra.mxu0 0.0
    %755 = vmatprep.subr.mxu0 0.0
    %756 = vmatpush2.xpose.msra.mxu0 0.0
    %757 = vmatprep.subr.mxu0 0.0
    %758 = vmatpush2.xpose.msra.mxu0 0.0
    %759 = vmatprep.subr.mxu0 0.0
    %760 = vmatpush2.xpose.msra.mxu0 0.0
    %761 = vmatprep.subr.mxu0 0.0
    %762 = vmatpush2.xpose.msra.mxu0 0.0
    %763 = vmatprep.subr.mxu0 0.0
    %764 = vmatpush2.xpose.msra.mxu0 0.0
    %765 = vmatprep.subr.mxu0 0.0
    %766 = vmatpush2.xpose.msra.mxu0 0.0
    %767 = vmatprep.subr.mxu0 0.0
    %768 = vmatpush2.xpose.msra.mxu0 0.0
    %769 = vmatprep.subr.mxu0 0.0
    %770 = vmatpush2.xpose.msra.mxu0 0.0
    %771 = vmatprep.mubr.f32.mxu0 0.0
    %772 = vmatmul.mubr.f32.gmra.mxu0 %v681
    %v773 = vpop.f32.mrf.mxu0
    %v774 = vadd.f32 0.0, %v773
    %v775 = vpop.f32.mrf.mxu0
    %776 = vdwg.mxu0
    %v778 = vsel %vm110, %v677, 0
    %v781 = vsel %vm110, %v519, 0
    %v784 = vsel %vm110, %v524, 0
    %v787 = vsel %vm110, %v529, 0
    %v790 = vsel %vm110, %v534, 0
    %v793 = vsel %vm110, %v539, 0
    %v796 = vsel %vm110, %v544, 0
    %v799 = vsel %vm110, %v549, 0
    %v802 = vsel %vm110, %v554, 0
    %804 = vmatprep.subr.mxu0 0.0
    %805 = vmatpush1.xpose.msra.mxu0 0.0
    %806 = vmatprep.subr.mxu0 0.0
    %807 = vmatpush1.xpose.msra.mxu0 0.0
    %808 = vmatprep.subr.mxu0 0.0
    %809 = vmatpush1.xpose.msra.mxu0 0.0
    %810 = vmatprep.subr.mxu0 0.0
    %811 = vmatpush1.xpose.msra.mxu0 0.0
    %812 = vmatprep.subr.mxu0 0.0
    %813 = vmatpush1.xpose.msra.mxu0 0.0
    %814 = vmatprep.subr.mxu0 0.0
    %815 = vmatpush1.xpose.msra.mxu0 0.0
    %816 = vmatprep.subr.mxu0 0.0
    %817 = vmatpush1.xpose.msra.mxu0 0.0
    %818 = vmatprep.subr.mxu0 0.0
    %819 = vmatpush1.xpose.msra.mxu0 0.0
    %820 = vmatprep.subr.mxu0 0.0
    %821 = vmatpush1.xpose.msra.mxu0 %v802
    %822 = vmatprep.subr.mxu0 0.0
    %823 = vmatpush1.xpose.msra.mxu0 %v799
    %824 = vmatprep.subr.mxu0 0.0
    %825 = vmatpush1.xpose.msra.mxu0 %v796
    %826 = vmatprep.subr.mxu0 0.0
    %827 = vmatpush1.xpose.msra.mxu0 %v793
    %828 = vmatprep.subr.mxu0 0.0
    %829 = vmatpush1.xpose.msra.mxu0 %v790
    %830 = vmatprep.subr.mxu0 0.0
    %831 = vmatpush1.xpose.msra.mxu0 %v787
    %832 = vmatprep.subr.mxu0 0.0
    %833 = vmatpush1.xpose.msra.mxu0 %v784
    %834 = vmatprep.subr.mxu0 0.0
    %835 = vmatpush1.xpose.msra.mxu0 %v781
    %836 = vmatprep.subr.mxu0 0.0
    %837 = vmatpush2.xpose.msra.mxu0 0.0
    %838 = vmatprep.subr.mxu0 0.0
    %839 = vmatpush2.xpose.msra.mxu0 0.0
    %840 = vmatprep.subr.mxu0 0.0
    %841 = vmatpush2.xpose.msra.mxu0 0.0
    %842 = vmatprep.subr.mxu0 0.0
    %843 = vmatpush2.xpose.msra.mxu0 0.0
    %844 = vmatprep.subr.mxu0 0.0
    %845 = vmatpush2.xpose.msra.mxu0 0.0
    %846 = vmatprep.subr.mxu0 0.0
    %847 = vmatpush2.xpose.msra.mxu0 0.0
    %848 = vmatprep.subr.mxu0 0.0
    %849 = vmatpush2.xpose.msra.mxu0 0.0
    %850 = vmatprep.subr.mxu0 0.0
    %851 = vmatpush2.xpose.msra.mxu0 0.0
    %852 = vmatprep.subr.mxu0 0.0
    %853 = vmatpush2.xpose.msra.mxu0 0.0
    %854 = vmatprep.subr.mxu0 0.0
    %855 = vmatpush2.xpose.msra.mxu0 0.0
    %856 = vmatprep.subr.mxu0 0.0
    %857 = vmatpush2.xpose.msra.mxu0 0.0
    %858 = vmatprep.subr.mxu0 0.0
    %859 = vmatpush2.xpose.msra.mxu0 0.0
    %860 = vmatprep.subr.mxu0 0.0
    %861 = vmatpush2.xpose.msra.mxu0 0.0
    %862 = vmatprep.subr.mxu0 0.0
    %863 = vmatpush2.xpose.msra.mxu0 0.0
    %864 = vmatprep.subr.mxu0 0.0
    %865 = vmatpush2.xpose.msra.mxu0 0.0
    %866 = vmatprep.subr.mxu0 0.0
    %867 = vmatpush2.xpose.msra.mxu0 0.0
    %868 = vmatprep.mubr.f32.mxu0 0.0
    %869 = vmatmul.mubr.f32.gmra.mxu0 %v778
    %v870 = vpop.f32.mrf.mxu0
    %v871 = vadd.f32 0.0, %v870
    %v872 = vpop.f32.mrf.mxu0
    %873 = vdwg.mxu0
    %v874 = vmul.f32 %v774, 0.17677669
    %v875 = vmul.f32 %v871, 0.17677669
    %vm876 = vcmask 523264
    %v877 = vsel %vm876, %v874, -inf
    %v878 = vrot.slane %v877, 4
    %v879 = vmax.f32 %v877, %v878
    %v880 = vrot.slane %v879, 2
    %v881 = vmax.f32 %v879, %v880
    %v882 = vrot.slane %v881, 1
    %v883 = vmax.f32 %v881, %v882
    %v884 = vsel %vm876, %v875, -inf
    %v885 = vrot.slane %v884, 4
    %v886 = vmax.f32 %v884, %v885
    %v887 = vrot.slane %v886, 2
    %v888 = vmax.f32 %v886, %v887
    %v889 = vrot.slane %v888, 1
    %v890 = vmax.f32 %v888, %v889
    %v891 = vsub.f32 %v874, %v883
    %v892 = vsub.f32 %v875, %v890
    %v893 = vmul.f32 %v891, 1.442695
    %v894 = vpow.pop %v893
    %v895 = vmul.f32 %v892, 1.442695
    %v896 = vpow.pop %v895
    %v897 = vsel %vm876, %v894, 0.0
    %v898 = vrot.slane %v897, 4
    %v899 = vadd.f32 %v897, %v898
    %v900 = vrot.slane %v899, 2
    %v901 = vadd.f32 %v899, %v900
    %v902 = vrot.slane %v901, 1
    %v903 = vadd.f32 %v901, %v902
    %v904 = vsel %vm876, %v896, 0.0
    %v905 = vrot.slane %v904, 4
    %v906 = vadd.f32 %v904, %v905
    %v907 = vrot.slane %v906, 2
    %v908 = vadd.f32 %v906, %v907
    %v909 = vrot.slane %v908, 1
    %v910 = vadd.f32 %v908, %v909
    %v911 = vrcp.pop %v903
    %v912 = vrcp.pop %v910
    %v913 = vmul.f32 %v903, %v911
    %v914 = vmul.f32 %v910, %v912
    %v915 = vsub.f32 2.0, %v913
    %v916 = vsub.f32 2.0, %v914
    %v917 = vmul.f32 %v911, %v915
    %v918 = vmul.f32 %v912, %v916
    %v919 = vmul.f32 %v894, %v917
    %v920 = vmul.f32 %v896, %v918
    %v921 = vadd.f32 %v919, 1e-08
    %v922 = vadd.f32 %v920, 1e-08
    %v923 = vsel %vm876, %v921, 0.0
    %924 = vadd.xlane.f32.xlu0 %v923
    %v925 = vpop.xlane.xlu0 %924
    %v926 = vsel %vm876, %v922, 0.0
    %927 = vadd.xlane.f32.xlu0 %v926
    %v928 = vpop.xlane.xlu0 %927
    %v929 = vrcp.pop %v925
    %v930 = vrcp.pop %v928
    %v931 = vmul.f32 %v925, %v929
    %v932 = vmul.f32 %v928, %v930
    %v933 = vsub.f32 2.0, %v931
    %v934 = vsub.f32 2.0, %v932
    %v935 = vmul.f32 %v929, %v933
    %v936 = vmul.f32 %v930, %v934
    %v937 = vmul.f32 %v921, %v935
    %v938 = vmul.f32 %v922, %v936
    %939 = vrot.lane.b32.xlu0 %v479, 96
    %v940 = vpop.permute.xlu0 %939
    %941 = vrot.lane.b32.xlu0 %v484, 96
    %v942 = vpop.permute.xlu0 %941
    %943 = vrot.lane.b32.xlu0 %v489, 96
    %v944 = vpop.permute.xlu0 %943
    %945 = vrot.lane.b32.xlu0 %v494, 96
    %v946 = vpop.permute.xlu0 %945
    %947 = vrot.lane.b32.xlu0 %v499, 96
    %v948 = vpop.permute.xlu0 %947
    %949 = vrot.lane.b32.xlu0 %v504, 96
    %v950 = vpop.permute.xlu0 %949
    %951 = vrot.lane.b32.xlu0 %v509, 96
    %v952 = vpop.permute.xlu0 %951
    %953 = vrot.lane.b32.xlu0 %v514, 96
    %v954 = vpop.permute.xlu0 %953
    %v964 = vsel %vm876, %v937, 0
    %966 = vmatprep.subr.mxu0 0.0
    %967 = vmatpush1.msra.mxu0 0.0
    %968 = vmatprep.subr.mxu0 0.0
    %969 = vmatpush1.msra.mxu0 0.0
    %970 = vmatprep.subr.mxu0 0.0
    %971 = vmatpush1.msra.mxu0 0.0
    %972 = vmatprep.subr.mxu0 0.0
    %973 = vmatpush1.msra.mxu0 0.0
    %974 = vmatprep.subr.mxu0 0.0
    %975 = vmatpush1.msra.mxu0 0.0
    %976 = vmatprep.subr.mxu0 0.0
    %977 = vmatpush1.msra.mxu0 0.0
    %978 = vmatprep.subr.mxu0 0.0
    %979 = vmatpush1.msra.mxu0 0.0
    %980 = vmatprep.subr.mxu0 0.0
    %981 = vmatpush1.msra.mxu0 0.0
    %982 = vmatprep.subr.mxu0 0.0
    %983 = vmatpush1.msra.mxu0 %v954
    %984 = vmatprep.subr.mxu0 0.0
    %985 = vmatpush1.msra.mxu0 %v952
    %986 = vmatprep.subr.mxu0 0.0
    %987 = vmatpush1.msra.mxu0 %v950
    %988 = vmatprep.subr.mxu0 0.0
    %989 = vmatpush1.msra.mxu0 %v948
    %990 = vmatprep.subr.mxu0 0.0
    %991 = vmatpush1.msra.mxu0 %v946
    %992 = vmatprep.subr.mxu0 0.0
    %993 = vmatpush1.msra.mxu0 %v944
    %994 = vmatprep.subr.mxu0 0.0
    %995 = vmatpush1.msra.mxu0 %v942
    %996 = vmatprep.subr.mxu0 0.0
    %997 = vmatpush1.msra.mxu0 %v940
    %998 = vmatprep.subr.mxu0 0.0
    %999 = vmatpush2.msra.mxu0 0.0
    %1000 = vmatprep.subr.mxu0 0.0
    %1001 = vmatpush2.msra.mxu0 0.0
    %1002 = vmatprep.subr.mxu0 0.0
    %1003 = vmatpush2.msra.mxu0 0.0
    %1004 = vmatprep.subr.mxu0 0.0
    %1005 = vmatpush2.msra.mxu0 0.0
    %1006 = vmatprep.subr.mxu0 0.0
    %1007 = vmatpush2.msra.mxu0 0.0
    %1008 = vmatprep.subr.mxu0 0.0
    %1009 = vmatpush2.msra.mxu0 0.0
    %1010 = vmatprep.subr.mxu0 0.0
    %1011 = vmatpush2.msra.mxu0 0.0
    %1012 = vmatprep.subr.mxu0 0.0
    %1013 = vmatpush2.msra.mxu0 0.0
    %1014 = vmatprep.subr.mxu0 0.0
    %1015 = vmatpush2.msra.mxu0 0.0
    %1016 = vmatprep.subr.mxu0 0.0
    %1017 = vmatpush2.msra.mxu0 0.0
    %1018 = vmatprep.subr.mxu0 0.0
    %1019 = vmatpush2.msra.mxu0 0.0
    %1020 = vmatprep.subr.mxu0 0.0
    %1021 = vmatpush2.msra.mxu0 0.0
    %1022 = vmatprep.subr.mxu0 0.0
    %1023 = vmatpush2.msra.mxu0 0.0
    %1024 = vmatprep.subr.mxu0 0.0
    %1025 = vmatpush2.msra.mxu0 0.0
    %1026 = vmatprep.subr.mxu0 0.0
    %1027 = vmatpush2.msra.mxu0 0.0
    %1028 = vmatprep.subr.mxu0 0.0
    %1029 = vmatpush2.msra.mxu0 0.0
    %1030 = vmatprep.mubr.f32.mxu0 0.0
    %1031 = vmatmul.mubr.f32.gmra.mxu0 %v964
    %v1032 = vpop.f32.mrf.mxu0
    %v1033 = vadd.f32 0.0, %v1032
    %v1034 = vpop.f32.mrf.mxu0
    %1035 = vdwg.mxu0
    %1036 = vrot.lane.b32.xlu0 %v519, 96
    %v1037 = vpop.permute.xlu0 %1036
    %1038 = vrot.lane.b32.xlu0 %v524, 96
    %v1039 = vpop.permute.xlu0 %1038
    %1040 = vrot.lane.b32.xlu0 %v529, 96
    %v1041 = vpop.permute.xlu0 %1040
    %1042 = vrot.lane.b32.xlu0 %v534, 96
    %v1043 = vpop.permute.xlu0 %1042
    %1044 = vrot.lane.b32.xlu0 %v539, 96
    %v1045 = vpop.permute.xlu0 %1044
    %1046 = vrot.lane.b32.xlu0 %v544, 96
    %v1047 = vpop.permute.xlu0 %1046
    %1048 = vrot.lane.b32.xlu0 %v549, 96
    %v1049 = vpop.permute.xlu0 %1048
    %1050 = vrot.lane.b32.xlu0 %v554, 96
    %v1051 = vpop.permute.xlu0 %1050
    %v1061 = vsel %vm876, %v938, 0
    %1063 = vmatprep.subr.mxu0 0.0
    %1064 = vmatpush1.msra.mxu0 0.0
    %1065 = vmatprep.subr.mxu0 0.0
    %1066 = vmatpush1.msra.mxu0 0.0
    %1067 = vmatprep.subr.mxu0 0.0
    %1068 = vmatpush1.msra.mxu0 0.0
    %1069 = vmatprep.subr.mxu0 0.0
    %1070 = vmatpush1.msra.mxu0 0.0
    %1071 = vmatprep.subr.mxu0 0.0
    %1072 = vmatpush1.msra.mxu0 0.0
    %1073 = vmatprep.subr.mxu0 0.0
    %1074 = vmatpush1.msra.mxu0 0.0
    %1075 = vmatprep.subr.mxu0 0.0
    %1076 = vmatpush1.msra.mxu0 0.0
    %1077 = vmatprep.subr.mxu0 0.0
    %1078 = vmatpush1.msra.mxu0 0.0
    %1079 = vmatprep.subr.mxu0 0.0
    %1080 = vmatpush1.msra.mxu0 %v1051
    %1081 = vmatprep.subr.mxu0 0.0
    %1082 = vmatpush1.msra.mxu0 %v1049
    %1083 = vmatprep.subr.mxu0 0.0
    %1084 = vmatpush1.msra.mxu0 %v1047
    %1085 = vmatprep.subr.mxu0 0.0
    %1086 = vmatpush1.msra.mxu0 %v1045
    %1087 = vmatprep.subr.mxu0 0.0
    %1088 = vmatpush1.msra.mxu0 %v1043
    %1089 = vmatprep.subr.mxu0 0.0
    %1090 = vmatpush1.msra.mxu0 %v1041
    %1091 = vmatprep.subr.mxu0 0.0
    %1092 = vmatpush1.msra.mxu0 %v1039
    %1093 = vmatprep.subr.mxu0 0.0
    %1094 = vmatpush1.msra.mxu0 %v1037
    %1095 = vmatprep.subr.mxu0 0.0
    %1096 = vmatpush2.msra.mxu0 0.0
    %1097 = vmatprep.subr.mxu0 0.0
    %1098 = vmatpush2.msra.mxu0 0.0
    %1099 = vmatprep.subr.mxu0 0.0
    %1100 = vmatpush2.msra.mxu0 0.0
    %1101 = vmatprep.subr.mxu0 0.0
    %1102 = vmatpush2.msra.mxu0 0.0
    %1103 = vmatprep.subr.mxu0 0.0
    %1104 = vmatpush2.msra.mxu0 0.0
    %1105 = vmatprep.subr.mxu0 0.0
    %1106 = vmatpush2.msra.mxu0 0.0
    %1107 = vmatprep.subr.mxu0 0.0
    %1108 = vmatpush2.msra.mxu0 0.0
    %1109 = vmatprep.subr.mxu0 0.0
    %1110 = vmatpush2.msra.mxu0 0.0
    %1111 = vmatprep.subr.mxu0 0.0
    %1112 = vmatpush2.msra.mxu0 0.0
    %1113 = vmatprep.subr.mxu0 0.0
    %1114 = vmatpush2.msra.mxu0 0.0
    %1115 = vmatprep.subr.mxu0 0.0
    %1116 = vmatpush2.msra.mxu0 0.0
    %1117 = vmatprep.subr.mxu0 0.0
    %1118 = vmatpush2.msra.mxu0 0.0
    %1119 = vmatprep.subr.mxu0 0.0
    %1120 = vmatpush2.msra.mxu0 0.0
    %1121 = vmatprep.subr.mxu0 0.0
    %1122 = vmatpush2.msra.mxu0 0.0
    %1123 = vmatprep.subr.mxu0 0.0
    %1124 = vmatpush2.msra.mxu0 0.0
    %1125 = vmatprep.subr.mxu0 0.0
    %1126 = vmatpush2.msra.mxu0 0.0
    %1127 = vmatprep.mubr.f32.mxu0 0.0
    %1128 = vmatmul.mubr.f32.gmra.mxu0 %v1061
    %v1129 = vpop.f32.mrf.mxu0
    %v1130 = vadd.f32 0.0, %v1129
    %v1131 = vpop.f32.mrf.mxu0
    %1132 = vdwg.mxu0
    %v1133 = vlaneseq
    %v1134 = vshrl.u32 %v1133, 7
    %v1135 = vsub.s32 0, %v1134
    %v1136 = vrot.slane %v76, %v1135
    %v1138 = vsel %vm110, %v1033, 0
    %v1141 = vsel %vm110, %v1130, 0
    %1143 = vmatprep.subr.mxu0 0.0
    %1144 = vmatpush1.msra.mxu0 0.0
    %1145 = vmatprep.subr.mxu0 0.0
    %1146 = vmatpush1.msra.mxu0 0.0
    %1147 = vmatprep.subr.mxu0 0.0
    %1148 = vmatpush1.msra.mxu0 0.0
    %1149 = vmatprep.subr.mxu0 0.0
    %1150 = vmatpush1.msra.mxu0 0.0
    %1151 = vmatprep.subr.mxu0 0.0
    %1152 = vmatpush1.msra.mxu0 0.0
    %1153 = vmatprep.subr.mxu0 0.0
    %1154 = vmatpush1.msra.mxu0 0.0
    %1155 = vmatprep.subr.mxu0 0.0
    %1156 = vmatpush1.msra.mxu0 0.0
    %1157 = vmatprep.subr.mxu0 0.0
    %1158 = vmatpush1.msra.mxu0 0.0
    %1159 = vmatprep.subr.mxu0 0.0
    %1160 = vmatpush1.msra.mxu0 0.0
    %1161 = vmatprep.subr.mxu0 0.0
    %1162 = vmatpush1.msra.mxu0 0.0
    %1163 = vmatprep.subr.mxu0 0.0
    %1164 = vmatpush1.msra.mxu0 0.0
    %1165 = vmatprep.subr.mxu0 0.0
    %1166 = vmatpush1.msra.mxu0 0.0
    %1167 = vmatprep.subr.mxu0 0.0
    %1168 = vmatpush1.msra.mxu0 %v37
    %1169 = vmatprep.subr.mxu0 0.0
    %1170 = vmatpush1.msra.mxu0 %v36
    %1171 = vmatprep.subr.mxu0 0.0
    %1172 = vmatpush1.msra.mxu0 %v35
    %1173 = vmatprep.subr.mxu0 0.0
    %1174 = vmatpush1.msra.mxu0 %v34
    %1175 = vmatprep.subr.mxu0 0.0
    %1176 = vmatpush2.msra.mxu0 0.0
    %1177 = vmatprep.subr.mxu0 0.0
    %1178 = vmatpush2.msra.mxu0 0.0
    %1179 = vmatprep.subr.mxu0 0.0
    %1180 = vmatpush2.msra.mxu0 0.0
    %1181 = vmatprep.subr.mxu0 0.0
    %1182 = vmatpush2.msra.mxu0 0.0
    %1183 = vmatprep.subr.mxu0 0.0
    %1184 = vmatpush2.msra.mxu0 0.0
    %1185 = vmatprep.subr.mxu0 0.0
    %1186 = vmatpush2.msra.mxu0 0.0
    %1187 = vmatprep.subr.mxu0 0.0
    %1188 = vmatpush2.msra.mxu0 0.0
    %1189 = vmatprep.subr.mxu0 0.0
    %1190 = vmatpush2.msra.mxu0 0.0
    %1191 = vmatprep.subr.mxu0 0.0
    %1192 = vmatpush2.msra.mxu0 0.0
    %1193 = vmatprep.subr.mxu0 0.0
    %1194 = vmatpush2.msra.mxu0 0.0
    %1195 = vmatprep.subr.mxu0 0.0
    %1196 = vmatpush2.msra.mxu0 0.0
    %1197 = vmatprep.subr.mxu0 0.0
    %1198 = vmatpush2.msra.mxu0 0.0
    %1199 = vmatprep.subr.mxu0 0.0
    %1200 = vmatpush2.msra.mxu0 0.0
    %1201 = vmatprep.subr.mxu0 0.0
    %1202 = vmatpush2.msra.mxu0 0.0
    %1203 = vmatprep.subr.mxu0 0.0
    %1204 = vmatpush2.msra.mxu0 0.0
    %1205 = vmatprep.subr.mxu0 0.0
    %1206 = vmatpush2.msra.mxu0 0.0
    %1207 = vmatprep.mubr.f32.mxu0 0.0
    %1208 = vmatmul.mubr.f32.gmra.mxu0 %v1138
    %v1209 = vpop.f32.mrf.mxu0
    %v1210 = vadd.f32 %v1136, %v1209
    %v1211 = vpop.f32.mrf.mxu0
    %1212 = vmatprep.mubr.f32.mxu0 0.0
    %1213 = vmatmul.mubr.f32.gmra.mxu0 %v1141
    %v1214 = vpop.f32.mrf.mxu0
    %v1215 = vadd.f32 %v1136, %v1214
    %v1216 = vpop.f32.mrf.mxu0
    %1217 = vdwg.mxu0
    %v1218 = vlaneseq
    %v1219 = vshrl.u32 %v1218, 7
    %v1220 = vsub.s32 0, %v1219
    %v1221 = vrot.slane %v77, %v1220
    %v1223 = vsel %vm110, %v108, 0
    %v1226 = vsel %vm110, %v109, 0
    %1228 = vmatprep.subr.mxu0 0.0
    %1229 = vmatpush1.msra.mxu0 0.0
    %1230 = vmatprep.subr.mxu0 0.0
    %1231 = vmatpush1.msra.mxu0 0.0
    %1232 = vmatprep.subr.mxu0 0.0
    %1233 = vmatpush1.msra.mxu0 0.0
    %1234 = vmatprep.subr.mxu0 0.0
    %1235 = vmatpush1.msra.mxu0 0.0
    %1236 = vmatprep.subr.mxu0 0.0
    %1237 = vmatpush1.msra.mxu0 0.0
    %1238 = vmatprep.subr.mxu0 0.0
    %1239 = vmatpush1.msra.mxu0 0.0
    %1240 = vmatprep.subr.mxu0 0.0
    %1241 = vmatpush1.msra.mxu0 0.0
    %1242 = vmatprep.subr.mxu0 0.0
    %1243 = vmatpush1.msra.mxu0 0.0
    %1244 = vmatprep.subr.mxu0 0.0
    %1245 = vmatpush1.msra.mxu0 0.0
    %1246 = vmatprep.subr.mxu0 0.0
    %1247 = vmatpush1.msra.mxu0 0.0
    %1248 = vmatprep.subr.mxu0 0.0
    %1249 = vmatpush1.msra.mxu0 0.0
    %1250 = vmatprep.subr.mxu0 0.0
    %1251 = vmatpush1.msra.mxu0 0.0
    %1252 = vmatprep.subr.mxu0 0.0
    %1253 = vmatpush1.msra.mxu0 %v41
    %1254 = vmatprep.subr.mxu0 0.0
    %1255 = vmatpush1.msra.mxu0 %v40
    %1256 = vmatprep.subr.mxu0 0.0
    %1257 = vmatpush1.msra.mxu0 %v39
    %1258 = vmatprep.subr.mxu0 0.0
    %1259 = vmatpush1.msra.mxu0 %v38
    %1260 = vmatprep.subr.mxu0 0.0
    %1261 = vmatpush2.msra.mxu0 0.0
    %1262 = vmatprep.subr.mxu0 0.0
    %1263 = vmatpush2.msra.mxu0 0.0
    %1264 = vmatprep.subr.mxu0 0.0
    %1265 = vmatpush2.msra.mxu0 0.0
    %1266 = vmatprep.subr.mxu0 0.0
    %1267 = vmatpush2.msra.mxu0 0.0
    %1268 = vmatprep.subr.mxu0 0.0
    %1269 = vmatpush2.msra.mxu0 0.0
    %1270 = vmatprep.subr.mxu0 0.0
    %1271 = vmatpush2.msra.mxu0 0.0
    %1272 = vmatprep.subr.mxu0 0.0
    %1273 = vmatpush2.msra.mxu0 0.0
    %1274 = vmatprep.subr.mxu0 0.0
    %1275 = vmatpush2.msra.mxu0 0.0
    %1276 = vmatprep.subr.mxu0 0.0
    %1277 = vmatpush2.msra.mxu0 0.0
    %1278 = vmatprep.subr.mxu0 0.0
    %1279 = vmatpush2.msra.mxu0 0.0
    %1280 = vmatprep.subr.mxu0 0.0
    %1281 = vmatpush2.msra.mxu0 0.0
    %1282 = vmatprep.subr.mxu0 0.0
    %1283 = vmatpush2.msra.mxu0 0.0
    %1284 = vmatprep.subr.mxu0 0.0
    %1285 = vmatpush2.msra.mxu0 0.0
    %1286 = vmatprep.subr.mxu0 0.0
    %1287 = vmatpush2.msra.mxu0 0.0
    %1288 = vmatprep.subr.mxu0 0.0
    %1289 = vmatpush2.msra.mxu0 0.0
    %1290 = vmatprep.subr.mxu0 0.0
    %1291 = vmatpush2.msra.mxu0 0.0
    %1292 = vmatprep.mubr.f32.mxu0 0.0
    %1293 = vmatmul.mubr.f32.gmra.mxu0 %v1223
    %v1294 = vpop.f32.mrf.mxu0
    %v1295 = vadd.f32 %v1221, %v1294
    %v1296 = vpop.f32.mrf.mxu0
    %1297 = vmatprep.mubr.f32.mxu0 0.0
    %1298 = vmatmul.mubr.f32.gmra.mxu0 %v1226
    %v1299 = vpop.f32.mrf.mxu0
    %v1300 = vadd.f32 %v1221, %v1299
    %v1301 = vpop.f32.mrf.mxu0
    %1302 = vdwg.mxu0
    %v1303 = vadd.f32 %v1210, %v1295
    %v1304 = vadd.f32 %v1215, %v1300
    %v1305 = vxor.u32 %v1303, 2147483648
    %v1306 = vxor.u32 %v1304, 2147483648
    %v1307 = vmul.f32 %v1305, 1.442695
    %v1308 = vpow.pop %v1307
    %v1309 = vmul.f32 %v1306, 1.442695
    %v1310 = vpow.pop %v1309
    %v1311 = vadd.f32 %v1308, 1.0
    %v1312 = vadd.f32 %v1310, 1.0
    %v1313 = vrcp.pop %v1311
    %v1314 = vmul.f32 1.0, %v1313
    %v1315 = vrcp.pop %v1312
    %v1316 = vmul.f32 1.0, %v1315
    %1319 = vrot.lane.b32.xlu0 %v1295, 64
    %v1320 = vpop.permute.xlu0 %1319
    %1321 = vrot.lane.b32.xlu0 %v1300, 64
    %v1322 = vpop.permute.xlu0 %1321
    %v1325 = vmul.f32 %v1314, %v1320
    %v1326 = vmul.f32 %v1316, %v1322
    %1329 = vrot.lane.b32.xlu0 %v1325, 64
    %v1330 = vpop.permute.xlu0 %1329
    %1331 = vrot.lane.b32.xlu0 %v1326, 64
    %v1332 = vpop.permute.xlu0 %1331
    %v1335 = vadd.f32 %v1210, %v1330
    %v1336 = vadd.f32 %v1215, %v1332
    %v1337 = vtanh.pop %v1335
    %v1338 = vtanh.pop %v1336
    %v1339 = vsub.f32 1.0, %v1314
    %v1340 = vsub.f32 1.0, %v1316
    %1343 = vrot.lane.b32.xlu0 %v1337, 96
    %v1344 = vpop.permute.xlu0 %1343
    %1345 = vrot.lane.b32.xlu0 %v1338, 96
    %v1346 = vpop.permute.xlu0 %1345
    %v1349 = vmul.f32 %v1339, %v1344
    %v1350 = vmul.f32 %v1340, %v1346
    %1351 = vrot.lane.b32.xlu0 %v108, 32
    %v1352 = vpop.permute.xlu0 %1351
    %1353 = vrot.lane.b32.xlu0 %v109, 32
    %v1354 = vpop.permute.xlu0 %1353
    %v1357 = vmul.f32 %v1314, %v1352
    %v1358 = vmul.f32 %v1316, %v1354
    %v1359 = vadd.f32 %v1349, %v1357
    %v1360 = vadd.f32 %v1350, %v1358
    %1363 = vrot.lane.b32.xlu0 %v1359, 96
    %v1364 = vpop.permute.xlu0 %1363
    %1365 = vrot.lane.b32.xlu0 %v1360, 96
    %v1366 = vpop.permute.xlu0 %1365
    %v1369 = vsel %vm110, %v1364, 0.0
    %1370 = vadd.xlane.f32.xlu0 %v1369
    %v1371 = vpop.xlane.xlu0 %1370
    %v1372 = vsel %vm110, %v1366, 0.0
    %1373 = vadd.xlane.f32.xlu0 %v1372
    %v1374 = vpop.xlane.xlu0 %1373
    %v1375 = vmul.f32 %v1371, %v159
    %v1376 = vmul.f32 %v1374, %v159
    %v1377 = vsub.f32 %v1359, %v1375
    %v1378 = vsub.f32 %v1360, %v1376
    %v1379 = vmul.f32 %v1377, %v1377
    %v1380 = vmul.f32 %v1378, %v1378
    %1383 = vrot.lane.b32.xlu0 %v1379, 96
    %v1384 = vpop.permute.xlu0 %1383
    %1385 = vrot.lane.b32.xlu0 %v1380, 96
    %v1386 = vpop.permute.xlu0 %1385
    %v1389 = vsel %vm110, %v1384, 0.0
    %1390 = vadd.xlane.f32.xlu0 %v1389
    %v1391 = vpop.xlane.xlu0 %1390
    %v1392 = vsel %vm110, %v1386, 0.0
    %1393 = vadd.xlane.f32.xlu0 %v1392
    %v1394 = vpop.xlane.xlu0 %1393
    %v1395 = vmul.f32 %v1391, %v159
    %v1396 = vmul.f32 %v1394, %v159
    %v1397 = vadd.f32 %v1395, 1e-05
    %v1398 = vadd.f32 %v1396, 1e-05
    %v1399 = vrsqrt.pop %v1397
    %v1400 = vrsqrt.pop %v1398
    %v1401 = vmul.f32 %v1377, %v1399
    %v1402 = vmul.f32 %v1378, %v1400
    %v1403 = vlaneseq
    %v1404 = vshrl.u32 %v1403, 7
    %v1405 = vsub.s32 0, %v1404
    %v1406 = vrot.slane %v72, %v1405
    %1408 = vrot.lane.b32.xlu0 %v1406, 32
    %v1409 = vpop.permute.xlu0 %1408
    %v1411 = vmul.f32 %v1401, %v1409
    %v1412 = vmul.f32 %v1402, %v1409
    %v1413 = vlaneseq
    %v1414 = vshrl.u32 %v1413, 7
    %v1415 = vsub.s32 0, %v1414
    %v1416 = vrot.slane %v73, %v1415
    %1418 = vrot.lane.b32.xlu0 %v1416, 32
    %v1419 = vpop.permute.xlu0 %1418
    %v1421 = vadd.f32 %v1411, %v1419
    %v1422 = vadd.f32 %v1412, %v1419
    %v1423 = vlaneseq
    %v1424 = vshrl.u32 %v1423, 7
    %v1425 = vsub.s32 0, %v1424
    %v1426 = vrot.slane %v78, %v1425
    %1429 = vrot.lane.b32.xlu0 %v1421, 96
    %v1430 = vpop.permute.xlu0 %1429
    %1431 = vrot.lane.b32.xlu0 %v1422, 96
    %v1432 = vpop.permute.xlu0 %1431
    %v1433 = vsel %vm110, %v1430, 0
    %v1435 = vsel %vm110, %v1432, 0
    %1437 = vmatprep.subr.mxu0 0.0
    %1438 = vmatpush1.msra.mxu0 0.0
    %1439 = vmatprep.subr.mxu0 0.0
    %1440 = vmatpush1.msra.mxu0 0.0
    %1441 = vmatprep.subr.mxu0 0.0
    %1442 = vmatpush1.msra.mxu0 0.0
    %1443 = vmatprep.subr.mxu0 0.0
    %1444 = vmatpush1.msra.mxu0 0.0
    %1445 = vmatprep.subr.mxu0 0.0
    %1446 = vmatpush1.msra.mxu0 0.0
    %1447 = vmatprep.subr.mxu0 0.0
    %1448 = vmatpush1.msra.mxu0 0.0
    %1449 = vmatprep.subr.mxu0 0.0
    %1450 = vmatpush1.msra.mxu0 0.0
    %1451 = vmatprep.subr.mxu0 0.0
    %1452 = vmatpush1.msra.mxu0 0.0
    %1453 = vmatprep.subr.mxu0 0.0
    %1454 = vmatpush1.msra.mxu0 0.0
    %1455 = vmatprep.subr.mxu0 0.0
    %1456 = vmatpush1.msra.mxu0 0.0
    %1457 = vmatprep.subr.mxu0 0.0
    %1458 = vmatpush1.msra.mxu0 0.0
    %1459 = vmatprep.subr.mxu0 0.0
    %1460 = vmatpush1.msra.mxu0 0.0
    %1461 = vmatprep.subr.mxu0 0.0
    %1462 = vmatpush1.msra.mxu0 %v45
    %1463 = vmatprep.subr.mxu0 0.0
    %1464 = vmatpush1.msra.mxu0 %v44
    %1465 = vmatprep.subr.mxu0 0.0
    %1466 = vmatpush1.msra.mxu0 %v43
    %1467 = vmatprep.subr.mxu0 0.0
    %1468 = vmatpush1.msra.mxu0 %v42
    %1469 = vmatprep.subr.mxu0 0.0
    %1470 = vmatpush2.msra.mxu0 0.0
    %1471 = vmatprep.subr.mxu0 0.0
    %1472 = vmatpush2.msra.mxu0 0.0
    %1473 = vmatprep.subr.mxu0 0.0
    %1474 = vmatpush2.msra.mxu0 0.0
    %1475 = vmatprep.subr.mxu0 0.0
    %1476 = vmatpush2.msra.mxu0 0.0
    %1477 = vmatprep.subr.mxu0 0.0
    %1478 = vmatpush2.msra.mxu0 0.0
    %1479 = vmatprep.subr.mxu0 0.0
    %1480 = vmatpush2.msra.mxu0 0.0
    %1481 = vmatprep.subr.mxu0 0.0
    %1482 = vmatpush2.msra.mxu0 0.0
    %1483 = vmatprep.subr.mxu0 0.0
    %1484 = vmatpush2.msra.mxu0 0.0
    %1485 = vmatprep.subr.mxu0 0.0
    %1486 = vmatpush2.msra.mxu0 0.0
    %1487 = vmatprep.subr.mxu0 0.0
    %1488 = vmatpush2.msra.mxu0 0.0
    %1489 = vmatprep.subr.mxu0 0.0
    %1490 = vmatpush2.msra.mxu0 0.0
    %1491 = vmatprep.subr.mxu0 0.0
    %1492 = vmatpush2.msra.mxu0 0.0
    %1493 = vmatprep.subr.mxu0 0.0
    %1494 = vmatpush2.msra.mxu0 0.0
    %1495 = vmatprep.subr.mxu0 0.0
    %1496 = vmatpush2.msra.mxu0 0.0
    %1497 = vmatprep.subr.mxu0 0.0
    %1498 = vmatpush2.msra.mxu0 0.0
    %1499 = vmatprep.subr.mxu0 0.0
    %1500 = vmatpush2.msra.mxu0 0.0
    %1501 = vmatprep.mubr.f32.mxu0 0.0
    %1502 = vmatmul.mubr.f32.gmra.mxu0 %v1433
    %v1503 = vpop.f32.mrf.mxu0
    %v1504 = vadd.f32 %v1426, %v1503
    %v1505 = vpop.f32.mrf.mxu0
    %1506 = vmatprep.mubr.f32.mxu0 0.0
    %1507 = vmatmul.mubr.f32.gmra.mxu0 %v1435
    %v1508 = vpop.f32.mrf.mxu0
    %v1509 = vadd.f32 %v1426, %v1508
    %v1510 = vpop.f32.mrf.mxu0
    %1511 = vdwg.mxu0
    %v1512 = vmax.f32 %v1504, 0.0
    %v1513 = vmax.f32 %v1509, 0.0
    %1514 = vmatprep.subr.mxu0 0.0
    %1515 = vmatpush1.msra.mxu0 %v65
    %1516 = vmatprep.subr.mxu0 0.0
    %1517 = vmatpush1.msra.mxu0 %v64
    %1518 = vmatprep.subr.mxu0 0.0
    %1519 = vmatpush1.msra.mxu0 %v63
    %1520 = vmatprep.subr.mxu0 0.0
    %1521 = vmatpush1.msra.mxu0 %v62
    %1522 = vmatprep.subr.mxu0 0.0
    %1523 = vmatpush1.msra.mxu0 %v61
    %1524 = vmatprep.subr.mxu0 0.0
    %1525 = vmatpush1.msra.mxu0 %v60
    %1526 = vmatprep.subr.mxu0 0.0
    %1527 = vmatpush1.msra.mxu0 %v59
    %1528 = vmatprep.subr.mxu0 0.0
    %1529 = vmatpush1.msra.mxu0 %v58
    %1530 = vmatprep.subr.mxu0 0.0
    %1531 = vmatpush1.msra.mxu0 %v57
    %1532 = vmatprep.subr.mxu0 0.0
    %1533 = vmatpush1.msra.mxu0 %v56
    %1534 = vmatprep.subr.mxu0 0.0
    %1535 = vmatpush1.msra.mxu0 %v55
    %1536 = vmatprep.subr.mxu0 0.0
    %1537 = vmatpush1.msra.mxu0 %v54
    %1538 = vmatprep.subr.mxu0 0.0
    %1539 = vmatpush1.msra.mxu0 %v53
    %1540 = vmatprep.subr.mxu0 0.0
    %1541 = vmatpush1.msra.mxu0 %v52
    %1542 = vmatprep.subr.mxu0 0.0
    %1543 = vmatpush1.msra.mxu0 %v51
    %1544 = vmatprep.subr.mxu0 0.0
    %1545 = vmatpush1.msra.mxu0 %v50
    %1546 = vmatprep.subr.mxu0 0.0
    %1547 = vmatpush2.msra.mxu0 0.0
    %1548 = vmatprep.subr.mxu0 0.0
    %1549 = vmatpush2.msra.mxu0 0.0
    %1550 = vmatprep.subr.mxu0 0.0
    %1551 = vmatpush2.msra.mxu0 0.0
    %1552 = vmatprep.subr.mxu0 0.0
    %1553 = vmatpush2.msra.mxu0 0.0
    %1554 = vmatprep.subr.mxu0 0.0
    %1555 = vmatpush2.msra.mxu0 0.0
    %1556 = vmatprep.subr.mxu0 0.0
    %1557 = vmatpush2.msra.mxu0 0.0
    %1558 = vmatprep.subr.mxu0 0.0
    %1559 = vmatpush2.msra.mxu0 0.0
    %1560 = vmatprep.subr.mxu0 0.0
    %1561 = vmatpush2.msra.mxu0 0.0
    %1562 = vmatprep.subr.mxu0 0.0
    %1563 = vmatpush2.msra.mxu0 0.0
    %1564 = vmatprep.subr.mxu0 0.0
    %1565 = vmatpush2.msra.mxu0 0.0
    %1566 = vmatprep.subr.mxu0 0.0
    %1567 = vmatpush2.msra.mxu0 0.0
    %1568 = vmatprep.subr.mxu0 0.0
    %1569 = vmatpush2.msra.mxu0 0.0
    %1570 = vmatprep.subr.mxu0 0.0
    %1571 = vmatpush2.msra.mxu0 0.0
    %1572 = vmatprep.subr.mxu0 0.0
    %1573 = vmatpush2.msra.mxu0 0.0
    %1574 = vmatprep.subr.mxu0 0.0
    %1575 = vmatpush2.msra.mxu0 0.0
    %1576 = vmatprep.subr.mxu0 0.0
    %1577 = vmatpush2.msra.mxu0 0.0
    %1578 = vmatprep.mubr.f32.mxu0 0.0
    %1579 = vmatmul.mubr.f32.gmra.mxu0 %v1512
    %v1580 = vpop.f32.mrf.mxu0
    %v1581 = vadd.f32 0.0, %v1580
    %v1582 = vpop.f32.mrf.mxu0
    %1583 = vmatprep.mubr.f32.mxu0 0.0
    %1584 = vmatmul.mubr.f32.gmra.mxu0 %v1513
    %v1585 = vpop.f32.mrf.mxu0
    %v1586 = vadd.f32 0.0, %v1585
    %v1587 = vpop.f32.mrf.mxu0
    %1588 = vdwg.mxu0
    %1591 = vrot.lane.b32.xlu0 %v1581, 32
    %v1592 = vpop.permute.xlu0 %1591
    %1593 = vrot.lane.b32.xlu0 %v1586, 32
    %v1594 = vpop.permute.xlu0 %1593
    %v1597 = vadd.f32 %v1359, %v1592
    %v1598 = vadd.f32 %v1360, %v1594
    %v1599 = vlaneseq
    %v1600 = vshrl.u32 %v1599, 7
    %v1601 = vsub.s32 0, %v1600
    %v1602 = vrot.slane %v79, %v1601
    %1604 = vrot.lane.b32.xlu0 %v1602, 32
    %v1605 = vpop.permute.xlu0 %1604
    %v1607 = vadd.f32 %v1597, %v1605
    %v1608 = vadd.f32 %v1598, %v1605
    %1611 = vrot.lane.b32.xlu0 %v1607, 96
    %v1612 = vpop.permute.xlu0 %1611
    %1613 = vrot.lane.b32.xlu0 %v1608, 96
    %v1614 = vpop.permute.xlu0 %1613
    %v1617 = vsel %vm110, %v1612, 0.0
    %1618 = vadd.xlane.f32.xlu0 %v1617
    %v1619 = vpop.xlane.xlu0 %1618
    %v1620 = vsel %vm110, %v1614, 0.0
    %1621 = vadd.xlane.f32.xlu0 %v1620
    %v1622 = vpop.xlane.xlu0 %1621
    %v1623 = vmul.f32 %v1619, %v159
    %v1624 = vmul.f32 %v1622, %v159
    %v1625 = vsub.f32 %v1607, %v1623
    %v1626 = vsub.f32 %v1608, %v1624
    %v1627 = vmul.f32 %v1625, %v1625
    %v1628 = vmul.f32 %v1626, %v1626
    %1631 = vrot.lane.b32.xlu0 %v1627, 96
    %v1632 = vpop.permute.xlu0 %1631
    %1633 = vrot.lane.b32.xlu0 %v1628, 96
    %v1634 = vpop.permute.xlu0 %1633
    %v1637 = vsel %vm110, %v1632, 0.0
    %1638 = vadd.xlane.f32.xlu0 %v1637
    %v1639 = vpop.xlane.xlu0 %1638
    %v1640 = vsel %vm110, %v1634, 0.0
    %1641 = vadd.xlane.f32.xlu0 %v1640
    %v1642 = vpop.xlane.xlu0 %1641
    %v1643 = vmul.f32 %v1639, %v159
    %v1644 = vmul.f32 %v1642, %v159
    %v1645 = vadd.f32 %v1643, 1e-05
    %v1646 = vadd.f32 %v1644, 1e-05
    %v1647 = vrsqrt.pop %v1645
    %v1648 = vrsqrt.pop %v1646
    %v1649 = vmul.f32 %v1625, %v1647
    %v1650 = vmul.f32 %v1626, %v1648
    %1652 = vrot.lane.b32.xlu0 %v586, 32
    %v1653 = vpop.permute.xlu0 %1652
    %v1655 = vmul.f32 %v1649, %v1653
    %v1656 = vmul.f32 %v1650, %v1653
    %1658 = vrot.lane.b32.xlu0 %v592, 32
    %v1659 = vpop.permute.xlu0 %1658
    %v1661 = vadd.f32 %v1655, %v1659
    %v1662 = vadd.f32 %v1656, %v1659
    %1665 = vrot.lane.b32.xlu0 %v1661, 96
    %v1666 = vpop.permute.xlu0 %1665
    %1667 = vrot.lane.b32.xlu0 %v1662, 96
    %v1668 = vpop.permute.xlu0 %1667
    %v1669 = vsel %vm110, %v1666, 0
    %v1671 = vsel %vm110, %v1668, 0
    %1673 = vmatprep.subr.mxu0 0.0
    %1674 = vmatpush1.msra.mxu0 0.0
    %1675 = vmatprep.subr.mxu0 0.0
    %1676 = vmatpush1.msra.mxu0 0.0
    %1677 = vmatprep.subr.mxu0 0.0
    %1678 = vmatpush1.msra.mxu0 0.0
    %1679 = vmatprep.subr.mxu0 0.0
    %1680 = vmatpush1.msra.mxu0 0.0
    %1681 = vmatprep.subr.mxu0 0.0
    %1682 = vmatpush1.msra.mxu0 0.0
    %1683 = vmatprep.subr.mxu0 0.0
    %1684 = vmatpush1.msra.mxu0 0.0
    %1685 = vmatprep.subr.mxu0 0.0
    %1686 = vmatpush1.msra.mxu0 0.0
    %1687 = vmatprep.subr.mxu0 0.0
    %1688 = vmatpush1.msra.mxu0 0.0
    %1689 = vmatprep.subr.mxu0 0.0
    %1690 = vmatpush1.msra.mxu0 0.0
    %1691 = vmatprep.subr.mxu0 0.0
    %1692 = vmatpush1.msra.mxu0 0.0
    %1693 = vmatprep.subr.mxu0 0.0
    %1694 = vmatpush1.msra.mxu0 0.0
    %1695 = vmatprep.subr.mxu0 0.0
    %1696 = vmatpush1.msra.mxu0 0.0
    %1697 = vmatprep.subr.mxu0 0.0
    %1698 = vmatpush1.msra.mxu0 %v29
    %1699 = vmatprep.subr.mxu0 0.0
    %1700 = vmatpush1.msra.mxu0 %v28
    %1701 = vmatprep.subr.mxu0 0.0
    %1702 = vmatpush1.msra.mxu0 %v27
    %1703 = vmatprep.subr.mxu0 0.0
    %1704 = vmatpush1.msra.mxu0 %v26
    %1705 = vmatprep.subr.mxu0 0.0
    %1706 = vmatpush2.msra.mxu0 0.0
    %1707 = vmatprep.subr.mxu0 0.0
    %1708 = vmatpush2.msra.mxu0 0.0
    %1709 = vmatprep.subr.mxu0 0.0
    %1710 = vmatpush2.msra.mxu0 0.0
    %1711 = vmatprep.subr.mxu0 0.0
    %1712 = vmatpush2.msra.mxu0 0.0
    %1713 = vmatprep.subr.mxu0 0.0
    %1714 = vmatpush2.msra.mxu0 0.0
    %1715 = vmatprep.subr.mxu0 0.0
    %1716 = vmatpush2.msra.mxu0 0.0
    %1717 = vmatprep.subr.mxu0 0.0
    %1718 = vmatpush2.msra.mxu0 0.0
    %1719 = vmatprep.subr.mxu0 0.0
    %1720 = vmatpush2.msra.mxu0 0.0
    %1721 = vmatprep.subr.mxu0 0.0
    %1722 = vmatpush2.msra.mxu0 0.0
    %1723 = vmatprep.subr.mxu0 0.0
    %1724 = vmatpush2.msra.mxu0 0.0
    %1725 = vmatprep.subr.mxu0 0.0
    %1726 = vmatpush2.msra.mxu0 0.0
    %1727 = vmatprep.subr.mxu0 0.0
    %1728 = vmatpush2.msra.mxu0 0.0
    %1729 = vmatprep.subr.mxu0 0.0
    %1730 = vmatpush2.msra.mxu0 0.0
    %1731 = vmatprep.subr.mxu0 0.0
    %1732 = vmatpush2.msra.mxu0 0.0
    %1733 = vmatprep.subr.mxu0 0.0
    %1734 = vmatpush2.msra.mxu0 0.0
    %1735 = vmatprep.subr.mxu0 0.0
    %1736 = vmatpush2.msra.mxu0 0.0
    %1737 = vmatprep.mubr.f32.mxu0 0.0
    %1738 = vmatmul.mubr.f32.gmra.mxu0 %v1669
    %v1739 = vpop.f32.mrf.mxu0
    %v1740 = vadd.f32 %v598, %v1739
    %v1741 = vpop.f32.mrf.mxu0
    %1742 = vmatprep.mubr.f32.mxu0 0.0
    %1743 = vmatmul.mubr.f32.gmra.mxu0 %v1671
    %v1744 = vpop.f32.mrf.mxu0
    %v1745 = vadd.f32 %v598, %v1744
    %v1746 = vpop.f32.mrf.mxu0
    %1747 = vdwg.mxu0
    %v1749 = vsel %vm110, %v1740, 0
    %1751 = vmatprep.subr.mxu0 0.0
    %1752 = vmatpush1.xpose.msra.mxu0 0.0
    %1753 = vmatprep.subr.mxu0 0.0
    %1754 = vmatpush1.xpose.msra.mxu0 0.0
    %1755 = vmatprep.subr.mxu0 0.0
    %1756 = vmatpush1.xpose.msra.mxu0 0.0
    %1757 = vmatprep.subr.mxu0 0.0
    %1758 = vmatpush1.xpose.msra.mxu0 0.0
    %1759 = vmatprep.subr.mxu0 0.0
    %1760 = vmatpush1.xpose.msra.mxu0 0.0
    %1761 = vmatprep.subr.mxu0 0.0
    %1762 = vmatpush1.xpose.msra.mxu0 0.0
    %1763 = vmatprep.subr.mxu0 0.0
    %1764 = vmatpush1.xpose.msra.mxu0 0.0
    %1765 = vmatprep.subr.mxu0 0.0
    %1766 = vmatpush1.xpose.msra.mxu0 0.0
    %1767 = vmatprep.subr.mxu0 0.0
    %1768 = vmatpush1.xpose.msra.mxu0 %v705
    %1769 = vmatprep.subr.mxu0 0.0
    %1770 = vmatpush1.xpose.msra.mxu0 %v702
    %1771 = vmatprep.subr.mxu0 0.0
    %1772 = vmatpush1.xpose.msra.mxu0 %v699
    %1773 = vmatprep.subr.mxu0 0.0
    %1774 = vmatpush1.xpose.msra.mxu0 %v696
    %1775 = vmatprep.subr.mxu0 0.0
    %1776 = vmatpush1.xpose.msra.mxu0 %v693
    %1777 = vmatprep.subr.mxu0 0.0
    %1778 = vmatpush1.xpose.msra.mxu0 %v690
    %1779 = vmatprep.subr.mxu0 0.0
    %1780 = vmatpush1.xpose.msra.mxu0 %v687
    %1781 = vmatprep.subr.mxu0 0.0
    %1782 = vmatpush1.xpose.msra.mxu0 %v684
    %1783 = vmatprep.subr.mxu0 0.0
    %1784 = vmatpush2.xpose.msra.mxu0 0.0
    %1785 = vmatprep.subr.mxu0 0.0
    %1786 = vmatpush2.xpose.msra.mxu0 0.0
    %1787 = vmatprep.subr.mxu0 0.0
    %1788 = vmatpush2.xpose.msra.mxu0 0.0
    %1789 = vmatprep.subr.mxu0 0.0
    %1790 = vmatpush2.xpose.msra.mxu0 0.0
    %1791 = vmatprep.subr.mxu0 0.0
    %1792 = vmatpush2.xpose.msra.mxu0 0.0
    %1793 = vmatprep.subr.mxu0 0.0
    %1794 = vmatpush2.xpose.msra.mxu0 0.0
    %1795 = vmatprep.subr.mxu0 0.0
    %1796 = vmatpush2.xpose.msra.mxu0 0.0
    %1797 = vmatprep.subr.mxu0 0.0
    %1798 = vmatpush2.xpose.msra.mxu0 0.0
    %1799 = vmatprep.subr.mxu0 0.0
    %1800 = vmatpush2.xpose.msra.mxu0 0.0
    %1801 = vmatprep.subr.mxu0 0.0
    %1802 = vmatpush2.xpose.msra.mxu0 0.0
    %1803 = vmatprep.subr.mxu0 0.0
    %1804 = vmatpush2.xpose.msra.mxu0 0.0
    %1805 = vmatprep.subr.mxu0 0.0
    %1806 = vmatpush2.xpose.msra.mxu0 0.0
    %1807 = vmatprep.subr.mxu0 0.0
    %1808 = vmatpush2.xpose.msra.mxu0 0.0
    %1809 = vmatprep.subr.mxu0 0.0
    %1810 = vmatpush2.xpose.msra.mxu0 0.0
    %1811 = vmatprep.subr.mxu0 0.0
    %1812 = vmatpush2.xpose.msra.mxu0 0.0
    %1813 = vmatprep.subr.mxu0 0.0
    %1814 = vmatpush2.xpose.msra.mxu0 0.0
    %1815 = vmatprep.mubr.f32.mxu0 0.0
    %1816 = vmatmul.mubr.f32.gmra.mxu0 %v1749
    %v1817 = vpop.f32.mrf.mxu0
    %v1818 = vadd.f32 0.0, %v1817
    %v1819 = vpop.f32.mrf.mxu0
    %1820 = vdwg.mxu0
    %v1822 = vsel %vm110, %v1745, 0
    %1824 = vmatprep.subr.mxu0 0.0
    %1825 = vmatpush1.xpose.msra.mxu0 0.0
    %1826 = vmatprep.subr.mxu0 0.0
    %1827 = vmatpush1.xpose.msra.mxu0 0.0
    %1828 = vmatprep.subr.mxu0 0.0
    %1829 = vmatpush1.xpose.msra.mxu0 0.0
    %1830 = vmatprep.subr.mxu0 0.0
    %1831 = vmatpush1.xpose.msra.mxu0 0.0
    %1832 = vmatprep.subr.mxu0 0.0
    %1833 = vmatpush1.xpose.msra.mxu0 0.0
    %1834 = vmatprep.subr.mxu0 0.0
    %1835 = vmatpush1.xpose.msra.mxu0 0.0
    %1836 = vmatprep.subr.mxu0 0.0
    %1837 = vmatpush1.xpose.msra.mxu0 0.0
    %1838 = vmatprep.subr.mxu0 0.0
    %1839 = vmatpush1.xpose.msra.mxu0 0.0
    %1840 = vmatprep.subr.mxu0 0.0
    %1841 = vmatpush1.xpose.msra.mxu0 %v802
    %1842 = vmatprep.subr.mxu0 0.0
    %1843 = vmatpush1.xpose.msra.mxu0 %v799
    %1844 = vmatprep.subr.mxu0 0.0
    %1845 = vmatpush1.xpose.msra.mxu0 %v796
    %1846 = vmatprep.subr.mxu0 0.0
    %1847 = vmatpush1.xpose.msra.mxu0 %v793
    %1848 = vmatprep.subr.mxu0 0.0
    %1849 = vmatpush1.xpose.msra.mxu0 %v790
    %1850 = vmatprep.subr.mxu0 0.0
    %1851 = vmatpush1.xpose.msra.mxu0 %v787
    %1852 = vmatprep.subr.mxu0 0.0
    %1853 = vmatpush1.xpose.msra.mxu0 %v784
    %1854 = vmatprep.subr.mxu0 0.0
    %1855 = vmatpush1.xpose.msra.mxu0 %v781
    %1856 = vmatprep.subr.mxu0 0.0
    %1857 = vmatpush2.xpose.msra.mxu0 0.0
    %1858 = vmatprep.subr.mxu0 0.0
    %1859 = vmatpush2.xpose.msra.mxu0 0.0
    %1860 = vmatprep.subr.mxu0 0.0
    %1861 = vmatpush2.xpose.msra.mxu0 0.0
    %1862 = vmatprep.subr.mxu0 0.0
    %1863 = vmatpush2.xpose.msra.mxu0 0.0
    %1864 = vmatprep.subr.mxu0 0.0
    %1865 = vmatpush2.xpose.msra.mxu0 0.0
    %1866 = vmatprep.subr.mxu0 0.0
    %1867 = vmatpush2.xpose.msra.mxu0 0.0
    %1868 = vmatprep.subr.mxu0 0.0
    %1869 = vmatpush2.xpose.msra.mxu0 0.0
    %1870 = vmatprep.subr.mxu0 0.0
    %1871 = vmatpush2.xpose.msra.mxu0 0.0
    %1872 = vmatprep.subr.mxu0 0.0
    %1873 = vmatpush2.xpose.msra.mxu0 0.0
    %1874 = vmatprep.subr.mxu0 0.0
    %1875 = vmatpush2.xpose.msra.mxu0 0.0
    %1876 = vmatprep.subr.mxu0 0.0
    %1877 = vmatpush2.xpose.msra.mxu0 0.0
    %1878 = vmatprep.subr.mxu0 0.0
    %1879 = vmatpush2.xpose.msra.mxu0 0.0
    %1880 = vmatprep.subr.mxu0 0.0
    %1881 = vmatpush2.xpose.msra.mxu0 0.0
    %1882 = vmatprep.subr.mxu0 0.0
    %1883 = vmatpush2.xpose.msra.mxu0 0.0
    %1884 = vmatprep.subr.mxu0 0.0
    %1885 = vmatpush2.xpose.msra.mxu0 0.0
    %1886 = vmatprep.subr.mxu0 0.0
    %1887 = vmatpush2.xpose.msra.mxu0 0.0
    %1888 = vmatprep.mubr.f32.mxu0 0.0
    %1889 = vmatmul.mubr.f32.gmra.mxu0 %v1822
    %v1890 = vpop.f32.mrf.mxu0
    %v1891 = vadd.f32 0.0, %v1890
    %v1892 = vpop.f32.mrf.mxu0
    %1893 = vdwg.mxu0
    %v1894 = vmul.f32 %v1818, 0.17677669
    %v1895 = vmul.f32 %v1891, 0.17677669
    %v1896 = vsel %vm876, %v1894, -inf
    %v1897 = vrot.slane %v1896, 4
    %v1898 = vmax.f32 %v1896, %v1897
    %v1899 = vrot.slane %v1898, 2
    %v1900 = vmax.f32 %v1898, %v1899
    %v1901 = vrot.slane %v1900, 1
    %v1902 = vmax.f32 %v1900, %v1901
    %v1903 = vsel %vm876, %v1895, -inf
    %v1904 = vrot.slane %v1903, 4
    %v1905 = vmax.f32 %v1903, %v1904
    %v1906 = vrot.slane %v1905, 2
    %v1907 = vmax.f32 %v1905, %v1906
    %v1908 = vrot.slane %v1907, 1
    %v1909 = vmax.f32 %v1907, %v1908
    %v1910 = vsub.f32 %v1894, %v1902
    %v1911 = vsub.f32 %v1895, %v1909
    %v1912 = vmul.f32 %v1910, 1.442695
    %v1913 = vpow.pop %v1912
    %v1914 = vmul.f32 %v1911, 1.442695
    %v1915 = vpow.pop %v1914
    %v1916 = vsel %vm876, %v1913, 0.0
    %v1917 = vrot.slane %v1916, 4
    %v1918 = vadd.f32 %v1916, %v1917
    %v1919 = vrot.slane %v1918, 2
    %v1920 = vadd.f32 %v1918, %v1919
    %v1921 = vrot.slane %v1920, 1
    %v1922 = vadd.f32 %v1920, %v1921
    %v1923 = vsel %vm876, %v1915, 0.0
    %v1924 = vrot.slane %v1923, 4
    %v1925 = vadd.f32 %v1923, %v1924
    %v1926 = vrot.slane %v1925, 2
    %v1927 = vadd.f32 %v1925, %v1926
    %v1928 = vrot.slane %v1927, 1
    %v1929 = vadd.f32 %v1927, %v1928
    %v1930 = vrcp.pop %v1922
    %v1931 = vrcp.pop %v1929
    %v1932 = vmul.f32 %v1922, %v1930
    %v1933 = vmul.f32 %v1929, %v1931
    %v1934 = vsub.f32 2.0, %v1932
    %v1935 = vsub.f32 2.0, %v1933
    %v1936 = vmul.f32 %v1930, %v1934
    %v1937 = vmul.f32 %v1931, %v1935
    %v1938 = vmul.f32 %v1913, %v1936
    %v1939 = vmul.f32 %v1915, %v1937
    %v1940 = vadd.f32 %v1938, 1e-08
    %v1941 = vadd.f32 %v1939, 1e-08
    %v1942 = vsel %vm876, %v1940, 0.0
    %1943 = vadd.xlane.f32.xlu0 %v1942
    %v1944 = vpop.xlane.xlu0 %1943
    %v1945 = vsel %vm876, %v1941, 0.0
    %1946 = vadd.xlane.f32.xlu0 %v1945
    %v1947 = vpop.xlane.xlu0 %1946
    %v1948 = vrcp.pop %v1944
    %v1949 = vrcp.pop %v1947
    %v1950 = vmul.f32 %v1944, %v1948
    %v1951 = vmul.f32 %v1947, %v1949
    %v1952 = vsub.f32 2.0, %v1950
    %v1953 = vsub.f32 2.0, %v1951
    %v1954 = vmul.f32 %v1948, %v1952
    %v1955 = vmul.f32 %v1949, %v1953
    %v1956 = vmul.f32 %v1940, %v1954
    %v1957 = vmul.f32 %v1941, %v1955
    %v1959 = vsel %vm876, %v1956, 0
    %1961 = vmatprep.subr.mxu0 0.0
    %1962 = vmatpush1.msra.mxu0 0.0
    %1963 = vmatprep.subr.mxu0 0.0
    %1964 = vmatpush1.msra.mxu0 0.0
    %1965 = vmatprep.subr.mxu0 0.0
    %1966 = vmatpush1.msra.mxu0 0.0
    %1967 = vmatprep.subr.mxu0 0.0
    %1968 = vmatpush1.msra.mxu0 0.0
    %1969 = vmatprep.subr.mxu0 0.0
    %1970 = vmatpush1.msra.mxu0 0.0
    %1971 = vmatprep.subr.mxu0 0.0
    %1972 = vmatpush1.msra.mxu0 0.0
    %1973 = vmatprep.subr.mxu0 0.0
    %1974 = vmatpush1.msra.mxu0 0.0
    %1975 = vmatprep.subr.mxu0 0.0
    %1976 = vmatpush1.msra.mxu0 0.0
    %1977 = vmatprep.subr.mxu0 0.0
    %1978 = vmatpush1.msra.mxu0 %v954
    %1979 = vmatprep.subr.mxu0 0.0
    %1980 = vmatpush1.msra.mxu0 %v952
    %1981 = vmatprep.subr.mxu0 0.0
    %1982 = vmatpush1.msra.mxu0 %v950
    %1983 = vmatprep.subr.mxu0 0.0
    %1984 = vmatpush1.msra.mxu0 %v948
    %1985 = vmatprep.subr.mxu0 0.0
    %1986 = vmatpush1.msra.mxu0 %v946
    %1987 = vmatprep.subr.mxu0 0.0
    %1988 = vmatpush1.msra.mxu0 %v944
    %1989 = vmatprep.subr.mxu0 0.0
    %1990 = vmatpush1.msra.mxu0 %v942
    %1991 = vmatprep.subr.mxu0 0.0
    %1992 = vmatpush1.msra.mxu0 %v940
    %1993 = vmatprep.subr.mxu0 0.0
    %1994 = vmatpush2.msra.mxu0 0.0
    %1995 = vmatprep.subr.mxu0 0.0
    %1996 = vmatpush2.msra.mxu0 0.0
    %1997 = vmatprep.subr.mxu0 0.0
    %1998 = vmatpush2.msra.mxu0 0.0
    %1999 = vmatprep.subr.mxu0 0.0
    %2000 = vmatpush2.msra.mxu0 0.0
    %2001 = vmatprep.subr.mxu0 0.0
    %2002 = vmatpush2.msra.mxu0 0.0
    %2003 = vmatprep.subr.mxu0 0.0
    %2004 = vmatpush2.msra.mxu0 0.0
    %2005 = vmatprep.subr.mxu0 0.0
    %2006 = vmatpush2.msra.mxu0 0.0
    %2007 = vmatprep.subr.mxu0 0.0
    %2008 = vmatpush2.msra.mxu0 0.0
    %2009 = vmatprep.subr.mxu0 0.0
    %2010 = vmatpush2.msra.mxu0 0.0
    %2011 = vmatprep.subr.mxu0 0.0
    %2012 = vmatpush2.msra.mxu0 0.0
    %2013 = vmatprep.subr.mxu0 0.0
    %2014 = vmatpush2.msra.mxu0 0.0
    %2015 = vmatprep.subr.mxu0 0.0
    %2016 = vmatpush2.msra.mxu0 0.0
    %2017 = vmatprep.subr.mxu0 0.0
    %2018 = vmatpush2.msra.mxu0 0.0
    %2019 = vmatprep.subr.mxu0 0.0
    %2020 = vmatpush2.msra.mxu0 0.0
    %2021 = vmatprep.subr.mxu0 0.0
    %2022 = vmatpush2.msra.mxu0 0.0
    %2023 = vmatprep.subr.mxu0 0.0
    %2024 = vmatpush2.msra.mxu0 0.0
    %2025 = vmatprep.mubr.f32.mxu0 0.0
    %2026 = vmatmul.mubr.f32.gmra.mxu0 %v1959
    %v2027 = vpop.f32.mrf.mxu0
    %v2028 = vadd.f32 0.0, %v2027
    %v2029 = vpop.f32.mrf.mxu0
    %2030 = vdwg.mxu0
    %v2032 = vsel %vm876, %v1957, 0
    %2034 = vmatprep.subr.mxu0 0.0
    %2035 = vmatpush1.msra.mxu0 0.0
    %2036 = vmatprep.subr.mxu0 0.0
    %2037 = vmatpush1.msra.mxu0 0.0
    %2038 = vmatprep.subr.mxu0 0.0
    %2039 = vmatpush1.msra.mxu0 0.0
    %2040 = vmatprep.subr.mxu0 0.0
    %2041 = vmatpush1.msra.mxu0 0.0
    %2042 = vmatprep.subr.mxu0 0.0
    %2043 = vmatpush1.msra.mxu0 0.0
    %2044 = vmatprep.subr.mxu0 0.0
    %2045 = vmatpush1.msra.mxu0 0.0
    %2046 = vmatprep.subr.mxu0 0.0
    %2047 = vmatpush1.msra.mxu0 0.0
    %2048 = vmatprep.subr.mxu0 0.0
    %2049 = vmatpush1.msra.mxu0 0.0
    %2050 = vmatprep.subr.mxu0 0.0
    %2051 = vmatpush1.msra.mxu0 %v1051
    %2052 = vmatprep.subr.mxu0 0.0
    %2053 = vmatpush1.msra.mxu0 %v1049
    %2054 = vmatprep.subr.mxu0 0.0
    %2055 = vmatpush1.msra.mxu0 %v1047
    %2056 = vmatprep.subr.mxu0 0.0
    %2057 = vmatpush1.msra.mxu0 %v1045
    %2058 = vmatprep.subr.mxu0 0.0
    %2059 = vmatpush1.msra.mxu0 %v1043
    %2060 = vmatprep.subr.mxu0 0.0
    %2061 = vmatpush1.msra.mxu0 %v1041
    %2062 = vmatprep.subr.mxu0 0.0
    %2063 = vmatpush1.msra.mxu0 %v1039
    %2064 = vmatprep.subr.mxu0 0.0
    %2065 = vmatpush1.msra.mxu0 %v1037
    %2066 = vmatprep.subr.mxu0 0.0
    %2067 = vmatpush2.msra.mxu0 0.0
    %2068 = vmatprep.subr.mxu0 0.0
    %2069 = vmatpush2.msra.mxu0 0.0
    %2070 = vmatprep.subr.mxu0 0.0
    %2071 = vmatpush2.msra.mxu0 0.0
    %2072 = vmatprep.subr.mxu0 0.0
    %2073 = vmatpush2.msra.mxu0 0.0
    %2074 = vmatprep.subr.mxu0 0.0
    %2075 = vmatpush2.msra.mxu0 0.0
    %2076 = vmatprep.subr.mxu0 0.0
    %2077 = vmatpush2.msra.mxu0 0.0
    %2078 = vmatprep.subr.mxu0 0.0
    %2079 = vmatpush2.msra.mxu0 0.0
    %2080 = vmatprep.subr.mxu0 0.0
    %2081 = vmatpush2.msra.mxu0 0.0
    %2082 = vmatprep.subr.mxu0 0.0
    %2083 = vmatpush2.msra.mxu0 0.0
    %2084 = vmatprep.subr.mxu0 0.0
    %2085 = vmatpush2.msra.mxu0 0.0
    %2086 = vmatprep.subr.mxu0 0.0
    %2087 = vmatpush2.msra.mxu0 0.0
    %2088 = vmatprep.subr.mxu0 0.0
    %2089 = vmatpush2.msra.mxu0 0.0
    %2090 = vmatprep.subr.mxu0 0.0
    %2091 = vmatpush2.msra.mxu0 0.0
    %2092 = vmatprep.subr.mxu0 0.0
    %2093 = vmatpush2.msra.mxu0 0.0
    %2094 = vmatprep.subr.mxu0 0.0
    %2095 = vmatpush2.msra.mxu0 0.0
    %2096 = vmatprep.subr.mxu0 0.0
    %2097 = vmatpush2.msra.mxu0 0.0
    %2098 = vmatprep.mubr.f32.mxu0 0.0
    %2099 = vmatmul.mubr.f32.gmra.mxu0 %v2032
    %v2100 = vpop.f32.mrf.mxu0
    %v2101 = vadd.f32 0.0, %v2100
    %v2102 = vpop.f32.mrf.mxu0
    %2103 = vdwg.mxu0
    %v2105 = vsel %vm110, %v2028, 0
    %v2108 = vsel %vm110, %v2101, 0
    %2110 = vmatprep.subr.mxu0 0.0
    %2111 = vmatpush1.msra.mxu0 0.0
    %2112 = vmatprep.subr.mxu0 0.0
    %2113 = vmatpush1.msra.mxu0 0.0
    %2114 = vmatprep.subr.mxu0 0.0
    %2115 = vmatpush1.msra.mxu0 0.0
    %2116 = vmatprep.subr.mxu0 0.0
    %2117 = vmatpush1.msra.mxu0 0.0
    %2118 = vmatprep.subr.mxu0 0.0
    %2119 = vmatpush1.msra.mxu0 0.0
    %2120 = vmatprep.subr.mxu0 0.0
    %2121 = vmatpush1.msra.mxu0 0.0
    %2122 = vmatprep.subr.mxu0 0.0
    %2123 = vmatpush1.msra.mxu0 0.0
    %2124 = vmatprep.subr.mxu0 0.0
    %2125 = vmatpush1.msra.mxu0 0.0
    %2126 = vmatprep.subr.mxu0 0.0
    %2127 = vmatpush1.msra.mxu0 0.0
    %2128 = vmatprep.subr.mxu0 0.0
    %2129 = vmatpush1.msra.mxu0 0.0
    %2130 = vmatprep.subr.mxu0 0.0
    %2131 = vmatpush1.msra.mxu0 0.0
    %2132 = vmatprep.subr.mxu0 0.0
    %2133 = vmatpush1.msra.mxu0 0.0
    %2134 = vmatprep.subr.mxu0 0.0
    %2135 = vmatpush1.msra.mxu0 %v37
    %2136 = vmatprep.subr.mxu0 0.0
    %2137 = vmatpush1.msra.mxu0 %v36
    %2138 = vmatprep.subr.mxu0 0.0
    %2139 = vmatpush1.msra.mxu0 %v35
    %2140 = vmatprep.subr.mxu0 0.0
    %2141 = vmatpush1.msra.mxu0 %v34
    %2142 = vmatprep.subr.mxu0 0.0
    %2143 = vmatpush2.msra.mxu0 0.0
    %2144 = vmatprep.subr.mxu0 0.0
    %2145 = vmatpush2.msra.mxu0 0.0
    %2146 = vmatprep.subr.mxu0 0.0
    %2147 = vmatpush2.msra.mxu0 0.0
    %2148 = vmatprep.subr.mxu0 0.0
    %2149 = vmatpush2.msra.mxu0 0.0
    %2150 = vmatprep.subr.mxu0 0.0
    %2151 = vmatpush2.msra.mxu0 0.0
    %2152 = vmatprep.subr.mxu0 0.0
    %2153 = vmatpush2.msra.mxu0 0.0
    %2154 = vmatprep.subr.mxu0 0.0
    %2155 = vmatpush2.msra.mxu0 0.0
    %2156 = vmatprep.subr.mxu0 0.0
    %2157 = vmatpush2.msra.mxu0 0.0
    %2158 = vmatprep.subr.mxu0 0.0
    %2159 = vmatpush2.msra.mxu0 0.0
    %2160 = vmatprep.subr.mxu0 0.0
    %2161 = vmatpush2.msra.mxu0 0.0
    %2162 = vmatprep.subr.mxu0 0.0
    %2163 = vmatpush2.msra.mxu0 0.0
    %2164 = vmatprep.subr.mxu0 0.0
    %2165 = vmatpush2.msra.mxu0 0.0
    %2166 = vmatprep.subr.mxu0 0.0
    %2167 = vmatpush2.msra.mxu0 0.0
    %2168 = vmatprep.subr.mxu0 0.0
    %2169 = vmatpush2.msra.mxu0 0.0
    %2170 = vmatprep.subr.mxu0 0.0
    %2171 = vmatpush2.msra.mxu0 0.0
    %2172 = vmatprep.subr.mxu0 0.0
    %2173 = vmatpush2.msra.mxu0 0.0
    %2174 = vmatprep.mubr.f32.mxu0 0.0
    %2175 = vmatmul.mubr.f32.gmra.mxu0 %v2105
    %v2176 = vpop.f32.mrf.mxu0
    %v2177 = vadd.f32 %v1136, %v2176
    %v2178 = vpop.f32.mrf.mxu0
    %2179 = vmatprep.mubr.f32.mxu0 0.0
    %2180 = vmatmul.mubr.f32.gmra.mxu0 %v2108
    %v2181 = vpop.f32.mrf.mxu0
    %v2182 = vadd.f32 %v1136, %v2181
    %v2183 = vpop.f32.mrf.mxu0
    %2184 = vdwg.mxu0
    %v2185 = vsel %vm110, %v1612, 0
    %v2187 = vsel %vm110, %v1614, 0
    %2189 = vmatprep.subr.mxu0 0.0
    %2190 = vmatpush1.msra.mxu0 0.0
    %2191 = vmatprep.subr.mxu0 0.0
    %2192 = vmatpush1.msra.mxu0 0.0
    %2193 = vmatprep.subr.mxu0 0.0
    %2194 = vmatpush1.msra.mxu0 0.0
    %2195 = vmatprep.subr.mxu0 0.0
    %2196 = vmatpush1.msra.mxu0 0.0
    %2197 = vmatprep.subr.mxu0 0.0
    %2198 = vmatpush1.msra.mxu0 0.0
    %2199 = vmatprep.subr.mxu0 0.0
    %2200 = vmatpush1.msra.mxu0 0.0
    %2201 = vmatprep.subr.mxu0 0.0
    %2202 = vmatpush1.msra.mxu0 0.0
    %2203 = vmatprep.subr.mxu0 0.0
    %2204 = vmatpush1.msra.mxu0 0.0
    %2205 = vmatprep.subr.mxu0 0.0
    %2206 = vmatpush1.msra.mxu0 0.0
    %2207 = vmatprep.subr.mxu0 0.0
    %2208 = vmatpush1.msra.mxu0 0.0
    %2209 = vmatprep.subr.mxu0 0.0
    %2210 = vmatpush1.msra.mxu0 0.0
    %2211 = vmatprep.subr.mxu0 0.0
    %2212 = vmatpush1.msra.mxu0 0.0
    %2213 = vmatprep.subr.mxu0 0.0
    %2214 = vmatpush1.msra.mxu0 %v41
    %2215 = vmatprep.subr.mxu0 0.0
    %2216 = vmatpush1.msra.mxu0 %v40
    %2217 = vmatprep.subr.mxu0 0.0
    %2218 = vmatpush1.msra.mxu0 %v39
    %2219 = vmatprep.subr.mxu0 0.0
    %2220 = vmatpush1.msra.mxu0 %v38
    %2221 = vmatprep.subr.mxu0 0.0
    %2222 = vmatpush2.msra.mxu0 0.0
    %2223 = vmatprep.subr.mxu0 0.0
    %2224 = vmatpush2.msra.mxu0 0.0
    %2225 = vmatprep.subr.mxu0 0.0
    %2226 = vmatpush2.msra.mxu0 0.0
    %2227 = vmatprep.subr.mxu0 0.0
    %2228 = vmatpush2.msra.mxu0 0.0
    %2229 = vmatprep.subr.mxu0 0.0
    %2230 = vmatpush2.msra.mxu0 0.0
    %2231 = vmatprep.subr.mxu0 0.0
    %2232 = vmatpush2.msra.mxu0 0.0
    %2233 = vmatprep.subr.mxu0 0.0
    %2234 = vmatpush2.msra.mxu0 0.0
    %2235 = vmatprep.subr.mxu0 0.0
    %2236 = vmatpush2.msra.mxu0 0.0
    %2237 = vmatprep.subr.mxu0 0.0
    %2238 = vmatpush2.msra.mxu0 0.0
    %2239 = vmatprep.subr.mxu0 0.0
    %2240 = vmatpush2.msra.mxu0 0.0
    %2241 = vmatprep.subr.mxu0 0.0
    %2242 = vmatpush2.msra.mxu0 0.0
    %2243 = vmatprep.subr.mxu0 0.0
    %2244 = vmatpush2.msra.mxu0 0.0
    %2245 = vmatprep.subr.mxu0 0.0
    %2246 = vmatpush2.msra.mxu0 0.0
    %2247 = vmatprep.subr.mxu0 0.0
    %2248 = vmatpush2.msra.mxu0 0.0
    %2249 = vmatprep.subr.mxu0 0.0
    %2250 = vmatpush2.msra.mxu0 0.0
    %2251 = vmatprep.subr.mxu0 0.0
    %2252 = vmatpush2.msra.mxu0 0.0
    %2253 = vmatprep.mubr.f32.mxu0 0.0
    %2254 = vmatmul.mubr.f32.gmra.mxu0 %v2185
    %v2255 = vpop.f32.mrf.mxu0
    %v2256 = vadd.f32 %v1221, %v2255
    %v2257 = vpop.f32.mrf.mxu0
    %2258 = vmatprep.mubr.f32.mxu0 0.0
    %2259 = vmatmul.mubr.f32.gmra.mxu0 %v2187
    %v2260 = vpop.f32.mrf.mxu0
    %v2261 = vadd.f32 %v1221, %v2260
    %v2262 = vpop.f32.mrf.mxu0
    %2263 = vdwg.mxu0
    %v2264 = vadd.f32 %v2177, %v2256
    %v2265 = vadd.f32 %v2182, %v2261
    %v2266 = vxor.u32 %v2264, 2147483648
    %v2267 = vxor.u32 %v2265, 2147483648
    %v2268 = vmul.f32 %v2266, 1.442695
    %v2269 = vpow.pop %v2268
    %v2270 = vmul.f32 %v2267, 1.442695
    %v2271 = vpow.pop %v2270
    %v2272 = vadd.f32 %v2269, 1.0
    %v2273 = vadd.f32 %v2271, 1.0
    %v2274 = vrcp.pop %v2272
    %v2275 = vmul.f32 1.0, %v2274
    %v2276 = vrcp.pop %v2273
    %v2277 = vmul.f32 1.0, %v2276
    %2280 = vrot.lane.b32.xlu0 %v2256, 64
    %v2281 = vpop.permute.xlu0 %2280
    %2282 = vrot.lane.b32.xlu0 %v2261, 64
    %v2283 = vpop.permute.xlu0 %2282
    %v2286 = vmul.f32 %v2275, %v2281
    %v2287 = vmul.f32 %v2277, %v2283
    %2290 = vrot.lane.b32.xlu0 %v2286, 64
    %v2291 = vpop.permute.xlu0 %2290
    %2292 = vrot.lane.b32.xlu0 %v2287, 64
    %v2293 = vpop.permute.xlu0 %2292
    %v2296 = vadd.f32 %v2177, %v2291
    %v2297 = vadd.f32 %v2182, %v2293
    %v2298 = vtanh.pop %v2296
    %v2299 = vtanh.pop %v2297
    %v2300 = vsub.f32 1.0, %v2275
    %v2301 = vsub.f32 1.0, %v2277
    %2304 = vrot.lane.b32.xlu0 %v2298, 96
    %v2305 = vpop.permute.xlu0 %2304
    %2306 = vrot.lane.b32.xlu0 %v2299, 96
    %v2307 = vpop.permute.xlu0 %2306
    %v2310 = vmul.f32 %v2300, %v2305
    %v2311 = vmul.f32 %v2301, %v2307
    %v2312 = vmul.f32 %v2275, %v1607
    %v2313 = vmul.f32 %v2277, %v1608
    %v2314 = vadd.f32 %v2310, %v2312
    %v2315 = vadd.f32 %v2311, %v2313
    %2318 = vrot.lane.b32.xlu0 %v2314, 96
    %v2319 = vpop.permute.xlu0 %2318
    %2320 = vrot.lane.b32.xlu0 %v2315, 96
    %v2321 = vpop.permute.xlu0 %2320
    %v2324 = vsel %vm110, %v2319, 0.0
    %2325 = vadd.xlane.f32.xlu0 %v2324
    %v2326 = vpop.xlane.xlu0 %2325
    %v2327 = vsel %vm110, %v2321, 0.0
    %2328 = vadd.xlane.f32.xlu0 %v2327
    %v2329 = vpop.xlane.xlu0 %2328
    %v2330 = vmul.f32 %v2326, %v159
    %v2331 = vmul.f32 %v2329, %v159
    %v2332 = vsub.f32 %v2314, %v2330
    %v2333 = vsub.f32 %v2315, %v2331
    %v2334 = vmul.f32 %v2332, %v2332
    %v2335 = vmul.f32 %v2333, %v2333
    %2338 = vrot.lane.b32.xlu0 %v2334, 96
    %v2339 = vpop.permute.xlu0 %2338
    %2340 = vrot.lane.b32.xlu0 %v2335, 96
    %v2341 = vpop.permute.xlu0 %2340
    %v2344 = vsel %vm110, %v2339, 0.0
    %2345 = vadd.xlane.f32.xlu0 %v2344
    %v2346 = vpop.xlane.xlu0 %2345
    %v2347 = vsel %vm110, %v2341, 0.0
    %2348 = vadd.xlane.f32.xlu0 %v2347
    %v2349 = vpop.xlane.xlu0 %2348
    %v2350 = vmul.f32 %v2346, %v159
    %v2351 = vmul.f32 %v2349, %v159
    %v2352 = vadd.f32 %v2350, 1e-05
    %v2353 = vadd.f32 %v2351, 1e-05
    %v2354 = vrsqrt.pop %v2352
    %v2355 = vrsqrt.pop %v2353
    %v2356 = vmul.f32 %v2332, %v2354
    %v2357 = vmul.f32 %v2333, %v2355
    %v2358 = vmul.f32 %v2356, %v1409
    %v2359 = vmul.f32 %v2357, %v1409
    %v2360 = vadd.f32 %v2358, %v1419
    %v2361 = vadd.f32 %v2359, %v1419
    %2364 = vrot.lane.b32.xlu0 %v2360, 96
    %v2365 = vpop.permute.xlu0 %2364
    %2366 = vrot.lane.b32.xlu0 %v2361, 96
    %v2367 = vpop.permute.xlu0 %2366
    %v2368 = vsel %vm110, %v2365, 0
    %v2370 = vsel %vm110, %v2367, 0
    %2372 = vmatprep.subr.mxu0 0.0
    %2373 = vmatpush1.msra.mxu0 0.0
    %2374 = vmatprep.subr.mxu0 0.0
    %2375 = vmatpush1.msra.mxu0 0.0
    %2376 = vmatprep.subr.mxu0 0.0
    %2377 = vmatpush1.msra.mxu0 0.0
    %2378 = vmatprep.subr.mxu0 0.0
    %2379 = vmatpush1.msra.mxu0 0.0
    %2380 = vmatprep.subr.mxu0 0.0
    %2381 = vmatpush1.msra.mxu0 0.0
    %2382 = vmatprep.subr.mxu0 0.0
    %2383 = vmatpush1.msra.mxu0 0.0
    %2384 = vmatprep.subr.mxu0 0.0
    %2385 = vmatpush1.msra.mxu0 0.0
    %2386 = vmatprep.subr.mxu0 0.0
    %2387 = vmatpush1.msra.mxu0 0.0
    %2388 = vmatprep.subr.mxu0 0.0
    %2389 = vmatpush1.msra.mxu0 0.0
    %2390 = vmatprep.subr.mxu0 0.0
    %2391 = vmatpush1.msra.mxu0 0.0
    %2392 = vmatprep.subr.mxu0 0.0
    %2393 = vmatpush1.msra.mxu0 0.0
    %2394 = vmatprep.subr.mxu0 0.0
    %2395 = vmatpush1.msra.mxu0 0.0
    %2396 = vmatprep.subr.mxu0 0.0
    %2397 = vmatpush1.msra.mxu0 %v45
    %2398 = vmatprep.subr.mxu0 0.0
    %2399 = vmatpush1.msra.mxu0 %v44
    %2400 = vmatprep.subr.mxu0 0.0
    %2401 = vmatpush1.msra.mxu0 %v43
    %2402 = vmatprep.subr.mxu0 0.0
    %2403 = vmatpush1.msra.mxu0 %v42
    %2404 = vmatprep.subr.mxu0 0.0
    %2405 = vmatpush2.msra.mxu0 0.0
    %2406 = vmatprep.subr.mxu0 0.0
    %2407 = vmatpush2.msra.mxu0 0.0
    %2408 = vmatprep.subr.mxu0 0.0
    %2409 = vmatpush2.msra.mxu0 0.0
    %2410 = vmatprep.subr.mxu0 0.0
    %2411 = vmatpush2.msra.mxu0 0.0
    %2412 = vmatprep.subr.mxu0 0.0
    %2413 = vmatpush2.msra.mxu0 0.0
    %2414 = vmatprep.subr.mxu0 0.0
    %2415 = vmatpush2.msra.mxu0 0.0
    %2416 = vmatprep.subr.mxu0 0.0
    %2417 = vmatpush2.msra.mxu0 0.0
    %2418 = vmatprep.subr.mxu0 0.0
    %2419 = vmatpush2.msra.mxu0 0.0
    %2420 = vmatprep.subr.mxu0 0.0
    %2421 = vmatpush2.msra.mxu0 0.0
    %2422 = vmatprep.subr.mxu0 0.0
    %2423 = vmatpush2.msra.mxu0 0.0
    %2424 = vmatprep.subr.mxu0 0.0
    %2425 = vmatpush2.msra.mxu0 0.0
    %2426 = vmatprep.subr.mxu0 0.0
    %2427 = vmatpush2.msra.mxu0 0.0
    %2428 = vmatprep.subr.mxu0 0.0
    %2429 = vmatpush2.msra.mxu0 0.0
    %2430 = vmatprep.subr.mxu0 0.0
    %2431 = vmatpush2.msra.mxu0 0.0
    %2432 = vmatprep.subr.mxu0 0.0
    %2433 = vmatpush2.msra.mxu0 0.0
    %2434 = vmatprep.subr.mxu0 0.0
    %2435 = vmatpush2.msra.mxu0 0.0
    %2436 = vmatprep.mubr.f32.mxu0 0.0
    %2437 = vmatmul.mubr.f32.gmra.mxu0 %v2368
    %v2438 = vpop.f32.mrf.mxu0
    %v2439 = vadd.f32 %v1426, %v2438
    %v2440 = vpop.f32.mrf.mxu0
    %2441 = vmatprep.mubr.f32.mxu0 0.0
    %2442 = vmatmul.mubr.f32.gmra.mxu0 %v2370
    %v2443 = vpop.f32.mrf.mxu0
    %v2444 = vadd.f32 %v1426, %v2443
    %v2445 = vpop.f32.mrf.mxu0
    %2446 = vdwg.mxu0
    %v2447 = vmax.f32 %v2439, 0.0
    %v2448 = vmax.f32 %v2444, 0.0
    %2449 = vmatprep.subr.mxu0 0.0
    %2450 = vmatpush1.msra.mxu0 %v65
    %2451 = vmatprep.subr.mxu0 0.0
    %2452 = vmatpush1.msra.mxu0 %v64
    %2453 = vmatprep.subr.mxu0 0.0
    %2454 = vmatpush1.msra.mxu0 %v63
    %2455 = vmatprep.subr.mxu0 0.0
    %2456 = vmatpush1.msra.mxu0 %v62
    %2457 = vmatprep.subr.mxu0 0.0
    %2458 = vmatpush1.msra.mxu0 %v61
    %2459 = vmatprep.subr.mxu0 0.0
    %2460 = vmatpush1.msra.mxu0 %v60
    %2461 = vmatprep.subr.mxu0 0.0
    %2462 = vmatpush1.msra.mxu0 %v59
    %2463 = vmatprep.subr.mxu0 0.0
    %2464 = vmatpush1.msra.mxu0 %v58
    %2465 = vmatprep.subr.mxu0 0.0
    %2466 = vmatpush1.msra.mxu0 %v57
    %2467 = vmatprep.subr.mxu0 0.0
    %2468 = vmatpush1.msra.mxu0 %v56
    %2469 = vmatprep.subr.mxu0 0.0
    %2470 = vmatpush1.msra.mxu0 %v55
    %2471 = vmatprep.subr.mxu0 0.0
    %2472 = vmatpush1.msra.mxu0 %v54
    %2473 = vmatprep.subr.mxu0 0.0
    %2474 = vmatpush1.msra.mxu0 %v53
    %2475 = vmatprep.subr.mxu0 0.0
    %2476 = vmatpush1.msra.mxu0 %v52
    %2477 = vmatprep.subr.mxu0 0.0
    %2478 = vmatpush1.msra.mxu0 %v51
    %2479 = vmatprep.subr.mxu0 0.0
    %2480 = vmatpush1.msra.mxu0 %v50
    %2481 = vmatprep.subr.mxu0 0.0
    %2482 = vmatpush2.msra.mxu0 0.0
    %2483 = vmatprep.subr.mxu0 0.0
    %2484 = vmatpush2.msra.mxu0 0.0
    %2485 = vmatprep.subr.mxu0 0.0
    %2486 = vmatpush2.msra.mxu0 0.0
    %2487 = vmatprep.subr.mxu0 0.0
    %2488 = vmatpush2.msra.mxu0 0.0
    %2489 = vmatprep.subr.mxu0 0.0
    %2490 = vmatpush2.msra.mxu0 0.0
    %2491 = vmatprep.subr.mxu0 0.0
    %2492 = vmatpush2.msra.mxu0 0.0
    %2493 = vmatprep.subr.mxu0 0.0
    %2494 = vmatpush2.msra.mxu0 0.0
    %2495 = vmatprep.subr.mxu0 0.0
    %2496 = vmatpush2.msra.mxu0 0.0
    %2497 = vmatprep.subr.mxu0 0.0
    %2498 = vmatpush2.msra.mxu0 0.0
    %2499 = vmatprep.subr.mxu0 0.0
    %2500 = vmatpush2.msra.mxu0 0.0
    %2501 = vmatprep.subr.mxu0 0.0
    %2502 = vmatpush2.msra.mxu0 0.0
    %2503 = vmatprep.subr.mxu0 0.0
    %2504 = vmatpush2.msra.mxu0 0.0
    %2505 = vmatprep.subr.mxu0 0.0
    %2506 = vmatpush2.msra.mxu0 0.0
    %2507 = vmatprep.subr.mxu0 0.0
    %2508 = vmatpush2.msra.mxu0 0.0
    %2509 = vmatprep.subr.mxu0 0.0
    %2510 = vmatpush2.msra.mxu0 0.0
    %2511 = vmatprep.subr.mxu0 0.0
    %2512 = vmatpush2.msra.mxu0 0.0
    %2513 = vmatprep.mubr.f32.mxu0 0.0
    %2514 = vmatmul.mubr.f32.gmra.mxu0 %v2447
    %v2515 = vpop.f32.mrf.mxu0
    %v2516 = vadd.f32 0.0, %v2515
    %v2517 = vpop.f32.mrf.mxu0
    %2518 = vmatprep.mubr.f32.mxu0 0.0
    %2519 = vmatmul.mubr.f32.gmra.mxu0 %v2448
    %v2520 = vpop.f32.mrf.mxu0
    %v2521 = vadd.f32 0.0, %v2520
    %v2522 = vpop.f32.mrf.mxu0
    %2523 = vdwg.mxu0
    %2526 = vrot.lane.b32.xlu0 %v2516, 32
    %v2527 = vpop.permute.xlu0 %2526
    %2528 = vrot.lane.b32.xlu0 %v2521, 32
    %v2529 = vpop.permute.xlu0 %2528
    %v2532 = vadd.f32 %v2314, %v2527
    %v2533 = vadd.f32 %v2315, %v2529
    %v2534 = vadd.f32 %v2532, %v1605
    %v2535 = vadd.f32 %v2533, %v1605
    %2538 = vrot.lane.b32.xlu0 %v2534, 96
    %v2539 = vpop.permute.xlu0 %2538
    %2540 = vrot.lane.b32.xlu0 %v2535, 96
    %v2541 = vpop.permute.xlu0 %2540
    %v2544 = vsel %vm110, %v2539, 0.0
    %2545 = vadd.xlane.f32.xlu0 %v2544
    %v2546 = vpop.xlane.xlu0 %2545
    %v2547 = vsel %vm110, %v2541, 0.0
    %2548 = vadd.xlane.f32.xlu0 %v2547
    %v2549 = vpop.xlane.xlu0 %2548
    %v2550 = vmul.f32 %v2546, %v159
    %v2551 = vmul.f32 %v2549, %v159
    %v2552 = vsub.f32 %v2534, %v2550
    %v2553 = vsub.f32 %v2535, %v2551
    %v2554 = vmul.f32 %v2552, %v2552
    %v2555 = vmul.f32 %v2553, %v2553
    %2558 = vrot.lane.b32.xlu0 %v2554, 96
    %v2559 = vpop.permute.xlu0 %2558
    %2560 = vrot.lane.b32.xlu0 %v2555, 96
    %v2561 = vpop.permute.xlu0 %2560
    %v2564 = vsel %vm110, %v2559, 0.0
    %2565 = vadd.xlane.f32.xlu0 %v2564
    %v2566 = vpop.xlane.xlu0 %2565
    %v2567 = vsel %vm110, %v2561, 0.0
    %2568 = vadd.xlane.f32.xlu0 %v2567
    %v2569 = vpop.xlane.xlu0 %2568
    %v2570 = vmul.f32 %v2566, %v159
    %v2571 = vmul.f32 %v2569, %v159
    %v2572 = vadd.f32 %v2570, 1e-05
    %v2573 = vadd.f32 %v2571, 1e-05
    %v2574 = vrsqrt.pop %v2572
    %v2575 = vrsqrt.pop %v2573
    %v2576 = vmul.f32 %v2552, %v2574
    %v2577 = vmul.f32 %v2553, %v2575
    %v2578 = vmul.f32 %v2576, %v1653
    %v2579 = vmul.f32 %v2577, %v1653
    %v2580 = vadd.f32 %v2578, %v1659
    %v2581 = vadd.f32 %v2579, %v1659
    %2584 = vrot.lane.b32.xlu0 %v2580, 96
    %v2585 = vpop.permute.xlu0 %2584
    %2586 = vrot.lane.b32.xlu0 %v2581, 96
    %v2587 = vpop.permute.xlu0 %2586
    %v2588 = vsel %vm110, %v2585, 0
    %v2590 = vsel %vm110, %v2587, 0
    %2592 = vmatprep.subr.mxu0 0.0
    %2593 = vmatpush1.msra.mxu0 0.0
    %2594 = vmatprep.subr.mxu0 0.0
    %2595 = vmatpush1.msra.mxu0 0.0
    %2596 = vmatprep.subr.mxu0 0.0
    %2597 = vmatpush1.msra.mxu0 0.0
    %2598 = vmatprep.subr.mxu0 0.0
    %2599 = vmatpush1.msra.mxu0 0.0
    %2600 = vmatprep.subr.mxu0 0.0
    %2601 = vmatpush1.msra.mxu0 0.0
    %2602 = vmatprep.subr.mxu0 0.0
    %2603 = vmatpush1.msra.mxu0 0.0
    %2604 = vmatprep.subr.mxu0 0.0
    %2605 = vmatpush1.msra.mxu0 0.0
    %2606 = vmatprep.subr.mxu0 0.0
    %2607 = vmatpush1.msra.mxu0 0.0
    %2608 = vmatprep.subr.mxu0 0.0
    %2609 = vmatpush1.msra.mxu0 0.0
    %2610 = vmatprep.subr.mxu0 0.0
    %2611 = vmatpush1.msra.mxu0 0.0
    %2612 = vmatprep.subr.mxu0 0.0
    %2613 = vmatpush1.msra.mxu0 0.0
    %2614 = vmatprep.subr.mxu0 0.0
    %2615 = vmatpush1.msra.mxu0 0.0
    %2616 = vmatprep.subr.mxu0 0.0
    %2617 = vmatpush1.msra.mxu0 %v29
    %2618 = vmatprep.subr.mxu0 0.0
    %2619 = vmatpush1.msra.mxu0 %v28
    %2620 = vmatprep.subr.mxu0 0.0
    %2621 = vmatpush1.msra.mxu0 %v27
    %2622 = vmatprep.subr.mxu0 0.0
    %2623 = vmatpush1.msra.mxu0 %v26
    %2624 = vmatprep.subr.mxu0 0.0
    %2625 = vmatpush2.msra.mxu0 0.0
    %2626 = vmatprep.subr.mxu0 0.0
    %2627 = vmatpush2.msra.mxu0 0.0
    %2628 = vmatprep.subr.mxu0 0.0
    %2629 = vmatpush2.msra.mxu0 0.0
    %2630 = vmatprep.subr.mxu0 0.0
    %2631 = vmatpush2.msra.mxu0 0.0
    %2632 = vmatprep.subr.mxu0 0.0
    %2633 = vmatpush2.msra.mxu0 0.0
    %2634 = vmatprep.subr.mxu0 0.0
    %2635 = vmatpush2.msra.mxu0 0.0
    %2636 = vmatprep.subr.mxu0 0.0
    %2637 = vmatpush2.msra.mxu0 0.0
    %2638 = vmatprep.subr.mxu0 0.0
    %2639 = vmatpush2.msra.mxu0 0.0
    %2640 = vmatprep.subr.mxu0 0.0
    %2641 = vmatpush2.msra.mxu0 0.0
    %2642 = vmatprep.subr.mxu0 0.0
    %2643 = vmatpush2.msra.mxu0 0.0
    %2644 = vmatprep.subr.mxu0 0.0
    %2645 = vmatpush2.msra.mxu0 0.0
    %2646 = vmatprep.subr.mxu0 0.0
    %2647 = vmatpush2.msra.mxu0 0.0
    %2648 = vmatprep.subr.mxu0 0.0
    %2649 = vmatpush2.msra.mxu0 0.0
    %2650 = vmatprep.subr.mxu0 0.0
    %2651 = vmatpush2.msra.mxu0 0.0
    %2652 = vmatprep.subr.mxu0 0.0
    %2653 = vmatpush2.msra.mxu0 0.0
    %2654 = vmatprep.subr.mxu0 0.0
    %2655 = vmatpush2.msra.mxu0 0.0
    %2656 = vmatprep.mubr.f32.mxu0 0.0
    %2657 = vmatmul.mubr.f32.gmra.mxu0 %v2588
    %v2658 = vpop.f32.mrf.mxu0
    %v2659 = vadd.f32 %v598, %v2658
    %v2660 = vpop.f32.mrf.mxu0
    %2661 = vmatprep.mubr.f32.mxu0 0.0
    %2662 = vmatmul.mubr.f32.gmra.mxu0 %v2590
    %v2663 = vpop.f32.mrf.mxu0
    %v2664 = vadd.f32 %v598, %v2663
    %v2665 = vpop.f32.mrf.mxu0
    %2666 = vdwg.mxu0
    %v2668 = vsel %vm110, %v2659, 0
    %2670 = vmatprep.subr.mxu0 0.0
    %2671 = vmatpush1.xpose.msra.mxu0 0.0
    %2672 = vmatprep.subr.mxu0 0.0
    %2673 = vmatpush1.xpose.msra.mxu0 0.0
    %2674 = vmatprep.subr.mxu0 0.0
    %2675 = vmatpush1.xpose.msra.mxu0 0.0
    %2676 = vmatprep.subr.mxu0 0.0
    %2677 = vmatpush1.xpose.msra.mxu0 0.0
    %2678 = vmatprep.subr.mxu0 0.0
    %2679 = vmatpush1.xpose.msra.mxu0 0.0
    %2680 = vmatprep.subr.mxu0 0.0
    %2681 = vmatpush1.xpose.msra.mxu0 0.0
    %2682 = vmatprep.subr.mxu0 0.0
    %2683 = vmatpush1.xpose.msra.mxu0 0.0
    %2684 = vmatprep.subr.mxu0 0.0
    %2685 = vmatpush1.xpose.msra.mxu0 0.0
    %2686 = vmatprep.subr.mxu0 0.0
    %2687 = vmatpush1.xpose.msra.mxu0 %v705
    %2688 = vmatprep.subr.mxu0 0.0
    %2689 = vmatpush1.xpose.msra.mxu0 %v702
    %2690 = vmatprep.subr.mxu0 0.0
    %2691 = vmatpush1.xpose.msra.mxu0 %v699
    %2692 = vmatprep.subr.mxu0 0.0
    %2693 = vmatpush1.xpose.msra.mxu0 %v696
    %2694 = vmatprep.subr.mxu0 0.0
    %2695 = vmatpush1.xpose.msra.mxu0 %v693
    %2696 = vmatprep.subr.mxu0 0.0
    %2697 = vmatpush1.xpose.msra.mxu0 %v690
    %2698 = vmatprep.subr.mxu0 0.0
    %2699 = vmatpush1.xpose.msra.mxu0 %v687
    %2700 = vmatprep.subr.mxu0 0.0
    %2701 = vmatpush1.xpose.msra.mxu0 %v684
    %2702 = vmatprep.subr.mxu0 0.0
    %2703 = vmatpush2.xpose.msra.mxu0 0.0
    %2704 = vmatprep.subr.mxu0 0.0
    %2705 = vmatpush2.xpose.msra.mxu0 0.0
    %2706 = vmatprep.subr.mxu0 0.0
    %2707 = vmatpush2.xpose.msra.mxu0 0.0
    %2708 = vmatprep.subr.mxu0 0.0
    %2709 = vmatpush2.xpose.msra.mxu0 0.0
    %2710 = vmatprep.subr.mxu0 0.0
    %2711 = vmatpush2.xpose.msra.mxu0 0.0
    %2712 = vmatprep.subr.mxu0 0.0
    %2713 = vmatpush2.xpose.msra.mxu0 0.0
    %2714 = vmatprep.subr.mxu0 0.0
    %2715 = vmatpush2.xpose.msra.mxu0 0.0
    %2716 = vmatprep.subr.mxu0 0.0
    %2717 = vmatpush2.xpose.msra.mxu0 0.0
    %2718 = vmatprep.subr.mxu0 0.0
    %2719 = vmatpush2.xpose.msra.mxu0 0.0
    %2720 = vmatprep.subr.mxu0 0.0
    %2721 = vmatpush2.xpose.msra.mxu0 0.0
    %2722 = vmatprep.subr.mxu0 0.0
    %2723 = vmatpush2.xpose.msra.mxu0 0.0
    %2724 = vmatprep.subr.mxu0 0.0
    %2725 = vmatpush2.xpose.msra.mxu0 0.0
    %2726 = vmatprep.subr.mxu0 0.0
    %2727 = vmatpush2.xpose.msra.mxu0 0.0
    %2728 = vmatprep.subr.mxu0 0.0
    %2729 = vmatpush2.xpose.msra.mxu0 0.0
    %2730 = vmatprep.subr.mxu0 0.0
    %2731 = vmatpush2.xpose.msra.mxu0 0.0
    %2732 = vmatprep.subr.mxu0 0.0
    %2733 = vmatpush2.xpose.msra.mxu0 0.0
    %2734 = vmatprep.mubr.f32.mxu0 0.0
    %2735 = vmatmul.mubr.f32.gmra.mxu0 %v2668
    %v2736 = vpop.f32.mrf.mxu0
    %v2737 = vadd.f32 0.0, %v2736
    %v2738 = vpop.f32.mrf.mxu0
    %2739 = vdwg.mxu0
    %v2741 = vsel %vm110, %v2664, 0
    %2743 = vmatprep.subr.mxu0 0.0
    %2744 = vmatpush1.xpose.msra.mxu0 0.0
    %2745 = vmatprep.subr.mxu0 0.0
    %2746 = vmatpush1.xpose.msra.mxu0 0.0
    %2747 = vmatprep.subr.mxu0 0.0
    %2748 = vmatpush1.xpose.msra.mxu0 0.0
    %2749 = vmatprep.subr.mxu0 0.0
    %2750 = vmatpush1.xpose.msra.mxu0 0.0
    %2751 = vmatprep.subr.mxu0 0.0
    %2752 = vmatpush1.xpose.msra.mxu0 0.0
    %2753 = vmatprep.subr.mxu0 0.0
    %2754 = vmatpush1.xpose.msra.mxu0 0.0
    %2755 = vmatprep.subr.mxu0 0.0
    %2756 = vmatpush1.xpose.msra.mxu0 0.0
    %2757 = vmatprep.subr.mxu0 0.0
    %2758 = vmatpush1.xpose.msra.mxu0 0.0
    %2759 = vmatprep.subr.mxu0 0.0
    %2760 = vmatpush1.xpose.msra.mxu0 %v802
    %2761 = vmatprep.subr.mxu0 0.0
    %2762 = vmatpush1.xpose.msra.mxu0 %v799
    %2763 = vmatprep.subr.mxu0 0.0
    %2764 = vmatpush1.xpose.msra.mxu0 %v796
    %2765 = vmatprep.subr.mxu0 0.0
    %2766 = vmatpush1.xpose.msra.mxu0 %v793
    %2767 = vmatprep.subr.mxu0 0.0
    %2768 = vmatpush1.xpose.msra.mxu0 %v790
    %2769 = vmatprep.subr.mxu0 0.0
    %2770 = vmatpush1.xpose.msra.mxu0 %v787
    %2771 = vmatprep.subr.mxu0 0.0
    %2772 = vmatpush1.xpose.msra.mxu0 %v784
    %2773 = vmatprep.subr.mxu0 0.0
    %2774 = vmatpush1.xpose.msra.mxu0 %v781
    %2775 = vmatprep.subr.mxu0 0.0
    %2776 = vmatpush2.xpose.msra.mxu0 0.0
    %2777 = vmatprep.subr.mxu0 0.0
    %2778 = vmatpush2.xpose.msra.mxu0 0.0
    %2779 = vmatprep.subr.mxu0 0.0
    %2780 = vmatpush2.xpose.msra.mxu0 0.0
    %2781 = vmatprep.subr.mxu0 0.0
    %2782 = vmatpush2.xpose.msra.mxu0 0.0
    %2783 = vmatprep.subr.mxu0 0.0
    %2784 = vmatpush2.xpose.msra.mxu0 0.0
    %2785 = vmatprep.subr.mxu0 0.0
    %2786 = vmatpush2.xpose.msra.mxu0 0.0
    %2787 = vmatprep.subr.mxu0 0.0
    %2788 = vmatpush2.xpose.msra.mxu0 0.0
    %2789 = vmatprep.subr.mxu0 0.0
    %2790 = vmatpush2.xpose.msra.mxu0 0.0
    %2791 = vmatprep.subr.mxu0 0.0
    %2792 = vmatpush2.xpose.msra.mxu0 0.0
    %2793 = vmatprep.subr.mxu0 0.0
    %2794 = vmatpush2.xpose.msra.mxu0 0.0
    %2795 = vmatprep.subr.mxu0 0.0
    %2796 = vmatpush2.xpose.msra.mxu0 0.0
    %2797 = vmatprep.subr.mxu0 0.0
    %2798 = vmatpush2.xpose.msra.mxu0 0.0
    %2799 = vmatprep.subr.mxu0 0.0
    %2800 = vmatpush2.xpose.msra.mxu0 0.0
    %2801 = vmatprep.subr.mxu0 0.0
    %2802 = vmatpush2.xpose.msra.mxu0 0.0
    %2803 = vmatprep.subr.mxu0 0.0
    %2804 = vmatpush2.xpose.msra.mxu0 0.0
    %2805 = vmatprep.subr.mxu0 0.0
    %2806 = vmatpush2.xpose.msra.mxu0 0.0
    %2807 = vmatprep.mubr.f32.mxu0 0.0
    %2808 = vmatmul.mubr.f32.gmra.mxu0 %v2741
    %v2809 = vpop.f32.mrf.mxu0
    %v2810 = vadd.f32 0.0, %v2809
    %v2811 = vpop.f32.mrf.mxu0
    %2812 = vdwg.mxu0
    %v2813 = vmul.f32 %v2737, 0.17677669
    %v2814 = vmul.f32 %v2810, 0.17677669
    %v2815 = vsel %vm876, %v2813, -inf
    %v2816 = vrot.slane %v2815, 4
    %v2817 = vmax.f32 %v2815, %v2816
    %v2818 = vrot.slane %v2817, 2
    %v2819 = vmax.f32 %v2817, %v2818
    %v2820 = vrot.slane %v2819, 1
    %v2821 = vmax.f32 %v2819, %v2820
    %v2822 = vsel %vm876, %v2814, -inf
    %v2823 = vrot.slane %v2822, 4
    %v2824 = vmax.f32 %v2822, %v2823
    %v2825 = vrot.slane %v2824, 2
    %v2826 = vmax.f32 %v2824, %v2825
    %v2827 = vrot.slane %v2826, 1
    %v2828 = vmax.f32 %v2826, %v2827
    %v2829 = vsub.f32 %v2813, %v2821
    %v2830 = vsub.f32 %v2814, %v2828
    %v2831 = vmul.f32 %v2829, 1.442695
    %v2832 = vpow.pop %v2831
    %v2833 = vmul.f32 %v2830, 1.442695
    %v2834 = vpow.pop %v2833
    %v2835 = vsel %vm876, %v2832, 0.0
    %v2836 = vrot.slane %v2835, 4
    %v2837 = vadd.f32 %v2835, %v2836
    %v2838 = vrot.slane %v2837, 2
    %v2839 = vadd.f32 %v2837, %v2838
    %v2840 = vrot.slane %v2839, 1
    %v2841 = vadd.f32 %v2839, %v2840
    %v2842 = vsel %vm876, %v2834, 0.0
    %v2843 = vrot.slane %v2842, 4
    %v2844 = vadd.f32 %v2842, %v2843
    %v2845 = vrot.slane %v2844, 2
    %v2846 = vadd.f32 %v2844, %v2845
    %v2847 = vrot.slane %v2846, 1
    %v2848 = vadd.f32 %v2846, %v2847
    %v2849 = vrcp.pop %v2841
    %v2850 = vrcp.pop %v2848
    %v2851 = vmul.f32 %v2841, %v2849
    %v2852 = vmul.f32 %v2848, %v2850
    %v2853 = vsub.f32 2.0, %v2851
    %v2854 = vsub.f32 2.0, %v2852
    %v2855 = vmul.f32 %v2849, %v2853
    %v2856 = vmul.f32 %v2850, %v2854
    %v2857 = vmul.f32 %v2832, %v2855
    %v2858 = vmul.f32 %v2834, %v2856
    %v2859 = vadd.f32 %v2857, 1e-08
    %v2860 = vadd.f32 %v2858, 1e-08
    %v2861 = vsel %vm876, %v2859, 0.0
    %2862 = vadd.xlane.f32.xlu0 %v2861
    %v2863 = vpop.xlane.xlu0 %2862
    %v2864 = vsel %vm876, %v2860, 0.0
    %2865 = vadd.xlane.f32.xlu0 %v2864
    %v2866 = vpop.xlane.xlu0 %2865
    %v2867 = vrcp.pop %v2863
    %v2868 = vrcp.pop %v2866
    %v2869 = vmul.f32 %v2863, %v2867
    %v2870 = vmul.f32 %v2866, %v2868
    %v2871 = vsub.f32 2.0, %v2869
    %v2872 = vsub.f32 2.0, %v2870
    %v2873 = vmul.f32 %v2867, %v2871
    %v2874 = vmul.f32 %v2868, %v2872
    %v2875 = vmul.f32 %v2859, %v2873
    %v2876 = vmul.f32 %v2860, %v2874
    %v2878 = vsel %vm876, %v2875, 0
    %2880 = vmatprep.subr.mxu0 0.0
    %2881 = vmatpush1.msra.mxu0 0.0
    %2882 = vmatprep.subr.mxu0 0.0
    %2883 = vmatpush1.msra.mxu0 0.0
    %2884 = vmatprep.subr.mxu0 0.0
    %2885 = vmatpush1.msra.mxu0 0.0
    %2886 = vmatprep.subr.mxu0 0.0
    %2887 = vmatpush1.msra.mxu0 0.0
    %2888 = vmatprep.subr.mxu0 0.0
    %2889 = vmatpush1.msra.mxu0 0.0
    %2890 = vmatprep.subr.mxu0 0.0
    %2891 = vmatpush1.msra.mxu0 0.0
    %2892 = vmatprep.subr.mxu0 0.0
    %2893 = vmatpush1.msra.mxu0 0.0
    %2894 = vmatprep.subr.mxu0 0.0
    %2895 = vmatpush1.msra.mxu0 0.0
    %2896 = vmatprep.subr.mxu0 0.0
    %2897 = vmatpush1.msra.mxu0 %v954
    %2898 = vmatprep.subr.mxu0 0.0
    %2899 = vmatpush1.msra.mxu0 %v952
    %2900 = vmatprep.subr.mxu0 0.0
    %2901 = vmatpush1.msra.mxu0 %v950
    %2902 = vmatprep.subr.mxu0 0.0
    %2903 = vmatpush1.msra.mxu0 %v948
    %2904 = vmatprep.subr.mxu0 0.0
    %2905 = vmatpush1.msra.mxu0 %v946
    %2906 = vmatprep.subr.mxu0 0.0
    %2907 = vmatpush1.msra.mxu0 %v944
    %2908 = vmatprep.subr.mxu0 0.0
    %2909 = vmatpush1.msra.mxu0 %v942
    %2910 = vmatprep.subr.mxu0 0.0
    %2911 = vmatpush1.msra.mxu0 %v940
    %2912 = vmatprep.subr.mxu0 0.0
    %2913 = vmatpush2.msra.mxu0 0.0
    %2914 = vmatprep.subr.mxu0 0.0
    %2915 = vmatpush2.msra.mxu0 0.0
    %2916 = vmatprep.subr.mxu0 0.0
    %2917 = vmatpush2.msra.mxu0 0.0
    %2918 = vmatprep.subr.mxu0 0.0
    %2919 = vmatpush2.msra.mxu0 0.0
    %2920 = vmatprep.subr.mxu0 0.0
    %2921 = vmatpush2.msra.mxu0 0.0
    %2922 = vmatprep.subr.mxu0 0.0
    %2923 = vmatpush2.msra.mxu0 0.0
    %2924 = vmatprep.subr.mxu0 0.0
    %2925 = vmatpush2.msra.mxu0 0.0
    %2926 = vmatprep.subr.mxu0 0.0
    %2927 = vmatpush2.msra.mxu0 0.0
    %2928 = vmatprep.subr.mxu0 0.0
    %2929 = vmatpush2.msra.mxu0 0.0
    %2930 = vmatprep.subr.mxu0 0.0
    %2931 = vmatpush2.msra.mxu0 0.0
    %2932 = vmatprep.subr.mxu0 0.0
    %2933 = vmatpush2.msra.mxu0 0.0
    %2934 = vmatprep.subr.mxu0 0.0
    %2935 = vmatpush2.msra.mxu0 0.0
    %2936 = vmatprep.subr.mxu0 0.0
    %2937 = vmatpush2.msra.mxu0 0.0
    %2938 = vmatprep.subr.mxu0 0.0
    %2939 = vmatpush2.msra.mxu0 0.0
    %2940 = vmatprep.subr.mxu0 0.0
    %2941 = vmatpush2.msra.mxu0 0.0
    %2942 = vmatprep.subr.mxu0 0.0
    %2943 = vmatpush2.msra.mxu0 0.0
    %2944 = vmatprep.mubr.f32.mxu0 0.0
    %2945 = vmatmul.mubr.f32.gmra.mxu0 %v2878
    %v2946 = vpop.f32.mrf.mxu0
    %v2947 = vadd.f32 0.0, %v2946
    %v2948 = vpop.f32.mrf.mxu0
    %2949 = vdwg.mxu0
    %v2951 = vsel %vm876, %v2876, 0
    %2953 = vmatprep.subr.mxu0 0.0
    %2954 = vmatpush1.msra.mxu0 0.0
    %2955 = vmatprep.subr.mxu0 0.0
    %2956 = vmatpush1.msra.mxu0 0.0
    %2957 = vmatprep.subr.mxu0 0.0
    %2958 = vmatpush1.msra.mxu0 0.0
    %2959 = vmatprep.subr.mxu0 0.0
    %2960 = vmatpush1.msra.mxu0 0.0
    %2961 = vmatprep.subr.mxu0 0.0
    %2962 = vmatpush1.msra.mxu0 0.0
    %2963 = vmatprep.subr.mxu0 0.0
    %2964 = vmatpush1.msra.mxu0 0.0
    %2965 = vmatprep.subr.mxu0 0.0
    %2966 = vmatpush1.msra.mxu0 0.0
    %2967 = vmatprep.subr.mxu0 0.0
    %2968 = vmatpush1.msra.mxu0 0.0
    %2969 = vmatprep.subr.mxu0 0.0
    %2970 = vmatpush1.msra.mxu0 %v1051
    %2971 = vmatprep.subr.mxu0 0.0
    %2972 = vmatpush1.msra.mxu0 %v1049
    %2973 = vmatprep.subr.mxu0 0.0
    %2974 = vmatpush1.msra.mxu0 %v1047
    %2975 = vmatprep.subr.mxu0 0.0
    %2976 = vmatpush1.msra.mxu0 %v1045
    %2977 = vmatprep.subr.mxu0 0.0
    %2978 = vmatpush1.msra.mxu0 %v1043
    %2979 = vmatprep.subr.mxu0 0.0
    %2980 = vmatpush1.msra.mxu0 %v1041
    %2981 = vmatprep.subr.mxu0 0.0
    %2982 = vmatpush1.msra.mxu0 %v1039
    %2983 = vmatprep.subr.mxu0 0.0
    %2984 = vmatpush1.msra.mxu0 %v1037
    %2985 = vmatprep.subr.mxu0 0.0
    %2986 = vmatpush2.msra.mxu0 0.0
    %2987 = vmatprep.subr.mxu0 0.0
    %2988 = vmatpush2.msra.mxu0 0.0
    %2989 = vmatprep.subr.mxu0 0.0
    %2990 = vmatpush2.msra.mxu0 0.0
    %2991 = vmatprep.subr.mxu0 0.0
    %2992 = vmatpush2.msra.mxu0 0.0
    %2993 = vmatprep.subr.mxu0 0.0
    %2994 = vmatpush2.msra.mxu0 0.0
    %2995 = vmatprep.subr.mxu0 0.0
    %2996 = vmatpush2.msra.mxu0 0.0
    %2997 = vmatprep.subr.mxu0 0.0
    %2998 = vmatpush2.msra.mxu0 0.0
    %2999 = vmatprep.subr.mxu0 0.0
    %3000 = vmatpush2.msra.mxu0 0.0
    %3001 = vmatprep.subr.mxu0 0.0
    %3002 = vmatpush2.msra.mxu0 0.0
    %3003 = vmatprep.subr.mxu0 0.0
    %3004 = vmatpush2.msra.mxu0 0.0
    %3005 = vmatprep.subr.mxu0 0.0
    %3006 = vmatpush2.msra.mxu0 0.0
    %3007 = vmatprep.subr.mxu0 0.0
    %3008 = vmatpush2.msra.mxu0 0.0
    %3009 = vmatprep.subr.mxu0 0.0
    %3010 = vmatpush2.msra.mxu0 0.0
    %3011 = vmatprep.subr.mxu0 0.0
    %3012 = vmatpush2.msra.mxu0 0.0
    %3013 = vmatprep.subr.mxu0 0.0
    %3014 = vmatpush2.msra.mxu0 0.0
    %3015 = vmatprep.subr.mxu0 0.0
    %3016 = vmatpush2.msra.mxu0 0.0
    %3017 = vmatprep.mubr.f32.mxu0 0.0
    %3018 = vmatmul.mubr.f32.gmra.mxu0 %v2951
    %v3019 = vpop.f32.mrf.mxu0
    %v3020 = vadd.f32 0.0, %v3019
    %v3021 = vpop.f32.mrf.mxu0
    %3022 = vdwg.mxu0
    %v3024 = vsel %vm110, %v2947, 0
    %v3027 = vsel %vm110, %v3020, 0
    %3029 = vmatprep.subr.mxu0 0.0
    %3030 = vmatpush1.msra.mxu0 0.0
    %3031 = vmatprep.subr.mxu0 0.0
    %3032 = vmatpush1.msra.mxu0 0.0
    %3033 = vmatprep.subr.mxu0 0.0
    %3034 = vmatpush1.msra.mxu0 0.0
    %3035 = vmatprep.subr.mxu0 0.0
    %3036 = vmatpush1.msra.mxu0 0.0
    %3037 = vmatprep.subr.mxu0 0.0
    %3038 = vmatpush1.msra.mxu0 0.0
    %3039 = vmatprep.subr.mxu0 0.0
    %3040 = vmatpush1.msra.mxu0 0.0
    %3041 = vmatprep.subr.mxu0 0.0
    %3042 = vmatpush1.msra.mxu0 0.0
    %3043 = vmatprep.subr.mxu0 0.0
    %3044 = vmatpush1.msra.mxu0 0.0
    %3045 = vmatprep.subr.mxu0 0.0
    %3046 = vmatpush1.msra.mxu0 0.0
    %3047 = vmatprep.subr.mxu0 0.0
    %3048 = vmatpush1.msra.mxu0 0.0
    %3049 = vmatprep.subr.mxu0 0.0
    %3050 = vmatpush1.msra.mxu0 0.0
    %3051 = vmatprep.subr.mxu0 0.0
    %3052 = vmatpush1.msra.mxu0 0.0
    %3053 = vmatprep.subr.mxu0 0.0
    %3054 = vmatpush1.msra.mxu0 %v37
    %3055 = vmatprep.subr.mxu0 0.0
    %3056 = vmatpush1.msra.mxu0 %v36
    %3057 = vmatprep.subr.mxu0 0.0
    %3058 = vmatpush1.msra.mxu0 %v35
    %3059 = vmatprep.subr.mxu0 0.0
    %3060 = vmatpush1.msra.mxu0 %v34
    %3061 = vmatprep.subr.mxu0 0.0
    %3062 = vmatpush2.msra.mxu0 0.0
    %3063 = vmatprep.subr.mxu0 0.0
    %3064 = vmatpush2.msra.mxu0 0.0
    %3065 = vmatprep.subr.mxu0 0.0
    %3066 = vmatpush2.msra.mxu0 0.0
    %3067 = vmatprep.subr.mxu0 0.0
    %3068 = vmatpush2.msra.mxu0 0.0
    %3069 = vmatprep.subr.mxu0 0.0
    %3070 = vmatpush2.msra.mxu0 0.0
    %3071 = vmatprep.subr.mxu0 0.0
    %3072 = vmatpush2.msra.mxu0 0.0
    %3073 = vmatprep.subr.mxu0 0.0
    %3074 = vmatpush2.msra.mxu0 0.0
    %3075 = vmatprep.subr.mxu0 0.0
    %3076 = vmatpush2.msra.mxu0 0.0
    %3077 = vmatprep.subr.mxu0 0.0
    %3078 = vmatpush2.msra.mxu0 0.0
    %3079 = vmatprep.subr.mxu0 0.0
    %3080 = vmatpush2.msra.mxu0 0.0
    %3081 = vmatprep.subr.mxu0 0.0
    %3082 = vmatpush2.msra.mxu0 0.0
    %3083 = vmatprep.subr.mxu0 0.0
    %3084 = vmatpush2.msra.mxu0 0.0
    %3085 = vmatprep.subr.mxu0 0.0
    %3086 = vmatpush2.msra.mxu0 0.0
    %3087 = vmatprep.subr.mxu0 0.0
    %3088 = vmatpush2.msra.mxu0 0.0
    %3089 = vmatprep.subr.mxu0 0.0
    %3090 = vmatpush2.msra.mxu0 0.0
    %3091 = vmatprep.subr.mxu0 0.0
    %3092 = vmatpush2.msra.mxu0 0.0
    %3093 = vmatprep.mubr.f32.mxu0 0.0
    %3094 = vmatmul.mubr.f32.gmra.mxu0 %v3024
    %v3095 = vpop.f32.mrf.mxu0
    %v3096 = vadd.f32 %v1136, %v3095
    %v3097 = vpop.f32.mrf.mxu0
    %3098 = vmatprep.mubr.f32.mxu0 0.0
    %3099 = vmatmul.mubr.f32.gmra.mxu0 %v3027
    %v3100 = vpop.f32.mrf.mxu0
    %v3101 = vadd.f32 %v1136, %v3100
    %v3102 = vpop.f32.mrf.mxu0
    %3103 = vdwg.mxu0
    %v3104 = vsel %vm110, %v2539, 0
    %v3106 = vsel %vm110, %v2541, 0
    %3108 = vmatprep.subr.mxu0 0.0
    %3109 = vmatpush1.msra.mxu0 0.0
    %3110 = vmatprep.subr.mxu0 0.0
    %3111 = vmatpush1.msra.mxu0 0.0
    %3112 = vmatprep.subr.mxu0 0.0
    %3113 = vmatpush1.msra.mxu0 0.0
    %3114 = vmatprep.subr.mxu0 0.0
    %3115 = vmatpush1.msra.mxu0 0.0
    %3116 = vmatprep.subr.mxu0 0.0
    %3117 = vmatpush1.msra.mxu0 0.0
    %3118 = vmatprep.subr.mxu0 0.0
    %3119 = vmatpush1.msra.mxu0 0.0
    %3120 = vmatprep.subr.mxu0 0.0
    %3121 = vmatpush1.msra.mxu0 0.0
    %3122 = vmatprep.subr.mxu0 0.0
    %3123 = vmatpush1.msra.mxu0 0.0
    %3124 = vmatprep.subr.mxu0 0.0
    %3125 = vmatpush1.msra.mxu0 0.0
    %3126 = vmatprep.subr.mxu0 0.0
    %3127 = vmatpush1.msra.mxu0 0.0
    %3128 = vmatprep.subr.mxu0 0.0
    %3129 = vmatpush1.msra.mxu0 0.0
    %3130 = vmatprep.subr.mxu0 0.0
    %3131 = vmatpush1.msra.mxu0 0.0
    %3132 = vmatprep.subr.mxu0 0.0
    %3133 = vmatpush1.msra.mxu0 %v41
    %3134 = vmatprep.subr.mxu0 0.0
    %3135 = vmatpush1.msra.mxu0 %v40
    %3136 = vmatprep.subr.mxu0 0.0
    %3137 = vmatpush1.msra.mxu0 %v39
    %3138 = vmatprep.subr.mxu0 0.0
    %3139 = vmatpush1.msra.mxu0 %v38
    %3140 = vmatprep.subr.mxu0 0.0
    %3141 = vmatpush2.msra.mxu0 0.0
    %3142 = vmatprep.subr.mxu0 0.0
    %3143 = vmatpush2.msra.mxu0 0.0
    %3144 = vmatprep.subr.mxu0 0.0
    %3145 = vmatpush2.msra.mxu0 0.0
    %3146 = vmatprep.subr.mxu0 0.0
    %3147 = vmatpush2.msra.mxu0 0.0
    %3148 = vmatprep.subr.mxu0 0.0
    %3149 = vmatpush2.msra.mxu0 0.0
    %3150 = vmatprep.subr.mxu0 0.0
    %3151 = vmatpush2.msra.mxu0 0.0
    %3152 = vmatprep.subr.mxu0 0.0
    %3153 = vmatpush2.msra.mxu0 0.0
    %3154 = vmatprep.subr.mxu0 0.0
    %3155 = vmatpush2.msra.mxu0 0.0
    %3156 = vmatprep.subr.mxu0 0.0
    %3157 = vmatpush2.msra.mxu0 0.0
    %3158 = vmatprep.subr.mxu0 0.0
    %3159 = vmatpush2.msra.mxu0 0.0
    %3160 = vmatprep.subr.mxu0 0.0
    %3161 = vmatpush2.msra.mxu0 0.0
    %3162 = vmatprep.subr.mxu0 0.0
    %3163 = vmatpush2.msra.mxu0 0.0
    %3164 = vmatprep.subr.mxu0 0.0
    %3165 = vmatpush2.msra.mxu0 0.0
    %3166 = vmatprep.subr.mxu0 0.0
    %3167 = vmatpush2.msra.mxu0 0.0
    %3168 = vmatprep.subr.mxu0 0.0
    %3169 = vmatpush2.msra.mxu0 0.0
    %3170 = vmatprep.subr.mxu0 0.0
    %3171 = vmatpush2.msra.mxu0 0.0
    %3172 = vmatprep.mubr.f32.mxu0 0.0
    %3173 = vmatmul.mubr.f32.gmra.mxu0 %v3104
    %v3174 = vpop.f32.mrf.mxu0
    %v3175 = vadd.f32 %v1221, %v3174
    %v3176 = vpop.f32.mrf.mxu0
    %3177 = vmatprep.mubr.f32.mxu0 0.0
    %3178 = vmatmul.mubr.f32.gmra.mxu0 %v3106
    %v3179 = vpop.f32.mrf.mxu0
    %v3180 = vadd.f32 %v1221, %v3179
    %v3181 = vpop.f32.mrf.mxu0
    %3182 = vdwg.mxu0
    %v3183 = vadd.f32 %v3096, %v3175
    %v3184 = vadd.f32 %v3101, %v3180
    %v3185 = vxor.u32 %v3183, 2147483648
    %v3186 = vxor.u32 %v3184, 2147483648
    %v3187 = vmul.f32 %v3185, 1.442695
    %v3188 = vpow.pop %v3187
    %v3189 = vmul.f32 %v3186, 1.442695
    %v3190 = vpow.pop %v3189
    %v3191 = vadd.f32 %v3188, 1.0
    %v3192 = vadd.f32 %v3190, 1.0
    %v3193 = vrcp.pop %v3191
    %v3194 = vmul.f32 1.0, %v3193
    %v3195 = vrcp.pop %v3192
    %v3196 = vmul.f32 1.0, %v3195
    %3199 = vrot.lane.b32.xlu0 %v3175, 64
    %v3200 = vpop.permute.xlu0 %3199
    %3201 = vrot.lane.b32.xlu0 %v3180, 64
    %v3202 = vpop.permute.xlu0 %3201
    %v3205 = vmul.f32 %v3194, %v3200
    %v3206 = vmul.f32 %v3196, %v3202
    %3209 = vrot.lane.b32.xlu0 %v3205, 64
    %v3210 = vpop.permute.xlu0 %3209
    %3211 = vrot.lane.b32.xlu0 %v3206, 64
    %v3212 = vpop.permute.xlu0 %3211
    %v3215 = vadd.f32 %v3096, %v3210
    %v3216 = vadd.f32 %v3101, %v3212
    %v3217 = vtanh.pop %v3215
    %v3218 = vtanh.pop %v3216
    %v3219 = vsub.f32 1.0, %v3194
    %v3220 = vsub.f32 1.0, %v3196
    %3223 = vrot.lane.b32.xlu0 %v3217, 96
    %v3224 = vpop.permute.xlu0 %3223
    %3225 = vrot.lane.b32.xlu0 %v3218, 96
    %v3226 = vpop.permute.xlu0 %3225
    %v3229 = vmul.f32 %v3219, %v3224
    %v3230 = vmul.f32 %v3220, %v3226
    %v3231 = vmul.f32 %v3194, %v2534
    %v3232 = vmul.f32 %v3196, %v2535
    %v3233 = vadd.f32 %v3229, %v3231
    %v3234 = vadd.f32 %v3230, %v3232
    %3237 = vrot.lane.b32.xlu0 %v3233, 96
    %v3238 = vpop.permute.xlu0 %3237
    %3239 = vrot.lane.b32.xlu0 %v3234, 96
    %v3240 = vpop.permute.xlu0 %3239
    %v3243 = vsel %vm110, %v3238, 0.0
    %3244 = vadd.xlane.f32.xlu0 %v3243
    %v3245 = vpop.xlane.xlu0 %3244
    %v3246 = vsel %vm110, %v3240, 0.0
    %3247 = vadd.xlane.f32.xlu0 %v3246
    %v3248 = vpop.xlane.xlu0 %3247
    %v3249 = vmul.f32 %v3245, %v159
    %v3250 = vmul.f32 %v3248, %v159
    %v3251 = vsub.f32 %v3233, %v3249
    %v3252 = vsub.f32 %v3234, %v3250
    %v3253 = vmul.f32 %v3251, %v3251
    %v3254 = vmul.f32 %v3252, %v3252
    %3257 = vrot.lane.b32.xlu0 %v3253, 96
    %v3258 = vpop.permute.xlu0 %3257
    %3259 = vrot.lane.b32.xlu0 %v3254, 96
    %v3260 = vpop.permute.xlu0 %3259
    %v3263 = vsel %vm110, %v3258, 0.0
    %3264 = vadd.xlane.f32.xlu0 %v3263
    %v3265 = vpop.xlane.xlu0 %3264
    %v3266 = vsel %vm110, %v3260, 0.0
    %3267 = vadd.xlane.f32.xlu0 %v3266
    %v3268 = vpop.xlane.xlu0 %3267
    %v3269 = vmul.f32 %v3265, %v159
    %v3270 = vmul.f32 %v3268, %v159
    %v3271 = vadd.f32 %v3269, 1e-05
    %v3272 = vadd.f32 %v3270, 1e-05
    %v3273 = vrsqrt.pop %v3271
    %v3274 = vrsqrt.pop %v3272
    %v3275 = vmul.f32 %v3251, %v3273
    %v3276 = vmul.f32 %v3252, %v3274
    %v3277 = vmul.f32 %v3275, %v1409
    %v3278 = vmul.f32 %v3276, %v1409
    %v3279 = vadd.f32 %v3277, %v1419
    %v3280 = vadd.f32 %v3278, %v1419
    %3283 = vrot.lane.b32.xlu0 %v3279, 96
    %v3284 = vpop.permute.xlu0 %3283
    %3285 = vrot.lane.b32.xlu0 %v3280, 96
    %v3286 = vpop.permute.xlu0 %3285
    %v3287 = vsel %vm110, %v3284, 0
    %v3289 = vsel %vm110, %v3286, 0
    %3291 = vmatprep.subr.mxu0 0.0
    %3292 = vmatpush1.msra.mxu0 0.0
    %3293 = vmatprep.subr.mxu0 0.0
    %3294 = vmatpush1.msra.mxu0 0.0
    %3295 = vmatprep.subr.mxu0 0.0
    %3296 = vmatpush1.msra.mxu0 0.0
    %3297 = vmatprep.subr.mxu0 0.0
    %3298 = vmatpush1.msra.mxu0 0.0
    %3299 = vmatprep.subr.mxu0 0.0
    %3300 = vmatpush1.msra.mxu0 0.0
    %3301 = vmatprep.subr.mxu0 0.0
    %3302 = vmatpush1.msra.mxu0 0.0
    %3303 = vmatprep.subr.mxu0 0.0
    %3304 = vmatpush1.msra.mxu0 0.0
    %3305 = vmatprep.subr.mxu0 0.0
    %3306 = vmatpush1.msra.mxu0 0.0
    %3307 = vmatprep.subr.mxu0 0.0
    %3308 = vmatpush1.msra.mxu0 0.0
    %3309 = vmatprep.subr.mxu0 0.0
    %3310 = vmatpush1.msra.mxu0 0.0
    %3311 = vmatprep.subr.mxu0 0.0
    %3312 = vmatpush1.msra.mxu0 0.0
    %3313 = vmatprep.subr.mxu0 0.0
    %3314 = vmatpush1.msra.mxu0 0.0
    %3315 = vmatprep.subr.mxu0 0.0
    %3316 = vmatpush1.msra.mxu0 %v45
    %3317 = vmatprep.subr.mxu0 0.0
    %3318 = vmatpush1.msra.mxu0 %v44
    %3319 = vmatprep.subr.mxu0 0.0
    %3320 = vmatpush1.msra.mxu0 %v43
    %3321 = vmatprep.subr.mxu0 0.0
    %3322 = vmatpush1.msra.mxu0 %v42
    %3323 = vmatprep.subr.mxu0 0.0
    %3324 = vmatpush2.msra.mxu0 0.0
    %3325 = vmatprep.subr.mxu0 0.0
    %3326 = vmatpush2.msra.mxu0 0.0
    %3327 = vmatprep.subr.mxu0 0.0
    %3328 = vmatpush2.msra.mxu0 0.0
    %3329 = vmatprep.subr.mxu0 0.0
    %3330 = vmatpush2.msra.mxu0 0.0
    %3331 = vmatprep.subr.mxu0 0.0
    %3332 = vmatpush2.msra.mxu0 0.0
    %3333 = vmatprep.subr.mxu0 0.0
    %3334 = vmatpush2.msra.mxu0 0.0
    %3335 = vmatprep.subr.mxu0 0.0
    %3336 = vmatpush2.msra.mxu0 0.0
    %3337 = vmatprep.subr.mxu0 0.0
    %3338 = vmatpush2.msra.mxu0 0.0
    %3339 = vmatprep.subr.mxu0 0.0
    %3340 = vmatpush2.msra.mxu0 0.0
    %3341 = vmatprep.subr.mxu0 0.0
    %3342 = vmatpush2.msra.mxu0 0.0
    %3343 = vmatprep.subr.mxu0 0.0
    %3344 = vmatpush2.msra.mxu0 0.0
    %3345 = vmatprep.subr.mxu0 0.0
    %3346 = vmatpush2.msra.mxu0 0.0
    %3347 = vmatprep.subr.mxu0 0.0
    %3348 = vmatpush2.msra.mxu0 0.0
    %3349 = vmatprep.subr.mxu0 0.0
    %3350 = vmatpush2.msra.mxu0 0.0
    %3351 = vmatprep.subr.mxu0 0.0
    %3352 = vmatpush2.msra.mxu0 0.0
    %3353 = vmatprep.subr.mxu0 0.0
    %3354 = vmatpush2.msra.mxu0 0.0
    %3355 = vmatprep.mubr.f32.mxu0 0.0
    %3356 = vmatmul.mubr.f32.gmra.mxu0 %v3287
    %v3357 = vpop.f32.mrf.mxu0
    %v3358 = vadd.f32 %v1426, %v3357
    %v3359 = vpop.f32.mrf.mxu0
    %3360 = vmatprep.mubr.f32.mxu0 0.0
    %3361 = vmatmul.mubr.f32.gmra.mxu0 %v3289
    %v3362 = vpop.f32.mrf.mxu0
    %v3363 = vadd.f32 %v1426, %v3362
    %v3364 = vpop.f32.mrf.mxu0
    %3365 = vdwg.mxu0
    %v3366 = vmax.f32 %v3358, 0.0
    %v3367 = vmax.f32 %v3363, 0.0
    %3368 = vmatprep.subr.mxu0 0.0
    %3369 = vmatpush1.msra.mxu0 %v65
    %3370 = vmatprep.subr.mxu0 0.0
    %3371 = vmatpush1.msra.mxu0 %v64
    %3372 = vmatprep.subr.mxu0 0.0
    %3373 = vmatpush1.msra.mxu0 %v63
    %3374 = vmatprep.subr.mxu0 0.0
    %3375 = vmatpush1.msra.mxu0 %v62
    %3376 = vmatprep.subr.mxu0 0.0
    %3377 = vmatpush1.msra.mxu0 %v61
    %3378 = vmatprep.subr.mxu0 0.0
    %3379 = vmatpush1.msra.mxu0 %v60
    %3380 = vmatprep.subr.mxu0 0.0
    %3381 = vmatpush1.msra.mxu0 %v59
    %3382 = vmatprep.subr.mxu0 0.0
    %3383 = vmatpush1.msra.mxu0 %v58
    %3384 = vmatprep.subr.mxu0 0.0
    %3385 = vmatpush1.msra.mxu0 %v57
    %3386 = vmatprep.subr.mxu0 0.0
    %3387 = vmatpush1.msra.mxu0 %v56
    %3388 = vmatprep.subr.mxu0 0.0
    %3389 = vmatpush1.msra.mxu0 %v55
    %3390 = vmatprep.subr.mxu0 0.0
    %3391 = vmatpush1.msra.mxu0 %v54
    %3392 = vmatprep.subr.mxu0 0.0
    %3393 = vmatpush1.msra.mxu0 %v53
    %3394 = vmatprep.subr.mxu0 0.0
    %3395 = vmatpush1.msra.mxu0 %v52
    %3396 = vmatprep.subr.mxu0 0.0
    %3397 = vmatpush1.msra.mxu0 %v51
    %3398 = vmatprep.subr.mxu0 0.0
    %3399 = vmatpush1.msra.mxu0 %v50
    %3400 = vmatprep.subr.mxu0 0.0
    %3401 = vmatpush2.msra.mxu0 0.0
    %3402 = vmatprep.subr.mxu0 0.0
    %3403 = vmatpush2.msra.mxu0 0.0
    %3404 = vmatprep.subr.mxu0 0.0
    %3405 = vmatpush2.msra.mxu0 0.0
    %3406 = vmatprep.subr.mxu0 0.0
    %3407 = vmatpush2.msra.mxu0 0.0
    %3408 = vmatprep.subr.mxu0 0.0
    %3409 = vmatpush2.msra.mxu0 0.0
    %3410 = vmatprep.subr.mxu0 0.0
    %3411 = vmatpush2.msra.mxu0 0.0
    %3412 = vmatprep.subr.mxu0 0.0
    %3413 = vmatpush2.msra.mxu0 0.0
    %3414 = vmatprep.subr.mxu0 0.0
    %3415 = vmatpush2.msra.mxu0 0.0
    %3416 = vmatprep.subr.mxu0 0.0
    %3417 = vmatpush2.msra.mxu0 0.0
    %3418 = vmatprep.subr.mxu0 0.0
    %3419 = vmatpush2.msra.mxu0 0.0
    %3420 = vmatprep.subr.mxu0 0.0
    %3421 = vmatpush2.msra.mxu0 0.0
    %3422 = vmatprep.subr.mxu0 0.0
    %3423 = vmatpush2.msra.mxu0 0.0
    %3424 = vmatprep.subr.mxu0 0.0
    %3425 = vmatpush2.msra.mxu0 0.0
    %3426 = vmatprep.subr.mxu0 0.0
    %3427 = vmatpush2.msra.mxu0 0.0
    %3428 = vmatprep.subr.mxu0 0.0
    %3429 = vmatpush2.msra.mxu0 0.0
    %3430 = vmatprep.subr.mxu0 0.0
    %3431 = vmatpush2.msra.mxu0 0.0
    %3432 = vmatprep.mubr.f32.mxu0 0.0
    %3433 = vmatmul.mubr.f32.gmra.mxu0 %v3366
    %v3434 = vpop.f32.mrf.mxu0
    %v3435 = vadd.f32 0.0, %v3434
    %v3436 = vpop.f32.mrf.mxu0
    %3437 = vmatprep.mubr.f32.mxu0 0.0
    %3438 = vmatmul.mubr.f32.gmra.mxu0 %v3367
    %v3439 = vpop.f32.mrf.mxu0
    %v3440 = vadd.f32 0.0, %v3439
    %v3441 = vpop.f32.mrf.mxu0
    %3442 = vdwg.mxu0
    %3445 = vrot.lane.b32.xlu0 %v3435, 32
    %v3446 = vpop.permute.xlu0 %3445
    %3447 = vrot.lane.b32.xlu0 %v3440, 32
    %v3448 = vpop.permute.xlu0 %3447
    %v3451 = vadd.f32 %v3233, %v3446
    %v3452 = vadd.f32 %v3234, %v3448
    %v3453 = vadd.f32 %v3451, %v1605
    %v3454 = vadd.f32 %v3452, %v1605
    %3457 = vrot.lane.b32.xlu0 %v3453, 96
    %v3458 = vpop.permute.xlu0 %3457
    %3459 = vrot.lane.b32.xlu0 %v3454, 96
    %v3460 = vpop.permute.xlu0 %3459
    %3463 = vst.msk [vmem:[#allocation2] sm:$0xff] %vm110, %v3458
    %3464 = vst.msk [vmem:[#allocation2 + $0x8] sm:$0xff] %vm110, %v3460
    %v3465 = vsel %vm110, %v3458, 0
    %v3467 = vsel %vm110, %v3460, 0
    %3469 = vmatprep.subr.mxu0 0.0
    %3470 = vmatpush1.msra.mxu0 0.0
    %3471 = vmatprep.subr.mxu0 0.0
    %3472 = vmatpush1.msra.mxu0 0.0
    %3473 = vmatprep.subr.mxu0 0.0
    %3474 = vmatpush1.msra.mxu0 0.0
    %3475 = vmatprep.subr.mxu0 0.0
    %3476 = vmatpush1.msra.mxu0 0.0
    %3477 = vmatprep.subr.mxu0 0.0
    %3478 = vmatpush1.msra.mxu0 0.0
    %3479 = vmatprep.subr.mxu0 0.0
    %3480 = vmatpush1.msra.mxu0 0.0
    %3481 = vmatprep.subr.mxu0 0.0
    %3482 = vmatpush1.msra.mxu0 0.0
    %3483 = vmatprep.subr.mxu0 0.0
    %3484 = vmatpush1.msra.mxu0 0.0
    %3485 = vmatprep.subr.mxu0 0.0
    %3486 = vmatpush1.msra.mxu0 0.0
    %3487 = vmatprep.subr.mxu0 0.0
    %3488 = vmatpush1.msra.mxu0 0.0
    %3489 = vmatprep.subr.mxu0 0.0
    %3490 = vmatpush1.msra.mxu0 0.0
    %3491 = vmatprep.subr.mxu0 0.0
    %3492 = vmatpush1.msra.mxu0 0.0
    %3493 = vmatprep.subr.mxu0 0.0
    %3494 = vmatpush1.msra.mxu0 %v49
    %3495 = vmatprep.subr.mxu0 0.0
    %3496 = vmatpush1.msra.mxu0 %v48
    %3497 = vmatprep.subr.mxu0 0.0
    %3498 = vmatpush1.msra.mxu0 %v47
    %3499 = vmatprep.subr.mxu0 0.0
    %3500 = vmatpush1.msra.mxu0 %v46
    %3501 = vmatprep.subr.mxu0 0.0
    %3502 = vmatpush2.msra.mxu0 0.0
    %3503 = vmatprep.subr.mxu0 0.0
    %3504 = vmatpush2.msra.mxu0 0.0
    %3505 = vmatprep.subr.mxu0 0.0
    %3506 = vmatpush2.msra.mxu0 0.0
    %3507 = vmatprep.subr.mxu0 0.0
    %3508 = vmatpush2.msra.mxu0 0.0
    %3509 = vmatprep.subr.mxu0 0.0
    %3510 = vmatpush2.msra.mxu0 0.0
    %3511 = vmatprep.subr.mxu0 0.0
    %3512 = vmatpush2.msra.mxu0 0.0
    %3513 = vmatprep.subr.mxu0 0.0
    %3514 = vmatpush2.msra.mxu0 0.0
    %3515 = vmatprep.subr.mxu0 0.0
    %3516 = vmatpush2.msra.mxu0 0.0
    %3517 = vmatprep.subr.mxu0 0.0
    %3518 = vmatpush2.msra.mxu0 0.0
    %3519 = vmatprep.subr.mxu0 0.0
    %3520 = vmatpush2.msra.mxu0 0.0
    %3521 = vmatprep.subr.mxu0 0.0
    %3522 = vmatpush2.msra.mxu0 0.0
    %3523 = vmatprep.subr.mxu0 0.0
    %3524 = vmatpush2.msra.mxu0 0.0
    %3525 = vmatprep.subr.mxu0 0.0
    %3526 = vmatpush2.msra.mxu0 0.0
    %3527 = vmatprep.subr.mxu0 0.0
    %3528 = vmatpush2.msra.mxu0 0.0
    %3529 = vmatprep.subr.mxu0 0.0
    %3530 = vmatpush2.msra.mxu0 0.0
    %3531 = vmatprep.subr.mxu0 0.0
    %3532 = vmatpush2.msra.mxu0 0.0
    %3533 = vmatprep.mubr.f32.mxu0 0.0
    %3534 = vmatmul.mubr.f32.gmra.mxu0 %v3465
    %v3535 = vpop.f32.mrf.mxu0
    %v3536 = vadd.f32 0.0, %v3535
    %v3537 = vpop.f32.mrf.mxu0
    %3538 = vmatprep.mubr.f32.mxu0 0.0
    %3539 = vmatmul.mubr.f32.gmra.mxu0 %v3467
    %v3540 = vpop.f32.mrf.mxu0
    %v3541 = vadd.f32 0.0, %v3540
    %v3542 = vpop.f32.mrf.mxu0
    %3543 = vdwg.mxu0
    %vm3544 = vcmask 15360
    %v3545 = vsel %vm3544, %v3536, -inf
    %3546 = vmax.xlane.f32.xlu0 %v3545
    %v3547 = vpop.xlane.xlu0 %3546
    %v3548 = vsel %vm3544, %v3541, -inf
    %3549 = vmax.xlane.f32.xlu0 %v3548
    %v3550 = vpop.xlane.xlu0 %3549
    %v3551 = vsub.f32 %v3536, %v3547
    %v3552 = vsub.f32 %v3541, %v3550
    %v3553 = vmul.f32 %v3551, 1.442695
    %v3554 = vpow.pop %v3553
    %v3555 = vmul.f32 %v3552, 1.442695
    %v3556 = vpow.pop %v3555
    %v3557 = vsel %vm3544, %v3554, 0.0
    %3558 = vadd.xlane.f32.xlu0 %v3557
    %v3559 = vpop.xlane.xlu0 %3558
    %v3560 = vsel %vm3544, %v3556, 0.0
    %3561 = vadd.xlane.f32.xlu0 %v3560
    %v3562 = vpop.xlane.xlu0 %3561
    %v3563 = vrcp.pop %v3559
    %v3564 = vrcp.pop %v3562
    %v3565 = vmul.f32 %v3559, %v3563
    %v3566 = vmul.f32 %v3562, %v3564
    %v3567 = vsub.f32 2.0, %v3565
    %v3568 = vsub.f32 2.0, %v3566
    %v3569 = vmul.f32 %v3563, %v3567
    %v3570 = vmul.f32 %v3564, %v3568
    %v3571 = vmul.f32 %v3554, %v3569
    %v3572 = vmul.f32 %v3556, %v3570
    %v3573 = vld [vmem:[%s2] sm:$0xff]
    %v3574 = vld [vmem:[%s2 + $0x8] sm:$0xff]
    %v3575 = vadd.f32 %v3571, %v3573
    %v3576 = vadd.f32 %v3572, %v3574
    %3579 = vrot.lane.b32.xlu0 %v3575, 1
    %v3580 = vpop.permute.xlu0 %3579
    %3581 = vrot.lane.b32.xlu0 %v3576, 1
    %v3582 = vpop.permute.xlu0 %3581
    %vm3585 = vcmp.gt.f32.partialorder %v3575, %v3580
    %vm3586 = vcmp.gt.f32.partialorder %v3576, %v3582
    %v3587 = vsel %vm3585, 1, 0
    %v3588 = vsel %vm3586, 1, 0
    %v3589 = vcvt.s32.f32 %v3587
    %v3590 = vcvt.s32.f32 %v3588
    %v3591 = vlaneseq
    %v3592 = vand.u32 %v3591, 127
    %vm3593 = vcmp.eq.s32.totalorder %v3592, 0
    %3595 = vset.pattern.permute.xlu0 1
    %3596 = vperm.xlu0 %3595, %v3589
    %v3597 = vpop.permute.xlu0 %3596
    %3600 = vset.pattern.permute.xlu0 1
    %3601 = vperm.xlu0 %3600, %v3590
    %v3602 = vpop.permute.xlu0 %3601
    %v3604 = vsel %vm3593, %v3597, %v3571
    %v3605 = vsel %vm3593, %v3602, %v3572
    %3606 = vst.msk [vmem:[%s7] sm:$0xff] %vm3544, %v3604
    %3607 = vst.msk [vmem:[%s7 + $0x8] sm:$0xff] %vm3544, %v3605
    // Predicated region
    $region26: #{tpu_custom_call.1} parent=1 // pred_check
      _
    $region27: #{tpu_custom_call.1} parent=1 // pred_check_branch
      %3609 = sbr.rel (0) target = $region29
    $region28: #{tpu_custom_call.1} parent=1 // pred_region
      %s3611 = ssub.s32 256, 256
      %3612 = vsyncadd [#allocation3], %s3611
      %s3613 = sshll.u32 [#allocation2], 4
      %s3614 = int_to_ptr.vmem [resolvable:$true] %s3613
      %3619 = dma.vmem_to_hbm [thread:$0]  %s3614, 256, %s6, [#allocation3], 128, 128, 8
    $region29: #{tpu_custom_call.1} parent=1 // pred_fallthru
      _
    // Predicated region
    $region30: #{tpu_custom_call.1} parent=1 // pred_check
      _
    $region31: #{tpu_custom_call.1} parent=1 // pred_check_branch
      %3621 = sbr.rel (0) target = $region33
    $region32: #{tpu_custom_call.1} parent=1 // pred_region
      _
    $region33: #{tpu_custom_call.1} parent=1 // pred_fallthru
      _
    // Predicated region
    $region34: #{tpu_custom_call.1} parent=1 // pred_check
      _
    $region35: #{tpu_custom_call.1} parent=1 // pred_check_branch
      %3623 = sbr.rel (0) target = $region37
    $region36: #{tpu_custom_call.1} parent=1 // pred_region
      %3624 = dma.done [#allocation3], 256
    $region37: #{tpu_custom_call.1} parent=1 // pred_fallthru
      _
    // Predicated region
    $region38: #{tpu_custom_call.1} parent=1 // pred_check
      _
    $region39: #{tpu_custom_call.1} parent=1 // pred_check_branch
      %3626 = sbr.rel (0) target = $region41
    $region40: #{tpu_custom_call.1} parent=1 // pred_region
      _
    $region41: #{tpu_custom_call.1} parent=1 // pred_fallthru
      _
    %3627 = vsyncpa [#allocation3], 1

</llo_original>
